<compile_context>
chip_gen: v7x
topology: tpu7x:2x2x1
jax: 0.10.0
libtpu: 0.0.40
codegen_flags: <defaults>
</compile_context>

<pallas_src>
import jax
import jax.numpy as jnp
from jax import lax
from jax.experimental import pallas as pl
from jax.experimental.pallas import tpu as pltpu

H = 768            # DistilBERT hidden size (fixed by the module: 1536 = 2H, 2304 = 3H)
NUM_ENT = 3        # forward() assumes exactly 3 entities per sentence
NUM_CLS = 5
V_HID = 512
VOCAB = 100
B = 2
S = 16
OUT_LANES = 128    # lane-dense combined output width
PACK_ROWS = 8      # sublane-aligned small-operand pack

# pack layout, f32 (PACK_ROWS, H):
#   row 0 : proj_layer weight, flattened lane-dense (H,)
#   row 1 : predict_layer[0] bias in lanes 0..511
#   row 2 : predict_layer[3] bias in lanes 0..4
#   row 3 : proj_layer bias broadcast across all lanes
#   rows 4..7 : zero padding (sublane alignment)


def _re_kernel(start_ref, end_ref,              # scalar prefetch SMEM (B, NUM_ENT) int32
               enc_ref,                          # (B, S, H) f32
               wp1_ref,                          # predict_layer[0] weight: (3H, 512) bf16
               wp2_ref,                          # predict_layer[3] weight: (512, 5) bf16
               pack_ref,                         # small operands: (PACK_ROWS, H) f32
               out_ref):                         # (B, OUT_LANES) f32
    b, s, _ = enc_ref.shape
    pos = lax.broadcasted_iota(jnp.int32, (s, 1), 0)
    # Finite fill (instead of -inf) so an empty/inverted span cannot poison the
    # outputs with NaN; for valid spans the masked max equals the true span max.
    fill = float(jnp.finfo(jnp.float32).min)

    # ---- entity-span max pooling in f32 (exact vs. the torch reference; a
    #      single-token span reduces to that token's embedding) ---------------
    pooled = []   # pooled[j]: (b, H) f32, entity j across all batch rows
    for j in range(NUM_ENT):
        rows = []
        for bi in range(b):
            st = start_ref[bi, j]
            en = end_ref[bi, j]
            mask = (pos >= st) & (pos <= en)                    # (s, 1)
            rows.append(jnp.max(jnp.where(mask, enc_ref[bi], fill),
                                axis=0, keepdims=True))         # (1, H) f32
        pooled.append(jnp.concatenate(rows, axis=0))            # (b, H) f32
    # nn.Dropout layers are identity at inference time.
    # NOTE: the 5-iteration gated relational update of the reference forward()
    # is dead code w.r.t. both returned tensors and is intentionally omitted.

    # ---- predict_layer(flatten(ent_context_emb)), all batch rows at once ----
    # flatten(3, H) @ (3H, 512) computed as the sum of 3 chunked (b,H)@(H,512)
    # matmuls (avoids an in-kernel cross-lane reshape); bf16 MXU operands with
    # f32 accumulation.
    hp = pack_ref[1:2, 0:V_HID]                                 # (1, 512) f32 bias
    for j in range(NUM_ENT):
        hp = hp + jnp.dot(pooled[j].astype(jnp.bfloat16),
                          wp1_ref[j * H:(j + 1) * H, :],
                          preferred_element_type=jnp.float32)   # -> (b, 512)
    hp = jnp.maximum(hp, 0.0)
    rel = (jnp.dot(hp.astype(jnp.bfloat16), wp2_ref[...],
                   preferred_element_type=jnp.float32)
           + pack_ref[2:3, 0:NUM_CLS])                          # (b, 5) f32

    # ---- proj_layer + sigmoid entity scores: N=1, so skip the MXU entirely;
    #      VPU multiply + lane-axis reduce per entity, one sigmoid for all -----
    wpr_row = pack_ref[0:1, :]                                  # (1, H) f32
    cols = [jnp.sum(pooled[j] * wpr_row, axis=1, keepdims=True)
            for j in range(NUM_ENT)]                            # 3 x (b, 1) f32
    scores = jax.nn.sigmoid(jnp.concatenate(cols, axis=1)
                            + pack_ref[3:4, 0:NUM_ENT])         # (b, 3) f32

    # ---- single lane-dense output store: rel in lanes 0..4, scores in 5..7 ---
    pad = jnp.zeros((b, OUT_LANES - NUM_CLS - NUM_ENT), jnp.float32)
    out_ref[...] = jnp.concatenate([rel, scores, pad], axis=1)


def _full_spec(shape):
    nd = len(shape)
    return pl.BlockSpec(shape, lambda *_: (0,) * nd)


def prepare_re_weights(p):
    """One-time weight prep, OUTSIDE the per-call hot path: bf16 copies of the
    large matmul weights and one lane-dense f32 pack of the small operands.
    TODO(synk): a per-chip narrow-weight path for pred_w1 (int8 on v5e/v6e,
    fp8-e4m3 on v7x) would halve the dominant weight DMA; omitted to keep the
    kernel chip-agnostic and numerically tight."""
    pack = jnp.zeros((PACK_ROWS, H), jnp.float32)
    pack = pack.at[0, :].set(p["proj_w"].reshape(-1))
    pack = pack.at[1, :V_HID].set(p["pred_b1"].reshape(-1))
    pack = pack.at[2, :NUM_CLS].set(p["pred_b2"].reshape(-1))
    pack = pack.at[3, :].set(p["proj_b"][0, 0])
    return {
        "wp1": p["pred_w1"].astype(jnp.bfloat16),     # (3H, 512)
        "wp2": p["pred_w2"].astype(jnp.bfloat16),     # (512, 5)
        "pack": pack,                                 # (8, H) f32
    }


def relation_extractor_pallas(encoding, ent_start, ent_end, w):
    """encoding: (B, S, H) f32; ent_start/ent_end: (B, NUM_ENT) int32 inclusive
    spans; w: output of prepare_re_weights().
    Returns (rel_results (B, 1, NUM_CLS), ent_scores (B, NUM_ENT)), both f32."""
    b = encoding.shape[0]
    tensor_args = (encoding, w["wp1"], w["wp2"], w["pack"])

    grid_spec = pltpu.PrefetchScalarGridSpec(
        num_scalar_prefetch=2,
        grid=(1,),                                   # whole (tiny) batch in one step
        in_specs=[_full_spec(t.shape) for t in tensor_args],
        out_specs=_full_spec((b, OUT_LANES)))

    out = pl.pallas_call(
        _re_kernel,
        out_shape=jax.ShapeDtypeStruct((b, OUT_LANES), jnp.float32),
        grid_spec=grid_spec,
        compiler_params=pltpu.CompilerParams(
            # TODO(synk): with a production-sized batch, add a leading batch
            # grid axis marked "parallel" (amortizes the ~2.4 MB weight DMA
            # and lets both v7x TensorCores participate).
            dimension_semantics=("arbitrary",),
            vmem_limit_bytes=32 * 1024 * 1024),      # footprint ~5 MB double-buffered
    )(ent_start, ent_end, *tensor_args)

    rel = out[:, :NUM_CLS].reshape(b, 1, NUM_CLS)
    score = out[:, NUM_CLS:NUM_CLS + NUM_ENT]
    return rel, score


def reference_forward(encoding, ent_start, ent_end, p):
    """Pure-JAX f32 reference of the output-relevant forward path."""
    rels, scores = [], []
    for i in range(encoding.shape[0]):
        ents = []
        for j in range(NUM_ENT):
            st, en = int(ent_start[i, j]), int(ent_end[i, j])
            ents.append(jnp.max(encoding[i, st:en + 1], axis=0))
        ent = jnp.stack(ents)                                   # (3, H)
        flat = ent.reshape(1, -1)                               # (1, 3H)
        hp = jnp.maximum(
            jnp.dot(flat, p["pred_w1"], precision=lax.Precision.HIGHEST)
            + p["pred_b1"], 0.0)
        rel = (jnp.dot(hp, p["pred_w2"], precision=lax.Precision.HIGHEST)
               + p["pred_b2"])                                  # (1, 5)
        sc = jax.nn.sigmoid(
            jnp.dot(ent, p["proj_w"], precision=lax.Precision.HIGHEST)
            + p["proj_b"]).reshape(-1)
        rels.append(rel)
        scores.append(sc)
    return jnp.stack(rels), jnp.stack(scores)


def init_params(key):
    def linear(k, fin, fout):
        k1, k2 = jax.random.split(k)
        bound = 1.0 / (fin ** 0.5)
        w = jax.random.uniform(k1, (fin, fout), jnp.float32, -bound, bound)
        bb = jax.random.uniform(k2, (1, fout), jnp.float32, -bound, bound)
        return w, bb

    keys = jax.random.split(key, 8)
    p = {}
    # TODO(synk): the pretrained (frozen) DistilBERT encoder is replaced by a
    # deterministic embedding-table lookup; loading a checkpoint is out of scope.
    p["emb"] = 0.02 * jax.random.normal(keys[0], (VOCAB, H), jnp.float32)
    # The following parameters exist in the module but never influence the
    # returned tensors (dead path); created for fidelity, NOT passed to the kernel.
    p["vr_w1"], p["vr_b1"] = linear(keys[1], 2 * H, V_HID)            # V_r_layer[0]
    p["vr_w2"], p["vr_b2"] = linear(keys[2], V_HID, NUM_CLS)          # V_r_layer[3]
    p["ar_w"], p["ar_b"] = linear(keys[3], NUM_CLS, H)                # A_r_matrix
    p["gate_w"], p["gate_b"] = linear(keys[4], 2 * H, H)              # gate_layer
    # Output-relevant parameters.
    p["pred_w1"], p["pred_b1"] = linear(keys[5], NUM_ENT * H, V_HID)  # predict_layer[0]
    p["pred_w2"], p["pred_b2"] = linear(keys[6], V_HID, NUM_CLS)      # predict_layer[3]
    p["proj_w"], p["proj_b"] = linear(keys[7], H, 1)                  # proj_layer
    # rel_attn / rel_classifer are declared in __init__ but never used in forward(); omitted.
    return p


if __name__ == "__main__":
    key = jax.random.PRNGKey(0)
    kp, kt = jax.random.split(key)
    params = init_params(kp)
    prepared = prepare_re_weights(params)         # one-time prep, outside the hot path

    tokens = jax.random.randint(kt, (B, S), 0, VOCAB)             # "inputs"
    # ent_pos: 3 entity (start, end) spans per sentence (inclusive, like the ref).
    ent_start = jnp.array([[0, 2, 5], [1, 4, 6]], dtype=jnp.int32)
    ent_end = jnp.array([[0, 4, 7], [3, 4, 9]], dtype=jnp.int32)

    # Frozen "BERT" encoding (deterministic embedding lookup), kept in f32.
    encoding = params["emb"][tokens]                              # (B, S, H) f32

    rel, score = relation_extractor_pallas(encoding, ent_start, ent_end, prepared)
    jax.block_until_ready((rel, score))

    rel_ref, score_ref = reference_forward(encoding, ent_start, ent_end, params)
    assert rel.shape == (B, 1, NUM_CLS) and score.shape == (B, NUM_ENT)
    assert jnp.allclose(rel, rel_ref, atol=2e-3, rtol=2e-3), "rel mismatch"
    assert jnp.allclose(score, score_ref, atol=2e-3, rtol=2e-3), "score mismatch"
    print("KERNEL_OK")
</pallas_src>

<mosaic_0001>
module attributes {stable_mosaic.version = 11 : i64} {
  func.func @_re_kernel(%arg0: i32, %arg1: memref<2x3xi32, #tpu.memory_space<smem>>, %arg2: memref<2x3xi32, #tpu.memory_space<smem>>, %arg3: memref<2x16x768xf32, #tpu.memory_space<vmem>>, %arg4: memref<2304x512xbf16, #tpu.memory_space<vmem>>, %arg5: memref<512x5xbf16, #tpu.memory_space<vmem>>, %arg6: memref<8x768xf32, #tpu.memory_space<vmem>>, %arg7: memref<2x128xf32, #tpu.memory_space<vmem>>) attributes {dimension_semantics = [#tpu.dimension_semantics<arbitrary>], iteration_bounds = array<i64: 1>, scalar_prefetch = 2 : i64, scratch_operands = 0 : i64, tpu.core_type = #tpu.core_type<tc>, window_params = [{pipeline_mode = #tpu.pipeline_mode<synchronous>, transform_indices = @transform_0, window_bounds = array<i64: 2, 16, 768>}, {pipeline_mode = #tpu.pipeline_mode<synchronous>, transform_indices = @transform_1, window_bounds = array<i64: 2304, 512>}, {pipeline_mode = #tpu.pipeline_mode<synchronous>, transform_indices = @transform_2, window_bounds = array<i64: 512, 5>}, {pipeline_mode = #tpu.pipeline_mode<synchronous>, transform_indices = @transform_3, window_bounds = array<i64: 8, 768>}, {pipeline_mode = #tpu.pipeline_mode<synchronous>, transform_indices = @transform_4, window_bounds = array<i64: 2, 128>}]} {
    %0 = tpu.iota {dimensions = array<i32: 0>} : vector<16x1xi32>
    %c0 = arith.constant 0 : index
    %c0_0 = arith.constant 0 : index
    %1 = memref.load %arg1[%c0, %c0_0] : memref<2x3xi32, #tpu.memory_space<smem>>
    %c0_1 = arith.constant 0 : index
    %c0_2 = arith.constant 0 : index
    %2 = memref.load %arg2[%c0_1, %c0_2] : memref<2x3xi32, #tpu.memory_space<smem>>
    %3 = vector.broadcast %1 : i32 to vector<16x1xi32>
    %4 = arith.cmpi sge, %0, %3 : vector<16x1xi32>
    %5 = vector.broadcast %2 : i32 to vector<16x1xi32>
    %6 = arith.cmpi sle, %0, %5 : vector<16x1xi32>
    %7 = arith.andi %4, %6 : vector<16x1xi1>
    %c0_3 = arith.constant 0 : index
    %c0_4 = arith.constant 0 : index
    %c0_5 = arith.constant 0 : index
    %8 = vector.load %arg3[%c0_3, %c0_4, %c0_5] : memref<2x16x768xf32, #tpu.memory_space<vmem>>, vector<1x16x768xf32>
    %9 = vector.shape_cast %8 : vector<1x16x768xf32> to vector<16x768xf32>
    %cst = arith.constant -3.40282347E+38 : f32
    %10 = vector.shape_cast %7 : vector<16x1xi1> to vector<16x1xi1>
    %11 = vector.broadcast %10 : vector<16x1xi1> to vector<16x768xi1>
    %12 = vector.broadcast %cst : f32 to vector<16x768xf32>
    %13 = arith.select %11, %9, %12 : vector<16x768xi1>, vector<16x768xf32>
    %cst_6 = arith.constant dense<0xFF800000> : vector<768xf32>
    %14 = vector.multi_reduction <maximumf>, %13, %cst_6 [0] : vector<16x768xf32> to vector<768xf32>
    %15 = vector.shape_cast %14 : vector<768xf32> to vector<1x768xf32>
    %c1 = arith.constant 1 : index
    %c0_7 = arith.constant 0 : index
    %16 = memref.load %arg1[%c1, %c0_7] : memref<2x3xi32, #tpu.memory_space<smem>>
    %c1_8 = arith.constant 1 : index
    %c0_9 = arith.constant 0 : index
    %17 = memref.load %arg2[%c1_8, %c0_9] : memref<2x3xi32, #tpu.memory_space<smem>>
    %18 = vector.broadcast %16 : i32 to vector<16x1xi32>
    %19 = arith.cmpi sge, %0, %18 : vector<16x1xi32>
    %20 = vector.broadcast %17 : i32 to vector<16x1xi32>
    %21 = arith.cmpi sle, %0, %20 : vector<16x1xi32>
    %22 = arith.andi %19, %21 : vector<16x1xi1>
    %c1_10 = arith.constant 1 : index
    %c0_11 = arith.constant 0 : index
    %c0_12 = arith.constant 0 : index
    %23 = vector.load %arg3[%c1_10, %c0_11, %c0_12] : memref<2x16x768xf32, #tpu.memory_space<vmem>>, vector<1x16x768xf32>
    %24 = vector.shape_cast %23 : vector<1x16x768xf32> to vector<16x768xf32>
    %cst_13 = arith.constant -3.40282347E+38 : f32
    %25 = vector.shape_cast %22 : vector<16x1xi1> to vector<16x1xi1>
    %26 = vector.broadcast %25 : vector<16x1xi1> to vector<16x768xi1>
    %27 = vector.broadcast %cst_13 : f32 to vector<16x768xf32>
    %28 = arith.select %26, %24, %27 : vector<16x768xi1>, vector<16x768xf32>
    %cst_14 = arith.constant dense<0xFF800000> : vector<768xf32>
    %29 = vector.multi_reduction <maximumf>, %28, %cst_14 [0] : vector<16x768xf32> to vector<768xf32>
    %30 = vector.shape_cast %29 : vector<768xf32> to vector<1x768xf32>
    %31 = tpu.concatenate %15, %30 in 0 : vector<1x768xf32>, vector<1x768xf32> -> vector<2x768xf32>
    %c0_15 = arith.constant 0 : index
    %c1_16 = arith.constant 1 : index
    %32 = memref.load %arg1[%c0_15, %c1_16] : memref<2x3xi32, #tpu.memory_space<smem>>
    %c0_17 = arith.constant 0 : index
    %c1_18 = arith.constant 1 : index
    %33 = memref.load %arg2[%c0_17, %c1_18] : memref<2x3xi32, #tpu.memory_space<smem>>
    %34 = vector.broadcast %32 : i32 to vector<16x1xi32>
    %35 = arith.cmpi sge, %0, %34 : vector<16x1xi32>
    %36 = vector.broadcast %33 : i32 to vector<16x1xi32>
    %37 = arith.cmpi sle, %0, %36 : vector<16x1xi32>
    %38 = arith.andi %35, %37 : vector<16x1xi1>
    %c0_19 = arith.constant 0 : index
    %c0_20 = arith.constant 0 : index
    %c0_21 = arith.constant 0 : index
    %39 = vector.load %arg3[%c0_19, %c0_20, %c0_21] : memref<2x16x768xf32, #tpu.memory_space<vmem>>, vector<1x16x768xf32>
    %40 = vector.shape_cast %39 : vector<1x16x768xf32> to vector<16x768xf32>
    %cst_22 = arith.constant -3.40282347E+38 : f32
    %41 = vector.shape_cast %38 : vector<16x1xi1> to vector<16x1xi1>
    %42 = vector.broadcast %41 : vector<16x1xi1> to vector<16x768xi1>
    %43 = vector.broadcast %cst_22 : f32 to vector<16x768xf32>
    %44 = arith.select %42, %40, %43 : vector<16x768xi1>, vector<16x768xf32>
    %cst_23 = arith.constant dense<0xFF800000> : vector<768xf32>
    %45 = vector.multi_reduction <maximumf>, %44, %cst_23 [0] : vector<16x768xf32> to vector<768xf32>
    %46 = vector.shape_cast %45 : vector<768xf32> to vector<1x768xf32>
    %c1_24 = arith.constant 1 : index
    %c1_25 = arith.constant 1 : index
    %47 = memref.load %arg1[%c1_24, %c1_25] : memref<2x3xi32, #tpu.memory_space<smem>>
    %c1_26 = arith.constant 1 : index
    %c1_27 = arith.constant 1 : index
    %48 = memref.load %arg2[%c1_26, %c1_27] : memref<2x3xi32, #tpu.memory_space<smem>>
    %49 = vector.broadcast %47 : i32 to vector<16x1xi32>
    %50 = arith.cmpi sge, %0, %49 : vector<16x1xi32>
    %51 = vector.broadcast %48 : i32 to vector<16x1xi32>
    %52 = arith.cmpi sle, %0, %51 : vector<16x1xi32>
    %53 = arith.andi %50, %52 : vector<16x1xi1>
    %c1_28 = arith.constant 1 : index
    %c0_29 = arith.constant 0 : index
    %c0_30 = arith.constant 0 : index
    %54 = vector.load %arg3[%c1_28, %c0_29, %c0_30] : memref<2x16x768xf32, #tpu.memory_space<vmem>>, vector<1x16x768xf32>
    %55 = vector.shape_cast %54 : vector<1x16x768xf32> to vector<16x768xf32>
    %cst_31 = arith.constant -3.40282347E+38 : f32
    %56 = vector.shape_cast %53 : vector<16x1xi1> to vector<16x1xi1>
    %57 = vector.broadcast %56 : vector<16x1xi1> to vector<16x768xi1>
    %58 = vector.broadcast %cst_31 : f32 to vector<16x768xf32>
    %59 = arith.select %57, %55, %58 : vector<16x768xi1>, vector<16x768xf32>
    %cst_32 = arith.constant dense<0xFF800000> : vector<768xf32>
    %60 = vector.multi_reduction <maximumf>, %59, %cst_32 [0] : vector<16x768xf32> to vector<768xf32>
    %61 = vector.shape_cast %60 : vector<768xf32> to vector<1x768xf32>
    %62 = tpu.concatenate %46, %61 in 0 : vector<1x768xf32>, vector<1x768xf32> -> vector<2x768xf32>
    %c0_33 = arith.constant 0 : index
    %c2 = arith.constant 2 : index
    %63 = memref.load %arg1[%c0_33, %c2] : memref<2x3xi32, #tpu.memory_space<smem>>
    %c0_34 = arith.constant 0 : index
    %c2_35 = arith.constant 2 : index
    %64 = memref.load %arg2[%c0_34, %c2_35] : memref<2x3xi32, #tpu.memory_space<smem>>
    %65 = vector.broadcast %63 : i32 to vector<16x1xi32>
    %66 = arith.cmpi sge, %0, %65 : vector<16x1xi32>
    %67 = vector.broadcast %64 : i32 to vector<16x1xi32>
    %68 = arith.cmpi sle, %0, %67 : vector<16x1xi32>
    %69 = arith.andi %66, %68 : vector<16x1xi1>
    %c0_36 = arith.constant 0 : index
    %c0_37 = arith.constant 0 : index
    %c0_38 = arith.constant 0 : index
    %70 = vector.load %arg3[%c0_36, %c0_37, %c0_38] : memref<2x16x768xf32, #tpu.memory_space<vmem>>, vector<1x16x768xf32>
    %71 = vector.shape_cast %70 : vector<1x16x768xf32> to vector<16x768xf32>
    %cst_39 = arith.constant -3.40282347E+38 : f32
    %72 = vector.shape_cast %69 : vector<16x1xi1> to vector<16x1xi1>
    %73 = vector.broadcast %72 : vector<16x1xi1> to vector<16x768xi1>
    %74 = vector.broadcast %cst_39 : f32 to vector<16x768xf32>
    %75 = arith.select %73, %71, %74 : vector<16x768xi1>, vector<16x768xf32>
    %cst_40 = arith.constant dense<0xFF800000> : vector<768xf32>
    %76 = vector.multi_reduction <maximumf>, %75, %cst_40 [0] : vector<16x768xf32> to vector<768xf32>
    %77 = vector.shape_cast %76 : vector<768xf32> to vector<1x768xf32>
    %c1_41 = arith.constant 1 : index
    %c2_42 = arith.constant 2 : index
    %78 = memref.load %arg1[%c1_41, %c2_42] : memref<2x3xi32, #tpu.memory_space<smem>>
    %c1_43 = arith.constant 1 : index
    %c2_44 = arith.constant 2 : index
    %79 = memref.load %arg2[%c1_43, %c2_44] : memref<2x3xi32, #tpu.memory_space<smem>>
    %80 = vector.broadcast %78 : i32 to vector<16x1xi32>
    %81 = arith.cmpi sge, %0, %80 : vector<16x1xi32>
    %82 = vector.broadcast %79 : i32 to vector<16x1xi32>
    %83 = arith.cmpi sle, %0, %82 : vector<16x1xi32>
    %84 = arith.andi %81, %83 : vector<16x1xi1>
    %c1_45 = arith.constant 1 : index
    %c0_46 = arith.constant 0 : index
    %c0_47 = arith.constant 0 : index
    %85 = vector.load %arg3[%c1_45, %c0_46, %c0_47] : memref<2x16x768xf32, #tpu.memory_space<vmem>>, vector<1x16x768xf32>
    %86 = vector.shape_cast %85 : vector<1x16x768xf32> to vector<16x768xf32>
    %cst_48 = arith.constant -3.40282347E+38 : f32
    %87 = vector.shape_cast %84 : vector<16x1xi1> to vector<16x1xi1>
    %88 = vector.broadcast %87 : vector<16x1xi1> to vector<16x768xi1>
    %89 = vector.broadcast %cst_48 : f32 to vector<16x768xf32>
    %90 = arith.select %88, %86, %89 : vector<16x768xi1>, vector<16x768xf32>
    %cst_49 = arith.constant dense<0xFF800000> : vector<768xf32>
    %91 = vector.multi_reduction <maximumf>, %90, %cst_49 [0] : vector<16x768xf32> to vector<768xf32>
    %92 = vector.shape_cast %91 : vector<768xf32> to vector<1x768xf32>
    %93 = tpu.concatenate %77, %92 in 0 : vector<1x768xf32>, vector<1x768xf32> -> vector<2x768xf32>
    %c1_50 = arith.constant 1 : index
    %c0_51 = arith.constant 0 : index
    %94 = vector.load %arg6[%c1_50, %c0_51] : memref<8x768xf32, #tpu.memory_space<vmem>>, vector<1x512xf32>
    %95 = arith.truncf %31 : vector<2x768xf32> to vector<2x768xbf16>
    %c0_52 = arith.constant 0 : index
    %c0_53 = arith.constant 0 : index
    %96 = vector.load %arg4[%c0_52, %c0_53] : memref<2304x512xbf16, #tpu.memory_space<vmem>>, vector<768x512xbf16>
    %cst_54 = arith.constant dense<0.000000e+00> : vector<2x512xf32>
    %97 = tpu.matmul %95, %96, %cst_54 {dimension_numbers = #tpu.dot_dimension_numbers<[1], [0], [0], [1], [0, 0, 1, 1], [], []>} : vector<2x768xbf16>, vector<768x512xbf16>, vector<2x512xf32> -> vector<2x512xf32>
    %98 = vector.broadcast %94 : vector<1x512xf32> to vector<2x512xf32>
    %99 = arith.addf %98, %97 : vector<2x512xf32>
    %100 = arith.truncf %62 : vector<2x768xf32> to vector<2x768xbf16>
    %c768 = arith.constant 768 : index
    %c0_55 = arith.constant 0 : index
    %101 = vector.load %arg4[%c768, %c0_55] : memref<2304x512xbf16, #tpu.memory_space<vmem>>, vector<768x512xbf16>
    %cst_56 = arith.constant dense<0.000000e+00> : vector<2x512xf32>
    %102 = tpu.matmul %100, %101, %cst_56 {dimension_numbers = #tpu.dot_dimension_numbers<[1], [0], [0], [1], [0, 0, 1, 1], [], []>} : vector<2x768xbf16>, vector<768x512xbf16>, vector<2x512xf32> -> vector<2x512xf32>
    %103 = arith.addf %99, %102 : vector<2x512xf32>
    %104 = arith.truncf %93 : vector<2x768xf32> to vector<2x768xbf16>
    %c1536 = arith.constant 1536 : index
    %c0_57 = arith.constant 0 : index
    %105 = vector.load %arg4[%c1536, %c0_57] : memref<2304x512xbf16, #tpu.memory_space<vmem>>, vector<768x512xbf16>
    %cst_58 = arith.constant dense<0.000000e+00> : vector<2x512xf32>
    %106 = tpu.matmul %104, %105, %cst_58 {dimension_numbers = #tpu.dot_dimension_numbers<[1], [0], [0], [1], [0, 0, 1, 1], [], []>} : vector<2x768xbf16>, vector<768x512xbf16>, vector<2x512xf32> -> vector<2x512xf32>
    %107 = arith.addf %103, %106 : vector<2x512xf32>
    %cst_59 = arith.constant 0.000000e+00 : f32
    %108 = vector.broadcast %cst_59 : f32 to vector<2x512xf32>
    %109 = arith.maximumf %107, %108 : vector<2x512xf32>
    %110 = arith.truncf %109 : vector<2x512xf32> to vector<2x512xbf16>
    %c0_60 = arith.constant 0 : index
    %c0_61 = arith.constant 0 : index
    %111 = vector.load %arg5[%c0_60, %c0_61] : memref<512x5xbf16, #tpu.memory_space<vmem>>, vector<512x5xbf16>
    %cst_62 = arith.constant dense<0.000000e+00> : vector<2x5xf32>
    %112 = tpu.matmul %110, %111, %cst_62 {dimension_numbers = #tpu.dot_dimension_numbers<[1], [0], [0], [1], [0, 0, 1, 1], [], []>} : vector<2x512xbf16>, vector<512x5xbf16>, vector<2x5xf32> -> vector<2x5xf32>
    %c2_63 = arith.constant 2 : index
    %c0_64 = arith.constant 0 : index
    %113 = vector.load %arg6[%c2_63, %c0_64] : memref<8x768xf32, #tpu.memory_space<vmem>>, vector<1x5xf32>
    %114 = vector.broadcast %113 : vector<1x5xf32> to vector<2x5xf32>
    %115 = arith.addf %112, %114 : vector<2x5xf32>
    %c0_65 = arith.constant 0 : index
    %c0_66 = arith.constant 0 : index
    %116 = vector.load %arg6[%c0_65, %c0_66] : memref<8x768xf32, #tpu.memory_space<vmem>>, vector<1x768xf32>
    %117 = vector.broadcast %116 : vector<1x768xf32> to vector<2x768xf32>
    %118 = arith.mulf %31, %117 : vector<2x768xf32>
    %cst_67 = arith.constant dense<0.000000e+00> : vector<2xf32>
    %119 = vector.multi_reduction <add>, %118, %cst_67 [1] : vector<2x768xf32> to vector<2xf32>
    %120 = vector.shape_cast %119 : vector<2xf32> to vector<2x1xf32>
    %121 = vector.broadcast %116 : vector<1x768xf32> to vector<2x768xf32>
    %122 = arith.mulf %62, %121 : vector<2x768xf32>
    %cst_68 = arith.constant dense<0.000000e+00> : vector<2xf32>
    %123 = vector.multi_reduction <add>, %122, %cst_68 [1] : vector<2x768xf32> to vector<2xf32>
    %124 = vector.shape_cast %123 : vector<2xf32> to vector<2x1xf32>
    %125 = vector.broadcast %116 : vector<1x768xf32> to vector<2x768xf32>
    %126 = arith.mulf %93, %125 : vector<2x768xf32>
    %cst_69 = arith.constant dense<0.000000e+00> : vector<2xf32>
    %127 = vector.multi_reduction <add>, %126, %cst_69 [1] : vector<2x768xf32> to vector<2xf32>
    %128 = vector.shape_cast %127 : vector<2xf32> to vector<2x1xf32>
    %129 = tpu.concatenate %120, %124, %128 in 1 : vector<2x1xf32>, vector<2x1xf32>, vector<2x1xf32> -> vector<2x3xf32>
    %c3 = arith.constant 3 : index
    %c0_70 = arith.constant 0 : index
    %130 = vector.load %arg6[%c3, %c0_70] : memref<8x768xf32, #tpu.memory_space<vmem>>, vector<1x3xf32>
    %131 = vector.broadcast %130 : vector<1x3xf32> to vector<2x3xf32>
    %132 = arith.addf %129, %131 : vector<2x3xf32>
    %133 = arith.negf %132 : vector<2x3xf32>
    %134 = math.exp %133 : vector<2x3xf32>
    %cst_71 = arith.constant 1.000000e+00 : f32
    %135 = vector.broadcast %cst_71 : f32 to vector<2x3xf32>
    %136 = arith.addf %135, %134 : vector<2x3xf32>
    %137 = arith.divf %135, %136 : vector<2x3xf32>
    %cst_72 = arith.constant 0.000000e+00 : f32
    %138 = vector.broadcast %cst_72 : f32 to vector<2x120xf32>
    %139 = tpu.concatenate %115, %137, %138 in 1 : vector<2x5xf32>, vector<2x3xf32>, vector<2x120xf32> -> vector<2x128xf32>
    %c0_73 = arith.constant 0 : index
    %c0_74 = arith.constant 0 : index
    %140 = vector.load %arg7[%c0_73, %c0_74] : memref<2x128xf32, #tpu.memory_space<vmem>>, vector<2x128xf32>
    tpu.vector_store %arg7[%c0_73, %c0_74], %139 {strides = array<i32>} : memref<2x128xf32, #tpu.memory_space<vmem>>, vector<2x128xf32>,
    return
  }
  func.func @transform_0(%arg0: i32, %arg1: memref<2x3xi32, #tpu.memory_space<smem>>, %arg2: memref<2x3xi32, #tpu.memory_space<smem>>) -> (i32, i32, i32) {
    %c0_i32 = arith.constant 0 : i32
    %c0_i32_0 = arith.constant 0 : i32
    %c0_i32_1 = arith.constant 0 : i32
    %c0_i32_2 = arith.constant 0 : i32
    return %c0_i32, %c0_i32_0, %c0_i32_1 : i32, i32, i32
  }
  func.func @transform_1(%arg0: i32, %arg1: memref<2x3xi32, #tpu.memory_space<smem>>, %arg2: memref<2x3xi32, #tpu.memory_space<smem>>) -> (i32, i32) {
    %c0_i32 = arith.constant 0 : i32
    %c0_i32_0 = arith.constant 0 : i32
    %c0_i32_1 = arith.constant 0 : i32
    return %c0_i32, %c0_i32_0 : i32, i32
  }
  func.func @transform_2(%arg0: i32, %arg1: memref<2x3xi32, #tpu.memory_space<smem>>, %arg2: memref<2x3xi32, #tpu.memory_space<smem>>) -> (i32, i32) {
    %c0_i32 = arith.constant 0 : i32
    %c0_i32_0 = arith.constant 0 : i32
    %c0_i32_1 = arith.constant 0 : i32
    return %c0_i32, %c0_i32_0 : i32, i32
  }
  func.func @transform_3(%arg0: i32, %arg1: memref<2x3xi32, #tpu.memory_space<smem>>, %arg2: memref<2x3xi32, #tpu.memory_space<smem>>) -> (i32, i32) {
    %c0_i32 = arith.constant 0 : i32
    %c0_i32_0 = arith.constant 0 : i32
    %c0_i32_1 = arith.constant 0 : i32
    return %c0_i32, %c0_i32_0 : i32, i32
  }
  func.func @transform_4(%arg0: i32, %arg1: memref<2x3xi32, #tpu.memory_space<smem>>, %arg2: memref<2x3xi32, #tpu.memory_space<smem>>) -> (i32, i32) {
    %c0_i32 = arith.constant 0 : i32
    %c0_i32_0 = arith.constant 0 : i32
    %c0_i32_1 = arith.constant 0 : i32
    return %c0_i32, %c0_i32_0 : i32, i32
  }
}

</mosaic_0001>

<llo_original>
// kernel: tpu_custom_call.1
$region0: #{tpu_custom_call.1}
  #allocation0 [shape = 'u32[]', space=smem, size = 0x4, offset = 0x4, fixed_abs, tag = 'smem constant byte address 0x4 - core index']
  #allocation1 [shape = 'u32[144,128]{1,0:T(1,128)}', space=vmem, size = 0x12000, scoped, tag = 'internal scratch']
  #allocation2 [shape = 's32[1]{0}', space=sflag, size = 0x4, scoped, tag = 'scoped memory for tpu_custom_call.1']
  #allocation3 [shape = 'u8[1024]{0}', space=smem, size = 0x400, scoped, tag = 'prefetched SMEM operand 0']
  #allocation4 [shape = 'u8[1024]{0}', space=smem, size = 0x400, scoped, tag = 'prefetched SMEM operand 1']
  %s0 = inlined_call_operand.hbm [shape: s32[2,3], index: 0, kind: input, shape index: {}]
  %s1 = inlined_call_operand.hbm [shape: s32[2,3], index: 1, kind: input, shape index: {}]
  %s2 = inlined_call_operand.hbm [shape: f32[2,16,768], index: 2, kind: input, shape index: {}]
  %s3 = inlined_call_operand.hbm [shape: bf16[2304,512], index: 3, kind: input, shape index: {}]
  %s4 = inlined_call_operand.vmem [shape: bf16[512,5], index: 4, kind: input, shape index: {}]
  %s5 = inlined_call_operand.hbm [shape: f32[8,768], index: 5, kind: input, shape index: {}]
  %s6 = inlined_call_operand.hbm [shape: f32[2,128], index: 6, kind: output, shape index: {}]
  %s7 = sld [smem:[#allocation0]]
  $region38: #{tpu_custom_call.1} parent=0
    _
  %s9 = ssub.s32 1, %s7
  %s10 = scalar_select 0, %s9, %s7
  %12 = dma.hbm_to_smem %s0, 32, [#allocation3], [#allocation2]
  %14 = dma.hbm_to_smem %s1, 32, [#allocation4], [#allocation2]
  %15 = dma.done [#allocation2], 64
  %16 = sfence
  $region1: #{tpu_custom_call.1} parent=0
    #allocation5 [shape = 'u8[98304]{0}', space=vmem, size = 0x18000, scoped, tag = 'input window, operand 2, single buffered']
    #allocation6 [shape = 's32[1]{0}', space=sflag, size = 0x4, scoped, tag = 'scoped memory for tpu_custom_call.1']
    #allocation7 [shape = 's32[1]{0}', space=sflag, size = 0x4, scoped, tag = 'scoped memory for tpu_custom_call.1']
    #allocation8 [shape = 'u8[2359296]{0}', space=vmem, size = 0x240000, scoped, tag = 'input window, operand 3, single buffered']
    #allocation9 [shape = 's32[1]{0}', space=sflag, size = 0x4, scoped, tag = 'scoped memory for tpu_custom_call.1']
    #allocation10 [shape = 'u8[24576]{0}', space=vmem, size = 0x6000, scoped, tag = 'input window, operand 5, single buffered']
    #allocation11 [shape = 'u8[1024]{0}', space=vmem, size = 0x400, scoped, tag = 'output window, operand 0, single buffered']
    %17 = vsyncpa [#allocation6], 0
    %18 = vsyncpa [#allocation9], 0
    %19 = vsyncpa [#allocation7], 0
    // Predicated region
    $region2: #{tpu_custom_call.1} parent=1 // pred_check
      _
    $region3: #{tpu_custom_call.1} parent=1 // pred_check_branch
      %21 = sbr.rel (0) target = $region5
    $region4: #{tpu_custom_call.1} parent=1 // pred_region
      %s23 = ssub.s32 3072, 3072
      %24 = vsyncadd [#allocation6], %s23
      %s25 = sshll.u32 [#allocation5], 4
      %s26 = int_to_ptr.vmem [resolvable:$true] %s25
      %31 = dma.hbm_to_vmem [thread:$0]  %s2, 3072, %s26, [#allocation6], 768, 768, 48
    $region5: #{tpu_custom_call.1} parent=1 // pred_fallthru
      _
    // Predicated region
    $region6: #{tpu_custom_call.1} parent=1 // pred_check
      _
    $region7: #{tpu_custom_call.1} parent=1 // pred_check_branch
      %33 = sbr.rel (0) target = $region9
    $region8: #{tpu_custom_call.1} parent=1 // pred_region
      %s35 = ssub.s32 73728, 73728
      %36 = vsyncadd [#allocation9], %s35
      %s37 = sshll.u32 [#allocation8], 4
      %s38 = int_to_ptr.vmem [resolvable:$true] %s37
      %43 = dma.hbm_to_vmem [thread:$0]  %s3, 73728, %s38, [#allocation9], 256, 256, 16
    $region9: #{tpu_custom_call.1} parent=1 // pred_fallthru
      _
    // Predicated region
    $region10: #{tpu_custom_call.1} parent=1 // pred_check
      _
    $region11: #{tpu_custom_call.1} parent=1 // pred_check_branch
      %45 = sbr.rel (0) target = $region13
    $region12: #{tpu_custom_call.1} parent=1 // pred_region
      _
    $region13: #{tpu_custom_call.1} parent=1 // pred_fallthru
      _
    // Predicated region
    $region14: #{tpu_custom_call.1} parent=1 // pred_check
      _
    $region15: #{tpu_custom_call.1} parent=1 // pred_check_branch
      %47 = sbr.rel (0) target = $region17
    $region16: #{tpu_custom_call.1} parent=1 // pred_region
      %s49 = ssub.s32 768, 768
      %50 = vsyncadd [#allocation9], %s49
      %s52 = sshll.u32 [#allocation10], 4
      %s53 = int_to_ptr.vmem [resolvable:$true] %s52
      %55 = dma.hbm_to_vmem [thread:$0]  %s5, 768, %s53, [#allocation9]
    $region17: #{tpu_custom_call.1} parent=1 // pred_fallthru
      _
    // Predicated region
    $region18: #{tpu_custom_call.1} parent=1 // pred_check
      _
    $region19: #{tpu_custom_call.1} parent=1 // pred_check_branch
      %57 = sbr.rel (0) target = $region21
    $region20: #{tpu_custom_call.1} parent=1 // pred_region
      %58 = dma.done [#allocation6], 3072
    $region21: #{tpu_custom_call.1} parent=1 // pred_fallthru
      _
    // Predicated region
    $region22: #{tpu_custom_call.1} parent=1 // pred_check
      _
    $region23: #{tpu_custom_call.1} parent=1 // pred_check_branch
      %60 = sbr.rel (0) target = $region25
    $region24: #{tpu_custom_call.1} parent=1 // pred_region
      %61 = dma.done [#allocation9], 73728
    $region25: #{tpu_custom_call.1} parent=1 // pred_fallthru
      _
    // Predicated region
    $region26: #{tpu_custom_call.1} parent=1 // pred_check
      _
    $region27: #{tpu_custom_call.1} parent=1 // pred_check_branch
      %63 = sbr.rel (0) target = $region29
    $region28: #{tpu_custom_call.1} parent=1 // pred_region
      %64 = dma.done [#allocation9], 768
    $region29: #{tpu_custom_call.1} parent=1 // pred_fallthru
      _
    %v66 = vlaneseq
    %v67 = vshrl.u32 %v66, 7
    %v68 = vadd.s32 %v67, 8
    %s69 = sld [smem:[#allocation3]]
    %s70 = sld [smem:[#allocation4]]
    %v71 = vstv %s69
    %vm72 = vcmp.ge.s32.totalorder %v67, %v71
    %vm73 = vcmp.ge.s32.totalorder %v68, %v71
    %v74 = vstv %s70
    %vm75 = vcmp.le.s32.totalorder %v67, %v74
    %vm76 = vcmp.le.s32.totalorder %v68, %v74
    %vm77 = vmand %vm72, %vm75
    %vm78 = vmand %vm73, %vm76
    %v79 = vld [vmem:[#allocation5] sm:$0xff]
    %v80 = vld [vmem:[#allocation5 + $0x8] sm:$0xff]
    %v81 = vld [vmem:[#allocation5 + $0x10] sm:$0xff]
    %v82 = vld [vmem:[#allocation5 + $0x18] sm:$0xff]
    %v83 = vld [vmem:[#allocation5 + $0x20] sm:$0xff]
    %v84 = vld [vmem:[#allocation5 + $0x28] sm:$0xff]
    %v85 = vld [vmem:[#allocation5 + $0x30] sm:$0xff]
    %v86 = vld [vmem:[#allocation5 + $0x38] sm:$0xff]
    %v87 = vld [vmem:[#allocation5 + $0x40] sm:$0xff]
    %v88 = vld [vmem:[#allocation5 + $0x48] sm:$0xff]
    %v89 = vld [vmem:[#allocation5 + $0x50] sm:$0xff]
    %v90 = vld [vmem:[#allocation5 + $0x58] sm:$0xff]
    %v91 = vsel %vm77, 1, 0
    %v92 = vsel %vm78, 1, 0
    %vm93 = vcmp.eq.s32.totalorder %v91, 1
    %vm94 = vcmp.eq.s32.totalorder %v92, 1
    %v95 = vsel %vm93, %v79, -3.4028235e+38
    %v96 = vsel %vm93, %v80, -3.4028235e+38
    %v97 = vsel %vm93, %v81, -3.4028235e+38
    %v98 = vsel %vm93, %v82, -3.4028235e+38
    %v99 = vsel %vm93, %v83, -3.4028235e+38
    %v100 = vsel %vm93, %v84, -3.4028235e+38
    %v101 = vsel %vm94, %v85, -3.4028235e+38
    %v102 = vsel %vm94, %v86, -3.4028235e+38
    %v103 = vsel %vm94, %v87, -3.4028235e+38
    %v104 = vsel %vm94, %v88, -3.4028235e+38
    %v105 = vsel %vm94, %v89, -3.4028235e+38
    %v106 = vsel %vm94, %v90, -3.4028235e+38
    %v107 = vmax.f32 %v95, %v101
    %v108 = vrot.slane %v107, 4
    %v109 = vmax.f32 %v107, %v108
    %v110 = vrot.slane %v109, 2
    %v111 = vmax.f32 %v109, %v110
    %v112 = vrot.slane %v111, 1
    %v113 = vmax.f32 %v111, %v112
    %v114 = vmax.f32 %v96, %v102
    %v115 = vrot.slane %v114, 4
    %v116 = vmax.f32 %v114, %v115
    %v117 = vrot.slane %v116, 2
    %v118 = vmax.f32 %v116, %v117
    %v119 = vrot.slane %v118, 1
    %v120 = vmax.f32 %v118, %v119
    %v121 = vmax.f32 %v97, %v103
    %v122 = vrot.slane %v121, 4
    %v123 = vmax.f32 %v121, %v122
    %v124 = vrot.slane %v123, 2
    %v125 = vmax.f32 %v123, %v124
    %v126 = vrot.slane %v125, 1
    %v127 = vmax.f32 %v125, %v126
    %v128 = vmax.f32 %v98, %v104
    %v129 = vrot.slane %v128, 4
    %v130 = vmax.f32 %v128, %v129
    %v131 = vrot.slane %v130, 2
    %v132 = vmax.f32 %v130, %v131
    %v133 = vrot.slane %v132, 1
    %v134 = vmax.f32 %v132, %v133
    %v135 = vmax.f32 %v99, %v105
    %v136 = vrot.slane %v135, 4
    %v137 = vmax.f32 %v135, %v136
    %v138 = vrot.slane %v137, 2
    %v139 = vmax.f32 %v137, %v138
    %v140 = vrot.slane %v139, 1
    %v141 = vmax.f32 %v139, %v140
    %v142 = vmax.f32 %v100, %v106
    %v143 = vrot.slane %v142, 4
    %v144 = vmax.f32 %v142, %v143
    %v145 = vrot.slane %v144, 2
    %v146 = vmax.f32 %v144, %v145
    %v147 = vrot.slane %v146, 1
    %v148 = vmax.f32 %v146, %v147
    %s149 = sld [smem:[#allocation3 + $0x80]]
    %s150 = sld [smem:[#allocation4 + $0x80]]
    %v151 = vstv %s149
    %vm152 = vcmp.ge.s32.totalorder %v67, %v151
    %vm153 = vcmp.ge.s32.totalorder %v68, %v151
    %v154 = vstv %s150
    %vm155 = vcmp.le.s32.totalorder %v67, %v154
    %vm156 = vcmp.le.s32.totalorder %v68, %v154
    %vm157 = vmand %vm152, %vm155
    %vm158 = vmand %vm153, %vm156
    %s159 = scalar_lea.vmem [#allocation5], 96
    %v160 = vld [vmem:[%s159] sm:$0xff]
    %v161 = vld [vmem:[%s159 + $0x8] sm:$0xff]
    %v162 = vld [vmem:[%s159 + $0x10] sm:$0xff]
    %v163 = vld [vmem:[%s159 + $0x18] sm:$0xff]
    %v164 = vld [vmem:[%s159 + $0x20] sm:$0xff]
    %v165 = vld [vmem:[%s159 + $0x28] sm:$0xff]
    %v166 = vld [vmem:[%s159 + $0x30] sm:$0xff]
    %v167 = vld [vmem:[%s159 + $0x38] sm:$0xff]
    %v168 = vld [vmem:[%s159 + $0x40] sm:$0xff]
    %v169 = vld [vmem:[%s159 + $0x48] sm:$0xff]
    %v170 = vld [vmem:[%s159 + $0x50] sm:$0xff]
    %v171 = vld [vmem:[%s159 + $0x58] sm:$0xff]
    %v172 = vsel %vm157, 1, 0
    %v173 = vsel %vm158, 1, 0
    %vm174 = vcmp.eq.s32.totalorder %v172, 1
    %vm175 = vcmp.eq.s32.totalorder %v173, 1
    %v176 = vsel %vm174, %v160, -3.4028235e+38
    %v177 = vsel %vm174, %v161, -3.4028235e+38
    %v178 = vsel %vm174, %v162, -3.4028235e+38
    %v179 = vsel %vm174, %v163, -3.4028235e+38
    %v180 = vsel %vm174, %v164, -3.4028235e+38
    %v181 = vsel %vm174, %v165, -3.4028235e+38
    %v182 = vsel %vm175, %v166, -3.4028235e+38
    %v183 = vsel %vm175, %v167, -3.4028235e+38
    %v184 = vsel %vm175, %v168, -3.4028235e+38
    %v185 = vsel %vm175, %v169, -3.4028235e+38
    %v186 = vsel %vm175, %v170, -3.4028235e+38
    %v187 = vsel %vm175, %v171, -3.4028235e+38
    %v188 = vmax.f32 %v176, %v182
    %v189 = vrot.slane %v188, 4
    %v190 = vmax.f32 %v188, %v189
    %v191 = vrot.slane %v190, 2
    %v192 = vmax.f32 %v190, %v191
    %v193 = vrot.slane %v192, 1
    %v194 = vmax.f32 %v192, %v193
    %v195 = vmax.f32 %v177, %v183
    %v196 = vrot.slane %v195, 4
    %v197 = vmax.f32 %v195, %v196
    %v198 = vrot.slane %v197, 2
    %v199 = vmax.f32 %v197, %v198
    %v200 = vrot.slane %v199, 1
    %v201 = vmax.f32 %v199, %v200
    %v202 = vmax.f32 %v178, %v184
    %v203 = vrot.slane %v202, 4
    %v204 = vmax.f32 %v202, %v203
    %v205 = vrot.slane %v204, 2
    %v206 = vmax.f32 %v204, %v205
    %v207 = vrot.slane %v206, 1
    %v208 = vmax.f32 %v206, %v207
    %v209 = vmax.f32 %v179, %v185
    %v210 = vrot.slane %v209, 4
    %v211 = vmax.f32 %v209, %v210
    %v212 = vrot.slane %v211, 2
    %v213 = vmax.f32 %v211, %v212
    %v214 = vrot.slane %v213, 1
    %v215 = vmax.f32 %v213, %v214
    %v216 = vmax.f32 %v180, %v186
    %v217 = vrot.slane %v216, 4
    %v218 = vmax.f32 %v216, %v217
    %v219 = vrot.slane %v218, 2
    %v220 = vmax.f32 %v218, %v219
    %v221 = vrot.slane %v220, 1
    %v222 = vmax.f32 %v220, %v221
    %v223 = vmax.f32 %v181, %v187
    %v224 = vrot.slane %v223, 4
    %v225 = vmax.f32 %v223, %v224
    %v226 = vrot.slane %v225, 2
    %v227 = vmax.f32 %v225, %v226
    %v228 = vrot.slane %v227, 1
    %v229 = vmax.f32 %v227, %v228
    %vm230 = vcmask 1040384
    %v231 = vsel %vm230, %v113, %v194
    %v232 = vsel %vm230, %v120, %v201
    %v233 = vsel %vm230, %v127, %v208
    %v234 = vsel %vm230, %v134, %v215
    %v235 = vsel %vm230, %v141, %v222
    %v236 = vsel %vm230, %v148, %v229
    %s237 = sld [smem:[#allocation3 + $0x1]]
    %s238 = sld [smem:[#allocation4 + $0x1]]
    %v239 = vstv %s237
    %vm240 = vcmp.ge.s32.totalorder %v67, %v239
    %vm241 = vcmp.ge.s32.totalorder %v68, %v239
    %v242 = vstv %s238
    %vm243 = vcmp.le.s32.totalorder %v67, %v242
    %vm244 = vcmp.le.s32.totalorder %v68, %v242
    %vm245 = vmand %vm240, %vm243
    %vm246 = vmand %vm241, %vm244
    %v247 = vsel %vm245, 1, 0
    %v248 = vsel %vm246, 1, 0
    %vm249 = vcmp.eq.s32.totalorder %v247, 1
    %vm250 = vcmp.eq.s32.totalorder %v248, 1
    %v251 = vsel %vm249, %v79, -3.4028235e+38
    %v252 = vsel %vm249, %v80, -3.4028235e+38
    %v253 = vsel %vm249, %v81, -3.4028235e+38
    %v254 = vsel %vm249, %v82, -3.4028235e+38
    %v255 = vsel %vm249, %v83, -3.4028235e+38
    %v256 = vsel %vm249, %v84, -3.4028235e+38
    %v257 = vsel %vm250, %v85, -3.4028235e+38
    %v258 = vsel %vm250, %v86, -3.4028235e+38
    %v259 = vsel %vm250, %v87, -3.4028235e+38
    %v260 = vsel %vm250, %v88, -3.4028235e+38
    %v261 = vsel %vm250, %v89, -3.4028235e+38
    %v262 = vsel %vm250, %v90, -3.4028235e+38
    %v263 = vmax.f32 %v251, %v257
    %v264 = vrot.slane %v263, 4
    %v265 = vmax.f32 %v263, %v264
    %v266 = vrot.slane %v265, 2
    %v267 = vmax.f32 %v265, %v266
    %v268 = vrot.slane %v267, 1
    %v269 = vmax.f32 %v267, %v268
    %v270 = vmax.f32 %v252, %v258
    %v271 = vrot.slane %v270, 4
    %v272 = vmax.f32 %v270, %v271
    %v273 = vrot.slane %v272, 2
    %v274 = vmax.f32 %v272, %v273
    %v275 = vrot.slane %v274, 1
    %v276 = vmax.f32 %v274, %v275
    %v277 = vmax.f32 %v253, %v259
    %v278 = vrot.slane %v277, 4
    %v279 = vmax.f32 %v277, %v278
    %v280 = vrot.slane %v279, 2
    %v281 = vmax.f32 %v279, %v280
    %v282 = vrot.slane %v281, 1
    %v283 = vmax.f32 %v281, %v282
    %v284 = vmax.f32 %v254, %v260
    %v285 = vrot.slane %v284, 4
    %v286 = vmax.f32 %v284, %v285
    %v287 = vrot.slane %v286, 2
    %v288 = vmax.f32 %v286, %v287
    %v289 = vrot.slane %v288, 1
    %v290 = vmax.f32 %v288, %v289
    %v291 = vmax.f32 %v255, %v261
    %v292 = vrot.slane %v291, 4
    %v293 = vmax.f32 %v291, %v292
    %v294 = vrot.slane %v293, 2
    %v295 = vmax.f32 %v293, %v294
    %v296 = vrot.slane %v295, 1
    %v297 = vmax.f32 %v295, %v296
    %v298 = vmax.f32 %v256, %v262
    %v299 = vrot.slane %v298, 4
    %v300 = vmax.f32 %v298, %v299
    %v301 = vrot.slane %v300, 2
    %v302 = vmax.f32 %v300, %v301
    %v303 = vrot.slane %v302, 1
    %v304 = vmax.f32 %v302, %v303
    %s305 = sld [smem:[#allocation3 + $0x81]]
    %s306 = sld [smem:[#allocation4 + $0x81]]
    %v307 = vstv %s305
    %vm308 = vcmp.ge.s32.totalorder %v67, %v307
    %vm309 = vcmp.ge.s32.totalorder %v68, %v307
    %v310 = vstv %s306
    %vm311 = vcmp.le.s32.totalorder %v67, %v310
    %vm312 = vcmp.le.s32.totalorder %v68, %v310
    %vm313 = vmand %vm308, %vm311
    %vm314 = vmand %vm309, %vm312
    %v315 = vsel %vm313, 1, 0
    %v316 = vsel %vm314, 1, 0
    %vm317 = vcmp.eq.s32.totalorder %v315, 1
    %vm318 = vcmp.eq.s32.totalorder %v316, 1
    %v319 = vsel %vm317, %v160, -3.4028235e+38
    %v320 = vsel %vm317, %v161, -3.4028235e+38
    %v321 = vsel %vm317, %v162, -3.4028235e+38
    %v322 = vsel %vm317, %v163, -3.4028235e+38
    %v323 = vsel %vm317, %v164, -3.4028235e+38
    %v324 = vsel %vm317, %v165, -3.4028235e+38
    %v325 = vsel %vm318, %v166, -3.4028235e+38
    %v326 = vsel %vm318, %v167, -3.4028235e+38
    %v327 = vsel %vm318, %v168, -3.4028235e+38
    %v328 = vsel %vm318, %v169, -3.4028235e+38
    %v329 = vsel %vm318, %v170, -3.4028235e+38
    %v330 = vsel %vm318, %v171, -3.4028235e+38
    %v331 = vmax.f32 %v319, %v325
    %v332 = vrot.slane %v331, 4
    %v333 = vmax.f32 %v331, %v332
    %v334 = vrot.slane %v333, 2
    %v335 = vmax.f32 %v333, %v334
    %v336 = vrot.slane %v335, 1
    %v337 = vmax.f32 %v335, %v336
    %v338 = vmax.f32 %v320, %v326
    %v339 = vrot.slane %v338, 4
    %v340 = vmax.f32 %v338, %v339
    %v341 = vrot.slane %v340, 2
    %v342 = vmax.f32 %v340, %v341
    %v343 = vrot.slane %v342, 1
    %v344 = vmax.f32 %v342, %v343
    %v345 = vmax.f32 %v321, %v327
    %v346 = vrot.slane %v345, 4
    %v347 = vmax.f32 %v345, %v346
    %v348 = vrot.slane %v347, 2
    %v349 = vmax.f32 %v347, %v348
    %v350 = vrot.slane %v349, 1
    %v351 = vmax.f32 %v349, %v350
    %v352 = vmax.f32 %v322, %v328
    %v353 = vrot.slane %v352, 4
    %v354 = vmax.f32 %v352, %v353
    %v355 = vrot.slane %v354, 2
    %v356 = vmax.f32 %v354, %v355
    %v357 = vrot.slane %v356, 1
    %v358 = vmax.f32 %v356, %v357
    %v359 = vmax.f32 %v323, %v329
    %v360 = vrot.slane %v359, 4
    %v361 = vmax.f32 %v359, %v360
    %v362 = vrot.slane %v361, 2
    %v363 = vmax.f32 %v361, %v362
    %v364 = vrot.slane %v363, 1
    %v365 = vmax.f32 %v363, %v364
    %v366 = vmax.f32 %v324, %v330
    %v367 = vrot.slane %v366, 4
    %v368 = vmax.f32 %v366, %v367
    %v369 = vrot.slane %v368, 2
    %v370 = vmax.f32 %v368, %v369
    %v371 = vrot.slane %v370, 1
    %v372 = vmax.f32 %v370, %v371
    %v373 = vsel %vm230, %v269, %v337
    %v374 = vsel %vm230, %v276, %v344
    %v375 = vsel %vm230, %v283, %v351
    %v376 = vsel %vm230, %v290, %v358
    %v377 = vsel %vm230, %v297, %v365
    %v378 = vsel %vm230, %v304, %v372
    %s379 = sld [smem:[#allocation3 + $0x2]]
    %s380 = sld [smem:[#allocation4 + $0x2]]
    %v381 = vstv %s379
    %vm382 = vcmp.ge.s32.totalorder %v67, %v381
    %vm383 = vcmp.ge.s32.totalorder %v68, %v381
    %v384 = vstv %s380
    %vm385 = vcmp.le.s32.totalorder %v67, %v384
    %vm386 = vcmp.le.s32.totalorder %v68, %v384
    %vm387 = vmand %vm382, %vm385
    %vm388 = vmand %vm383, %vm386
    %v389 = vsel %vm387, 1, 0
    %v390 = vsel %vm388, 1, 0
    %vm391 = vcmp.eq.s32.totalorder %v389, 1
    %vm392 = vcmp.eq.s32.totalorder %v390, 1
    %v393 = vsel %vm391, %v79, -3.4028235e+38
    %v394 = vsel %vm391, %v80, -3.4028235e+38
    %v395 = vsel %vm391, %v81, -3.4028235e+38
    %v396 = vsel %vm391, %v82, -3.4028235e+38
    %v397 = vsel %vm391, %v83, -3.4028235e+38
    %v398 = vsel %vm391, %v84, -3.4028235e+38
    %v399 = vsel %vm392, %v85, -3.4028235e+38
    %v400 = vsel %vm392, %v86, -3.4028235e+38
    %v401 = vsel %vm392, %v87, -3.4028235e+38
    %v402 = vsel %vm392, %v88, -3.4028235e+38
    %v403 = vsel %vm392, %v89, -3.4028235e+38
    %v404 = vsel %vm392, %v90, -3.4028235e+38
    %v405 = vmax.f32 %v393, %v399
    %v406 = vrot.slane %v405, 4
    %v407 = vmax.f32 %v405, %v406
    %v408 = vrot.slane %v407, 2
    %v409 = vmax.f32 %v407, %v408
    %v410 = vrot.slane %v409, 1
    %v411 = vmax.f32 %v409, %v410
    %v412 = vmax.f32 %v394, %v400
    %v413 = vrot.slane %v412, 4
    %v414 = vmax.f32 %v412, %v413
    %v415 = vrot.slane %v414, 2
    %v416 = vmax.f32 %v414, %v415
    %v417 = vrot.slane %v416, 1
    %v418 = vmax.f32 %v416, %v417
    %v419 = vmax.f32 %v395, %v401
    %v420 = vrot.slane %v419, 4
    %v421 = vmax.f32 %v419, %v420
    %v422 = vrot.slane %v421, 2
    %v423 = vmax.f32 %v421, %v422
    %v424 = vrot.slane %v423, 1
    %v425 = vmax.f32 %v423, %v424
    %v426 = vmax.f32 %v396, %v402
    %v427 = vrot.slane %v426, 4
    %v428 = vmax.f32 %v426, %v427
    %v429 = vrot.slane %v428, 2
    %v430 = vmax.f32 %v428, %v429
    %v431 = vrot.slane %v430, 1
    %v432 = vmax.f32 %v430, %v431
    %v433 = vmax.f32 %v397, %v403
    %v434 = vrot.slane %v433, 4
    %v435 = vmax.f32 %v433, %v434
    %v436 = vrot.slane %v435, 2
    %v437 = vmax.f32 %v435, %v436
    %v438 = vrot.slane %v437, 1
    %v439 = vmax.f32 %v437, %v438
    %v440 = vmax.f32 %v398, %v404
    %v441 = vrot.slane %v440, 4
    %v442 = vmax.f32 %v440, %v441
    %v443 = vrot.slane %v442, 2
    %v444 = vmax.f32 %v442, %v443
    %v445 = vrot.slane %v444, 1
    %v446 = vmax.f32 %v444, %v445
    %s447 = sld [smem:[#allocation3 + $0x82]]
    %s448 = sld [smem:[#allocation4 + $0x82]]
    %v449 = vstv %s447
    %vm450 = vcmp.ge.s32.totalorder %v67, %v449
    %vm451 = vcmp.ge.s32.totalorder %v68, %v449
    %v452 = vstv %s448
    %vm453 = vcmp.le.s32.totalorder %v67, %v452
    %vm454 = vcmp.le.s32.totalorder %v68, %v452
    %vm455 = vmand %vm450, %vm453
    %vm456 = vmand %vm451, %vm454
    %v457 = vsel %vm455, 1, 0
    %v458 = vsel %vm456, 1, 0
    %vm459 = vcmp.eq.s32.totalorder %v457, 1
    %vm460 = vcmp.eq.s32.totalorder %v458, 1
    %v461 = vsel %vm459, %v160, -3.4028235e+38
    %v462 = vsel %vm459, %v161, -3.4028235e+38
    %v463 = vsel %vm459, %v162, -3.4028235e+38
    %v464 = vsel %vm459, %v163, -3.4028235e+38
    %v465 = vsel %vm459, %v164, -3.4028235e+38
    %v466 = vsel %vm459, %v165, -3.4028235e+38
    %v467 = vsel %vm460, %v166, -3.4028235e+38
    %v468 = vsel %vm460, %v167, -3.4028235e+38
    %v469 = vsel %vm460, %v168, -3.4028235e+38
    %v470 = vsel %vm460, %v169, -3.4028235e+38
    %v471 = vsel %vm460, %v170, -3.4028235e+38
    %v472 = vsel %vm460, %v171, -3.4028235e+38
    %v473 = vmax.f32 %v461, %v467
    %v474 = vrot.slane %v473, 4
    %v475 = vmax.f32 %v473, %v474
    %v476 = vrot.slane %v475, 2
    %v477 = vmax.f32 %v475, %v476
    %v478 = vrot.slane %v477, 1
    %v479 = vmax.f32 %v477, %v478
    %v480 = vmax.f32 %v462, %v468
    %v481 = vrot.slane %v480, 4
    %v482 = vmax.f32 %v480, %v481
    %v483 = vrot.slane %v482, 2
    %v484 = vmax.f32 %v482, %v483
    %v485 = vrot.slane %v484, 1
    %v486 = vmax.f32 %v484, %v485
    %v487 = vmax.f32 %v463, %v469
    %v488 = vrot.slane %v487, 4
    %v489 = vmax.f32 %v487, %v488
    %v490 = vrot.slane %v489, 2
    %v491 = vmax.f32 %v489, %v490
    %v492 = vrot.slane %v491, 1
    %v493 = vmax.f32 %v491, %v492
    %v494 = vmax.f32 %v464, %v470
    %v495 = vrot.slane %v494, 4
    %v496 = vmax.f32 %v494, %v495
    %v497 = vrot.slane %v496, 2
    %v498 = vmax.f32 %v496, %v497
    %v499 = vrot.slane %v498, 1
    %v500 = vmax.f32 %v498, %v499
    %v501 = vmax.f32 %v465, %v471
    %v502 = vrot.slane %v501, 4
    %v503 = vmax.f32 %v501, %v502
    %v504 = vrot.slane %v503, 2
    %v505 = vmax.f32 %v503, %v504
    %v506 = vrot.slane %v505, 1
    %v507 = vmax.f32 %v505, %v506
    %v508 = vmax.f32 %v466, %v472
    %v509 = vrot.slane %v508, 4
    %v510 = vmax.f32 %v508, %v509
    %v511 = vrot.slane %v510, 2
    %v512 = vmax.f32 %v510, %v511
    %v513 = vrot.slane %v512, 1
    %v514 = vmax.f32 %v512, %v513
    %v515 = vsel %vm230, %v411, %v479
    %v516 = vsel %vm230, %v418, %v486
    %v517 = vsel %vm230, %v425, %v493
    %v518 = vsel %vm230, %v432, %v500
    %v519 = vsel %vm230, %v439, %v507
    %v520 = vsel %vm230, %v446, %v514
    %s521 = scalar_lea.vmem [#allocation10], 1
    %v522 = vld [vmem:[%s521] ss:$8 sm:$0xf]
    %v523 = vpack.c.bf16 %v231, %v231
    %v524 = vpack.c.bf16 %v232, %v232
    %v525 = vpack.c.bf16 %v233, %v233
    %v526 = vpack.c.bf16 %v234, %v234
    %v527 = vpack.c.bf16 %v235, %v235
    %v528 = vpack.c.bf16 %v236, %v236
    %v529 = vld [vmem:[#allocation8] sm:$0xff]
    %v530 = vld [vmem:[#allocation8 + $0x8] sm:$0xff]
    %v531 = vld [vmem:[#allocation8 + $0x10] sm:$0xff]
    %v532 = vld [vmem:[#allocation8 + $0x18] sm:$0xff]
    %v533 = vld [vmem:[#allocation8 + $0x20] sm:$0xff]
    %v534 = vld [vmem:[#allocation8 + $0x28] sm:$0xff]
    %v535 = vld [vmem:[#allocation8 + $0x30] sm:$0xff]
    %v536 = vld [vmem:[#allocation8 + $0x38] sm:$0xff]
    %v537 = vld [vmem:[#allocation8 + $0x40] sm:$0xff]
    %v538 = vld [vmem:[#allocation8 + $0x48] sm:$0xff]
    %v539 = vld [vmem:[#allocation8 + $0x50] sm:$0xff]
    %v540 = vld [vmem:[#allocation8 + $0x58] sm:$0xff]
    %v541 = vld [vmem:[#allocation8 + $0x60] sm:$0xff]
    %v542 = vld [vmem:[#allocation8 + $0x68] sm:$0xff]
    %v543 = vld [vmem:[#allocation8 + $0x70] sm:$0xff]
    %v544 = vld [vmem:[#allocation8 + $0x78] sm:$0xff]
    %v545 = vld [vmem:[#allocation8 + $0x80] sm:$0xff]
    %v546 = vld [vmem:[#allocation8 + $0x88] sm:$0xff]
    %v547 = vld [vmem:[#allocation8 + $0x90] sm:$0xff]
    %v548 = vld [vmem:[#allocation8 + $0x98] sm:$0xff]
    %v549 = vld [vmem:[#allocation8 + $0xa0] sm:$0xff]
    %v550 = vld [vmem:[#allocation8 + $0xa8] sm:$0xff]
    %v551 = vld [vmem:[#allocation8 + $0xb0] sm:$0xff]
    %v552 = vld [vmem:[#allocation8 + $0xb8] sm:$0xff]
    %v553 = vld [vmem:[#allocation8 + $0xc0] sm:$0xff]
    %v554 = vld [vmem:[#allocation8 + $0xc8] sm:$0xff]
    %v555 = vld [vmem:[#allocation8 + $0xd0] sm:$0xff]
    %v556 = vld [vmem:[#allocation8 + $0xd8] sm:$0xff]
    %v557 = vld [vmem:[#allocation8 + $0xe0] sm:$0xff]
    %v558 = vld [vmem:[#allocation8 + $0xe8] sm:$0xff]
    %v559 = vld [vmem:[#allocation8 + $0xf0] sm:$0xff]
    %v560 = vld [vmem:[#allocation8 + $0xf8] sm:$0xff]
    %v561 = vld [vmem:[#allocation8 + $0x100] sm:$0xff]
    %v562 = vld [vmem:[#allocation8 + $0x108] sm:$0xff]
    %v563 = vld [vmem:[#allocation8 + $0x110] sm:$0xff]
    %v564 = vld [vmem:[#allocation8 + $0x118] sm:$0xff]
    %v565 = vld [vmem:[#allocation8 + $0x120] sm:$0xff]
    %v566 = vld [vmem:[#allocation8 + $0x128] sm:$0xff]
    %v567 = vld [vmem:[#allocation8 + $0x130] sm:$0xff]
    %v568 = vld [vmem:[#allocation8 + $0x138] sm:$0xff]
    %v569 = vld [vmem:[#allocation8 + $0x140] sm:$0xff]
    %v570 = vld [vmem:[#allocation8 + $0x148] sm:$0xff]
    %v571 = vld [vmem:[#allocation8 + $0x150] sm:$0xff]
    %v572 = vld [vmem:[#allocation8 + $0x158] sm:$0xff]
    %v573 = vld [vmem:[#allocation8 + $0x160] sm:$0xff]
    %v574 = vld [vmem:[#allocation8 + $0x168] sm:$0xff]
    %v575 = vld [vmem:[#allocation8 + $0x170] sm:$0xff]
    %v576 = vld [vmem:[#allocation8 + $0x178] sm:$0xff]
    %v577 = vld [vmem:[#allocation8 + $0x180] sm:$0xff]
    %v578 = vld [vmem:[#allocation8 + $0x188] sm:$0xff]
    %v579 = vld [vmem:[#allocation8 + $0x190] sm:$0xff]
    %v580 = vld [vmem:[#allocation8 + $0x198] sm:$0xff]
    %v581 = vld [vmem:[#allocation8 + $0x1a0] sm:$0xff]
    %v582 = vld [vmem:[#allocation8 + $0x1a8] sm:$0xff]
    %v583 = vld [vmem:[#allocation8 + $0x1b0] sm:$0xff]
    %v584 = vld [vmem:[#allocation8 + $0x1b8] sm:$0xff]
    %v585 = vld [vmem:[#allocation8 + $0x1c0] sm:$0xff]
    %v586 = vld [vmem:[#allocation8 + $0x1c8] sm:$0xff]
    %v587 = vld [vmem:[#allocation8 + $0x1d0] sm:$0xff]
    %v588 = vld [vmem:[#allocation8 + $0x1d8] sm:$0xff]
    %v589 = vld [vmem:[#allocation8 + $0x1e0] sm:$0xff]
    %v590 = vld [vmem:[#allocation8 + $0x1e8] sm:$0xff]
    %v591 = vld [vmem:[#allocation8 + $0x1f0] sm:$0xff]
    %v592 = vld [vmem:[#allocation8 + $0x1f8] sm:$0xff]
    %v593 = vld [vmem:[#allocation8 + $0x200] sm:$0xff]
    %v594 = vld [vmem:[#allocation8 + $0x208] sm:$0xff]
    %v595 = vld [vmem:[#allocation8 + $0x210] sm:$0xff]
    %v596 = vld [vmem:[#allocation8 + $0x218] sm:$0xff]
    %v597 = vld [vmem:[#allocation8 + $0x220] sm:$0xff]
    %v598 = vld [vmem:[#allocation8 + $0x228] sm:$0xff]
    %v599 = vld [vmem:[#allocation8 + $0x230] sm:$0xff]
    %v600 = vld [vmem:[#allocation8 + $0x238] sm:$0xff]
    %v601 = vld [vmem:[#allocation8 + $0x240] sm:$0xff]
    %v602 = vld [vmem:[#allocation8 + $0x248] sm:$0xff]
    %v603 = vld [vmem:[#allocation8 + $0x250] sm:$0xff]
    %v604 = vld [vmem:[#allocation8 + $0x258] sm:$0xff]
    %v605 = vld [vmem:[#allocation8 + $0x260] sm:$0xff]
    %v606 = vld [vmem:[#allocation8 + $0x268] sm:$0xff]
    %v607 = vld [vmem:[#allocation8 + $0x270] sm:$0xff]
    %v608 = vld [vmem:[#allocation8 + $0x278] sm:$0xff]
    %v609 = vld [vmem:[#allocation8 + $0x280] sm:$0xff]
    %v610 = vld [vmem:[#allocation8 + $0x288] sm:$0xff]
    %v611 = vld [vmem:[#allocation8 + $0x290] sm:$0xff]
    %v612 = vld [vmem:[#allocation8 + $0x298] sm:$0xff]
    %v613 = vld [vmem:[#allocation8 + $0x2a0] sm:$0xff]
    %v614 = vld [vmem:[#allocation8 + $0x2a8] sm:$0xff]
    %v615 = vld [vmem:[#allocation8 + $0x2b0] sm:$0xff]
    %v616 = vld [vmem:[#allocation8 + $0x2b8] sm:$0xff]
    %v617 = vld [vmem:[#allocation8 + $0x2c0] sm:$0xff]
    %v618 = vld [vmem:[#allocation8 + $0x2c8] sm:$0xff]
    %v619 = vld [vmem:[#allocation8 + $0x2d0] sm:$0xff]
    %v620 = vld [vmem:[#allocation8 + $0x2d8] sm:$0xff]
    %v621 = vld [vmem:[#allocation8 + $0x2e0] sm:$0xff]
    %v622 = vld [vmem:[#allocation8 + $0x2e8] sm:$0xff]
    %v623 = vld [vmem:[#allocation8 + $0x2f0] sm:$0xff]
    %v624 = vld [vmem:[#allocation8 + $0x2f8] sm:$0xff]
    %v625 = vld [vmem:[#allocation8 + $0x300] sm:$0xff]
    %v626 = vld [vmem:[#allocation8 + $0x308] sm:$0xff]
    %v627 = vld [vmem:[#allocation8 + $0x310] sm:$0xff]
    %v628 = vld [vmem:[#allocation8 + $0x318] sm:$0xff]
    %v629 = vld [vmem:[#allocation8 + $0x320] sm:$0xff]
    %v630 = vld [vmem:[#allocation8 + $0x328] sm:$0xff]
    %v631 = vld [vmem:[#allocation8 + $0x330] sm:$0xff]
    %v632 = vld [vmem:[#allocation8 + $0x338] sm:$0xff]
    %v633 = vld [vmem:[#allocation8 + $0x340] sm:$0xff]
    %v634 = vld [vmem:[#allocation8 + $0x348] sm:$0xff]
    %v635 = vld [vmem:[#allocation8 + $0x350] sm:$0xff]
    %v636 = vld [vmem:[#allocation8 + $0x358] sm:$0xff]
    %v637 = vld [vmem:[#allocation8 + $0x360] sm:$0xff]
    %v638 = vld [vmem:[#allocation8 + $0x368] sm:$0xff]
    %v639 = vld [vmem:[#allocation8 + $0x370] sm:$0xff]
    %v640 = vld [vmem:[#allocation8 + $0x378] sm:$0xff]
    %v641 = vld [vmem:[#allocation8 + $0x380] sm:$0xff]
    %v642 = vld [vmem:[#allocation8 + $0x388] sm:$0xff]
    %v643 = vld [vmem:[#allocation8 + $0x390] sm:$0xff]
    %v644 = vld [vmem:[#allocation8 + $0x398] sm:$0xff]
    %v645 = vld [vmem:[#allocation8 + $0x3a0] sm:$0xff]
    %v646 = vld [vmem:[#allocation8 + $0x3a8] sm:$0xff]
    %v647 = vld [vmem:[#allocation8 + $0x3b0] sm:$0xff]
    %v648 = vld [vmem:[#allocation8 + $0x3b8] sm:$0xff]
    %v649 = vld [vmem:[#allocation8 + $0x3c0] sm:$0xff]
    %v650 = vld [vmem:[#allocation8 + $0x3c8] sm:$0xff]
    %v651 = vld [vmem:[#allocation8 + $0x3d0] sm:$0xff]
    %v652 = vld [vmem:[#allocation8 + $0x3d8] sm:$0xff]
    %v653 = vld [vmem:[#allocation8 + $0x3e0] sm:$0xff]
    %v654 = vld [vmem:[#allocation8 + $0x3e8] sm:$0xff]
    %v655 = vld [vmem:[#allocation8 + $0x3f0] sm:$0xff]
    %v656 = vld [vmem:[#allocation8 + $0x3f8] sm:$0xff]
    %v657 = vld [vmem:[#allocation8 + $0x400] sm:$0xff]
    %v658 = vld [vmem:[#allocation8 + $0x408] sm:$0xff]
    %v659 = vld [vmem:[#allocation8 + $0x410] sm:$0xff]
    %v660 = vld [vmem:[#allocation8 + $0x418] sm:$0xff]
    %v661 = vld [vmem:[#allocation8 + $0x420] sm:$0xff]
    %v662 = vld [vmem:[#allocation8 + $0x428] sm:$0xff]
    %v663 = vld [vmem:[#allocation8 + $0x430] sm:$0xff]
    %v664 = vld [vmem:[#allocation8 + $0x438] sm:$0xff]
    %v665 = vld [vmem:[#allocation8 + $0x440] sm:$0xff]
    %v666 = vld [vmem:[#allocation8 + $0x448] sm:$0xff]
    %v667 = vld [vmem:[#allocation8 + $0x450] sm:$0xff]
    %v668 = vld [vmem:[#allocation8 + $0x458] sm:$0xff]
    %v669 = vld [vmem:[#allocation8 + $0x460] sm:$0xff]
    %v670 = vld [vmem:[#allocation8 + $0x468] sm:$0xff]
    %v671 = vld [vmem:[#allocation8 + $0x470] sm:$0xff]
    %v672 = vld [vmem:[#allocation8 + $0x478] sm:$0xff]
    %v673 = vld [vmem:[#allocation8 + $0x480] sm:$0xff]
    %v674 = vld [vmem:[#allocation8 + $0x488] sm:$0xff]
    %v675 = vld [vmem:[#allocation8 + $0x490] sm:$0xff]
    %v676 = vld [vmem:[#allocation8 + $0x498] sm:$0xff]
    %v677 = vld [vmem:[#allocation8 + $0x4a0] sm:$0xff]
    %v678 = vld [vmem:[#allocation8 + $0x4a8] sm:$0xff]
    %v679 = vld [vmem:[#allocation8 + $0x4b0] sm:$0xff]
    %v680 = vld [vmem:[#allocation8 + $0x4b8] sm:$0xff]
    %v681 = vld [vmem:[#allocation8 + $0x4c0] sm:$0xff]
    %v682 = vld [vmem:[#allocation8 + $0x4c8] sm:$0xff]
    %v683 = vld [vmem:[#allocation8 + $0x4d0] sm:$0xff]
    %v684 = vld [vmem:[#allocation8 + $0x4d8] sm:$0xff]
    %v685 = vld [vmem:[#allocation8 + $0x4e0] sm:$0xff]
    %v686 = vld [vmem:[#allocation8 + $0x4e8] sm:$0xff]
    %v687 = vld [vmem:[#allocation8 + $0x4f0] sm:$0xff]
    %v688 = vld [vmem:[#allocation8 + $0x4f8] sm:$0xff]
    %v689 = vld [vmem:[#allocation8 + $0x500] sm:$0xff]
    %v690 = vld [vmem:[#allocation8 + $0x508] sm:$0xff]
    %v691 = vld [vmem:[#allocation8 + $0x510] sm:$0xff]
    %v692 = vld [vmem:[#allocation8 + $0x518] sm:$0xff]
    %v693 = vld [vmem:[#allocation8 + $0x520] sm:$0xff]
    %v694 = vld [vmem:[#allocation8 + $0x528] sm:$0xff]
    %v695 = vld [vmem:[#allocation8 + $0x530] sm:$0xff]
    %v696 = vld [vmem:[#allocation8 + $0x538] sm:$0xff]
    %v697 = vld [vmem:[#allocation8 + $0x540] sm:$0xff]
    %v698 = vld [vmem:[#allocation8 + $0x548] sm:$0xff]
    %v699 = vld [vmem:[#allocation8 + $0x550] sm:$0xff]
    %v700 = vld [vmem:[#allocation8 + $0x558] sm:$0xff]
    %v701 = vld [vmem:[#allocation8 + $0x560] sm:$0xff]
    %v702 = vld [vmem:[#allocation8 + $0x568] sm:$0xff]
    %v703 = vld [vmem:[#allocation8 + $0x570] sm:$0xff]
    %v704 = vld [vmem:[#allocation8 + $0x578] sm:$0xff]
    %v705 = vld [vmem:[#allocation8 + $0x580] sm:$0xff]
    %v706 = vld [vmem:[#allocation8 + $0x588] sm:$0xff]
    %v707 = vld [vmem:[#allocation8 + $0x590] sm:$0xff]
    %v708 = vld [vmem:[#allocation8 + $0x598] sm:$0xff]
    %v709 = vld [vmem:[#allocation8 + $0x5a0] sm:$0xff]
    %v710 = vld [vmem:[#allocation8 + $0x5a8] sm:$0xff]
    %v711 = vld [vmem:[#allocation8 + $0x5b0] sm:$0xff]
    %v712 = vld [vmem:[#allocation8 + $0x5b8] sm:$0xff]
    %v713 = vld [vmem:[#allocation8 + $0x5c0] sm:$0xff]
    %v714 = vld [vmem:[#allocation8 + $0x5c8] sm:$0xff]
    %v715 = vld [vmem:[#allocation8 + $0x5d0] sm:$0xff]
    %v716 = vld [vmem:[#allocation8 + $0x5d8] sm:$0xff]
    %v717 = vld [vmem:[#allocation8 + $0x5e0] sm:$0xff]
    %v718 = vld [vmem:[#allocation8 + $0x5e8] sm:$0xff]
    %v719 = vld [vmem:[#allocation8 + $0x5f0] sm:$0xff]
    %v720 = vld [vmem:[#allocation8 + $0x5f8] sm:$0xff]
    %v913 = vunpack.c.l.b16 %v529
    %v914 = vunpack.c.h.b16 %v529
    %v915 = vunpack.c.l.b16 %v530
    %v916 = vunpack.c.h.b16 %v530
    %v917 = vunpack.c.l.b16 %v531
    %v918 = vunpack.c.h.b16 %v531
    %v919 = vunpack.c.l.b16 %v532
    %v920 = vunpack.c.h.b16 %v532
    %v921 = vunpack.c.l.b16 %v533
    %v922 = vunpack.c.h.b16 %v533
    %v923 = vunpack.c.l.b16 %v534
    %v924 = vunpack.c.h.b16 %v534
    %v925 = vunpack.c.l.b16 %v535
    %v926 = vunpack.c.h.b16 %v535
    %v927 = vunpack.c.l.b16 %v536
    %v928 = vunpack.c.h.b16 %v536
    %v929 = vunpack.c.l.b16 %v537
    %v930 = vunpack.c.h.b16 %v537
    %v931 = vunpack.c.l.b16 %v538
    %v932 = vunpack.c.h.b16 %v538
    %v933 = vunpack.c.l.b16 %v539
    %v934 = vunpack.c.h.b16 %v539
    %v935 = vunpack.c.l.b16 %v540
    %v936 = vunpack.c.h.b16 %v540
    %v937 = vunpack.c.l.b16 %v541
    %v938 = vunpack.c.h.b16 %v541
    %v939 = vunpack.c.l.b16 %v542
    %v940 = vunpack.c.h.b16 %v542
    %v941 = vunpack.c.l.b16 %v543
    %v942 = vunpack.c.h.b16 %v543
    %v943 = vunpack.c.l.b16 %v544
    %v944 = vunpack.c.h.b16 %v544
    %v945 = vunpack.c.l.b16 %v545
    %v946 = vunpack.c.h.b16 %v545
    %v947 = vunpack.c.l.b16 %v546
    %v948 = vunpack.c.h.b16 %v546
    %v949 = vunpack.c.l.b16 %v547
    %v950 = vunpack.c.h.b16 %v547
    %v951 = vunpack.c.l.b16 %v548
    %v952 = vunpack.c.h.b16 %v548
    %v953 = vunpack.c.l.b16 %v549
    %v954 = vunpack.c.h.b16 %v549
    %v955 = vunpack.c.l.b16 %v550
    %v956 = vunpack.c.h.b16 %v550
    %v957 = vunpack.c.l.b16 %v551
    %v958 = vunpack.c.h.b16 %v551
    %v959 = vunpack.c.l.b16 %v552
    %v960 = vunpack.c.h.b16 %v552
    %v961 = vunpack.c.l.b16 %v553
    %v962 = vunpack.c.h.b16 %v553
    %v963 = vunpack.c.l.b16 %v554
    %v964 = vunpack.c.h.b16 %v554
    %v965 = vunpack.c.l.b16 %v555
    %v966 = vunpack.c.h.b16 %v555
    %v967 = vunpack.c.l.b16 %v556
    %v968 = vunpack.c.h.b16 %v556
    %v969 = vunpack.c.l.b16 %v557
    %v970 = vunpack.c.h.b16 %v557
    %v971 = vunpack.c.l.b16 %v558
    %v972 = vunpack.c.h.b16 %v558
    %v973 = vunpack.c.l.b16 %v559
    %v974 = vunpack.c.h.b16 %v559
    %v975 = vunpack.c.l.b16 %v560
    %v976 = vunpack.c.h.b16 %v560
    %v977 = vunpack.c.l.b16 %v561
    %v978 = vunpack.c.h.b16 %v561
    %v979 = vunpack.c.l.b16 %v562
    %v980 = vunpack.c.h.b16 %v562
    %v981 = vunpack.c.l.b16 %v563
    %v982 = vunpack.c.h.b16 %v563
    %v983 = vunpack.c.l.b16 %v564
    %v984 = vunpack.c.h.b16 %v564
    %v985 = vunpack.c.l.b16 %v565
    %v986 = vunpack.c.h.b16 %v565
    %v987 = vunpack.c.l.b16 %v566
    %v988 = vunpack.c.h.b16 %v566
    %v989 = vunpack.c.l.b16 %v567
    %v990 = vunpack.c.h.b16 %v567
    %v991 = vunpack.c.l.b16 %v568
    %v992 = vunpack.c.h.b16 %v568
    %v993 = vunpack.c.l.b16 %v569
    %v994 = vunpack.c.h.b16 %v569
    %v995 = vunpack.c.l.b16 %v570
    %v996 = vunpack.c.h.b16 %v570
    %v997 = vunpack.c.l.b16 %v571
    %v998 = vunpack.c.h.b16 %v571
    %v999 = vunpack.c.l.b16 %v572
    %v1000 = vunpack.c.h.b16 %v572
    %v1001 = vunpack.c.l.b16 %v573
    %v1002 = vunpack.c.h.b16 %v573
    %v1003 = vunpack.c.l.b16 %v574
    %v1004 = vunpack.c.h.b16 %v574
    %v1005 = vunpack.c.l.b16 %v575
    %v1006 = vunpack.c.h.b16 %v575
    %v1007 = vunpack.c.l.b16 %v576
    %v1008 = vunpack.c.h.b16 %v576
    %v1009 = vunpack.c.l.b16 %v577
    %v1010 = vunpack.c.h.b16 %v577
    %v1011 = vunpack.c.l.b16 %v578
    %v1012 = vunpack.c.h.b16 %v578
    %v1013 = vunpack.c.l.b16 %v579
    %v1014 = vunpack.c.h.b16 %v579
    %v1015 = vunpack.c.l.b16 %v580
    %v1016 = vunpack.c.h.b16 %v580
    %v1017 = vunpack.c.l.b16 %v581
    %v1018 = vunpack.c.h.b16 %v581
    %v1019 = vunpack.c.l.b16 %v582
    %v1020 = vunpack.c.h.b16 %v582
    %v1021 = vunpack.c.l.b16 %v583
    %v1022 = vunpack.c.h.b16 %v583
    %v1023 = vunpack.c.l.b16 %v584
    %v1024 = vunpack.c.h.b16 %v584
    %v1025 = vunpack.c.l.b16 %v585
    %v1026 = vunpack.c.h.b16 %v585
    %v1027 = vunpack.c.l.b16 %v586
    %v1028 = vunpack.c.h.b16 %v586
    %v1029 = vunpack.c.l.b16 %v587
    %v1030 = vunpack.c.h.b16 %v587
    %v1031 = vunpack.c.l.b16 %v588
    %v1032 = vunpack.c.h.b16 %v588
    %v1033 = vunpack.c.l.b16 %v589
    %v1034 = vunpack.c.h.b16 %v589
    %v1035 = vunpack.c.l.b16 %v590
    %v1036 = vunpack.c.h.b16 %v590
    %v1037 = vunpack.c.l.b16 %v591
    %v1038 = vunpack.c.h.b16 %v591
    %v1039 = vunpack.c.l.b16 %v592
    %v1040 = vunpack.c.h.b16 %v592
    %v1041 = vunpack.c.l.b16 %v593
    %v1042 = vunpack.c.h.b16 %v593
    %v1043 = vunpack.c.l.b16 %v594
    %v1044 = vunpack.c.h.b16 %v594
    %v1045 = vunpack.c.l.b16 %v595
    %v1046 = vunpack.c.h.b16 %v595
    %v1047 = vunpack.c.l.b16 %v596
    %v1048 = vunpack.c.h.b16 %v596
    %v1049 = vunpack.c.l.b16 %v597
    %v1050 = vunpack.c.h.b16 %v597
    %v1051 = vunpack.c.l.b16 %v598
    %v1052 = vunpack.c.h.b16 %v598
    %v1053 = vunpack.c.l.b16 %v599
    %v1054 = vunpack.c.h.b16 %v599
    %v1055 = vunpack.c.l.b16 %v600
    %v1056 = vunpack.c.h.b16 %v600
    %v1057 = vunpack.c.l.b16 %v601
    %v1058 = vunpack.c.h.b16 %v601
    %v1059 = vunpack.c.l.b16 %v602
    %v1060 = vunpack.c.h.b16 %v602
    %v1061 = vunpack.c.l.b16 %v603
    %v1062 = vunpack.c.h.b16 %v603
    %v1063 = vunpack.c.l.b16 %v604
    %v1064 = vunpack.c.h.b16 %v604
    %v1065 = vunpack.c.l.b16 %v605
    %v1066 = vunpack.c.h.b16 %v605
    %v1067 = vunpack.c.l.b16 %v606
    %v1068 = vunpack.c.h.b16 %v606
    %v1069 = vunpack.c.l.b16 %v607
    %v1070 = vunpack.c.h.b16 %v607
    %v1071 = vunpack.c.l.b16 %v608
    %v1072 = vunpack.c.h.b16 %v608
    %v1073 = vunpack.c.l.b16 %v609
    %v1074 = vunpack.c.h.b16 %v609
    %v1075 = vunpack.c.l.b16 %v610
    %v1076 = vunpack.c.h.b16 %v610
    %v1077 = vunpack.c.l.b16 %v611
    %v1078 = vunpack.c.h.b16 %v611
    %v1079 = vunpack.c.l.b16 %v612
    %v1080 = vunpack.c.h.b16 %v612
    %v1081 = vunpack.c.l.b16 %v613
    %v1082 = vunpack.c.h.b16 %v613
    %v1083 = vunpack.c.l.b16 %v614
    %v1084 = vunpack.c.h.b16 %v614
    %v1085 = vunpack.c.l.b16 %v615
    %v1086 = vunpack.c.h.b16 %v615
    %v1087 = vunpack.c.l.b16 %v616
    %v1088 = vunpack.c.h.b16 %v616
    %v1089 = vunpack.c.l.b16 %v617
    %v1090 = vunpack.c.h.b16 %v617
    %v1091 = vunpack.c.l.b16 %v618
    %v1092 = vunpack.c.h.b16 %v618
    %v1093 = vunpack.c.l.b16 %v619
    %v1094 = vunpack.c.h.b16 %v619
    %v1095 = vunpack.c.l.b16 %v620
    %v1096 = vunpack.c.h.b16 %v620
    %v1097 = vunpack.c.l.b16 %v621
    %v1098 = vunpack.c.h.b16 %v621
    %v1099 = vunpack.c.l.b16 %v622
    %v1100 = vunpack.c.h.b16 %v622
    %v1101 = vunpack.c.l.b16 %v623
    %v1102 = vunpack.c.h.b16 %v623
    %v1103 = vunpack.c.l.b16 %v624
    %v1104 = vunpack.c.h.b16 %v624
    %v1105 = vunpack.c.l.b16 %v625
    %v1106 = vunpack.c.h.b16 %v625
    %v1107 = vunpack.c.l.b16 %v626
    %v1108 = vunpack.c.h.b16 %v626
    %v1109 = vunpack.c.l.b16 %v627
    %v1110 = vunpack.c.h.b16 %v627
    %v1111 = vunpack.c.l.b16 %v628
    %v1112 = vunpack.c.h.b16 %v628
    %v1113 = vunpack.c.l.b16 %v629
    %v1114 = vunpack.c.h.b16 %v629
    %v1115 = vunpack.c.l.b16 %v630
    %v1116 = vunpack.c.h.b16 %v630
    %v1117 = vunpack.c.l.b16 %v631
    %v1118 = vunpack.c.h.b16 %v631
    %v1119 = vunpack.c.l.b16 %v632
    %v1120 = vunpack.c.h.b16 %v632
    %v1121 = vunpack.c.l.b16 %v633
    %v1122 = vunpack.c.h.b16 %v633
    %v1123 = vunpack.c.l.b16 %v634
    %v1124 = vunpack.c.h.b16 %v634
    %v1125 = vunpack.c.l.b16 %v635
    %v1126 = vunpack.c.h.b16 %v635
    %v1127 = vunpack.c.l.b16 %v636
    %v1128 = vunpack.c.h.b16 %v636
    %v1129 = vunpack.c.l.b16 %v637
    %v1130 = vunpack.c.h.b16 %v637
    %v1131 = vunpack.c.l.b16 %v638
    %v1132 = vunpack.c.h.b16 %v638
    %v1133 = vunpack.c.l.b16 %v639
    %v1134 = vunpack.c.h.b16 %v639
    %v1135 = vunpack.c.l.b16 %v640
    %v1136 = vunpack.c.h.b16 %v640
    %v1137 = vunpack.c.l.b16 %v641
    %v1138 = vunpack.c.h.b16 %v641
    %v1139 = vunpack.c.l.b16 %v642
    %v1140 = vunpack.c.h.b16 %v642
    %v1141 = vunpack.c.l.b16 %v643
    %v1142 = vunpack.c.h.b16 %v643
    %v1143 = vunpack.c.l.b16 %v644
    %v1144 = vunpack.c.h.b16 %v644
    %v1145 = vunpack.c.l.b16 %v645
    %v1146 = vunpack.c.h.b16 %v645
    %v1147 = vunpack.c.l.b16 %v646
    %v1148 = vunpack.c.h.b16 %v646
    %v1149 = vunpack.c.l.b16 %v647
    %v1150 = vunpack.c.h.b16 %v647
    %v1151 = vunpack.c.l.b16 %v648
    %v1152 = vunpack.c.h.b16 %v648
    %v1153 = vunpack.c.l.b16 %v649
    %v1154 = vunpack.c.h.b16 %v649
    %v1155 = vunpack.c.l.b16 %v650
    %v1156 = vunpack.c.h.b16 %v650
    %v1157 = vunpack.c.l.b16 %v651
    %v1158 = vunpack.c.h.b16 %v651
    %v1159 = vunpack.c.l.b16 %v652
    %v1160 = vunpack.c.h.b16 %v652
    %v1161 = vunpack.c.l.b16 %v653
    %v1162 = vunpack.c.h.b16 %v653
    %v1163 = vunpack.c.l.b16 %v654
    %v1164 = vunpack.c.h.b16 %v654
    %v1165 = vunpack.c.l.b16 %v655
    %v1166 = vunpack.c.h.b16 %v655
    %v1167 = vunpack.c.l.b16 %v656
    %v1168 = vunpack.c.h.b16 %v656
    %v1169 = vunpack.c.l.b16 %v657
    %v1170 = vunpack.c.h.b16 %v657
    %v1171 = vunpack.c.l.b16 %v658
    %v1172 = vunpack.c.h.b16 %v658
    %v1173 = vunpack.c.l.b16 %v659
    %v1174 = vunpack.c.h.b16 %v659
    %v1175 = vunpack.c.l.b16 %v660
    %v1176 = vunpack.c.h.b16 %v660
    %v1177 = vunpack.c.l.b16 %v661
    %v1178 = vunpack.c.h.b16 %v661
    %v1179 = vunpack.c.l.b16 %v662
    %v1180 = vunpack.c.h.b16 %v662
    %v1181 = vunpack.c.l.b16 %v663
    %v1182 = vunpack.c.h.b16 %v663
    %v1183 = vunpack.c.l.b16 %v664
    %v1184 = vunpack.c.h.b16 %v664
    %v1185 = vunpack.c.l.b16 %v665
    %v1186 = vunpack.c.h.b16 %v665
    %v1187 = vunpack.c.l.b16 %v666
    %v1188 = vunpack.c.h.b16 %v666
    %v1189 = vunpack.c.l.b16 %v667
    %v1190 = vunpack.c.h.b16 %v667
    %v1191 = vunpack.c.l.b16 %v668
    %v1192 = vunpack.c.h.b16 %v668
    %v1193 = vunpack.c.l.b16 %v669
    %v1194 = vunpack.c.h.b16 %v669
    %v1195 = vunpack.c.l.b16 %v670
    %v1196 = vunpack.c.h.b16 %v670
    %v1197 = vunpack.c.l.b16 %v671
    %v1198 = vunpack.c.h.b16 %v671
    %v1199 = vunpack.c.l.b16 %v672
    %v1200 = vunpack.c.h.b16 %v672
    %v1201 = vunpack.c.l.b16 %v673
    %v1202 = vunpack.c.h.b16 %v673
    %v1203 = vunpack.c.l.b16 %v674
    %v1204 = vunpack.c.h.b16 %v674
    %v1205 = vunpack.c.l.b16 %v675
    %v1206 = vunpack.c.h.b16 %v675
    %v1207 = vunpack.c.l.b16 %v676
    %v1208 = vunpack.c.h.b16 %v676
    %v1209 = vunpack.c.l.b16 %v677
    %v1210 = vunpack.c.h.b16 %v677
    %v1211 = vunpack.c.l.b16 %v678
    %v1212 = vunpack.c.h.b16 %v678
    %v1213 = vunpack.c.l.b16 %v679
    %v1214 = vunpack.c.h.b16 %v679
    %v1215 = vunpack.c.l.b16 %v680
    %v1216 = vunpack.c.h.b16 %v680
    %v1217 = vunpack.c.l.b16 %v681
    %v1218 = vunpack.c.h.b16 %v681
    %v1219 = vunpack.c.l.b16 %v682
    %v1220 = vunpack.c.h.b16 %v682
    %v1221 = vunpack.c.l.b16 %v683
    %v1222 = vunpack.c.h.b16 %v683
    %v1223 = vunpack.c.l.b16 %v684
    %v1224 = vunpack.c.h.b16 %v684
    %v1225 = vunpack.c.l.b16 %v685
    %v1226 = vunpack.c.h.b16 %v685
    %v1227 = vunpack.c.l.b16 %v686
    %v1228 = vunpack.c.h.b16 %v686
    %v1229 = vunpack.c.l.b16 %v687
    %v1230 = vunpack.c.h.b16 %v687
    %v1231 = vunpack.c.l.b16 %v688
    %v1232 = vunpack.c.h.b16 %v688
    %v1233 = vunpack.c.l.b16 %v689
    %v1234 = vunpack.c.h.b16 %v689
    %v1235 = vunpack.c.l.b16 %v690
    %v1236 = vunpack.c.h.b16 %v690
    %v1237 = vunpack.c.l.b16 %v691
    %v1238 = vunpack.c.h.b16 %v691
    %v1239 = vunpack.c.l.b16 %v692
    %v1240 = vunpack.c.h.b16 %v692
    %v1241 = vunpack.c.l.b16 %v693
    %v1242 = vunpack.c.h.b16 %v693
    %v1243 = vunpack.c.l.b16 %v694
    %v1244 = vunpack.c.h.b16 %v694
    %v1245 = vunpack.c.l.b16 %v695
    %v1246 = vunpack.c.h.b16 %v695
    %v1247 = vunpack.c.l.b16 %v696
    %v1248 = vunpack.c.h.b16 %v696
    %v1249 = vunpack.c.l.b16 %v697
    %v1250 = vunpack.c.h.b16 %v697
    %v1251 = vunpack.c.l.b16 %v698
    %v1252 = vunpack.c.h.b16 %v698
    %v1253 = vunpack.c.l.b16 %v699
    %v1254 = vunpack.c.h.b16 %v699
    %v1255 = vunpack.c.l.b16 %v700
    %v1256 = vunpack.c.h.b16 %v700
    %v1257 = vunpack.c.l.b16 %v701
    %v1258 = vunpack.c.h.b16 %v701
    %v1259 = vunpack.c.l.b16 %v702
    %v1260 = vunpack.c.h.b16 %v702
    %v1261 = vunpack.c.l.b16 %v703
    %v1262 = vunpack.c.h.b16 %v703
    %v1263 = vunpack.c.l.b16 %v704
    %v1264 = vunpack.c.h.b16 %v704
    %v1265 = vunpack.c.l.b16 %v705
    %v1266 = vunpack.c.h.b16 %v705
    %v1267 = vunpack.c.l.b16 %v706
    %v1268 = vunpack.c.h.b16 %v706
    %v1269 = vunpack.c.l.b16 %v707
    %v1270 = vunpack.c.h.b16 %v707
    %v1271 = vunpack.c.l.b16 %v708
    %v1272 = vunpack.c.h.b16 %v708
    %v1273 = vunpack.c.l.b16 %v709
    %v1274 = vunpack.c.h.b16 %v709
    %v1275 = vunpack.c.l.b16 %v710
    %v1276 = vunpack.c.h.b16 %v710
    %v1277 = vunpack.c.l.b16 %v711
    %v1278 = vunpack.c.h.b16 %v711
    %v1279 = vunpack.c.l.b16 %v712
    %v1280 = vunpack.c.h.b16 %v712
    %v1281 = vunpack.c.l.b16 %v713
    %v1282 = vunpack.c.h.b16 %v713
    %v1283 = vunpack.c.l.b16 %v714
    %v1284 = vunpack.c.h.b16 %v714
    %v1285 = vunpack.c.l.b16 %v715
    %v1286 = vunpack.c.h.b16 %v715
    %v1287 = vunpack.c.l.b16 %v716
    %v1288 = vunpack.c.h.b16 %v716
    %v1289 = vunpack.c.l.b16 %v717
    %v1290 = vunpack.c.h.b16 %v717
    %v1291 = vunpack.c.l.b16 %v718
    %v1292 = vunpack.c.h.b16 %v718
    %v1293 = vunpack.c.l.b16 %v719
    %v1294 = vunpack.c.h.b16 %v719
    %v1295 = vunpack.c.l.b16 %v720
    %v1296 = vunpack.c.h.b16 %v720
    %v1297 = vpack.c.b16 %v917, %v913
    %v1298 = vpack.c.b16 %v918, %v914
    %v1299 = vpack.c.b16 %v919, %v915
    %v1300 = vpack.c.b16 %v920, %v916
    %v1301 = vpack.c.b16 %v925, %v921
    %v1302 = vpack.c.b16 %v926, %v922
    %v1303 = vpack.c.b16 %v927, %v923
    %v1304 = vpack.c.b16 %v928, %v924
    %v1305 = vpack.c.b16 %v933, %v929
    %v1306 = vpack.c.b16 %v934, %v930
    %v1307 = vpack.c.b16 %v935, %v931
    %v1308 = vpack.c.b16 %v936, %v932
    %v1309 = vpack.c.b16 %v941, %v937
    %v1310 = vpack.c.b16 %v942, %v938
    %v1311 = vpack.c.b16 %v943, %v939
    %v1312 = vpack.c.b16 %v944, %v940
    %v1313 = vpack.c.b16 %v949, %v945
    %v1314 = vpack.c.b16 %v950, %v946
    %v1315 = vpack.c.b16 %v951, %v947
    %v1316 = vpack.c.b16 %v952, %v948
    %v1317 = vpack.c.b16 %v957, %v953
    %v1318 = vpack.c.b16 %v958, %v954
    %v1319 = vpack.c.b16 %v959, %v955
    %v1320 = vpack.c.b16 %v960, %v956
    %v1321 = vpack.c.b16 %v965, %v961
    %v1322 = vpack.c.b16 %v966, %v962
    %v1323 = vpack.c.b16 %v967, %v963
    %v1324 = vpack.c.b16 %v968, %v964
    %v1325 = vpack.c.b16 %v973, %v969
    %v1326 = vpack.c.b16 %v974, %v970
    %v1327 = vpack.c.b16 %v975, %v971
    %v1328 = vpack.c.b16 %v976, %v972
    %v1329 = vpack.c.b16 %v981, %v977
    %v1330 = vpack.c.b16 %v982, %v978
    %v1331 = vpack.c.b16 %v983, %v979
    %v1332 = vpack.c.b16 %v984, %v980
    %v1333 = vpack.c.b16 %v989, %v985
    %v1334 = vpack.c.b16 %v990, %v986
    %v1335 = vpack.c.b16 %v991, %v987
    %v1336 = vpack.c.b16 %v992, %v988
    %v1337 = vpack.c.b16 %v997, %v993
    %v1338 = vpack.c.b16 %v998, %v994
    %v1339 = vpack.c.b16 %v999, %v995
    %v1340 = vpack.c.b16 %v1000, %v996
    %v1341 = vpack.c.b16 %v1005, %v1001
    %v1342 = vpack.c.b16 %v1006, %v1002
    %v1343 = vpack.c.b16 %v1007, %v1003
    %v1344 = vpack.c.b16 %v1008, %v1004
    %v1345 = vpack.c.b16 %v1013, %v1009
    %v1346 = vpack.c.b16 %v1014, %v1010
    %v1347 = vpack.c.b16 %v1015, %v1011
    %v1348 = vpack.c.b16 %v1016, %v1012
    %v1349 = vpack.c.b16 %v1021, %v1017
    %v1350 = vpack.c.b16 %v1022, %v1018
    %v1351 = vpack.c.b16 %v1023, %v1019
    %v1352 = vpack.c.b16 %v1024, %v1020
    %v1353 = vpack.c.b16 %v1029, %v1025
    %v1354 = vpack.c.b16 %v1030, %v1026
    %v1355 = vpack.c.b16 %v1031, %v1027
    %v1356 = vpack.c.b16 %v1032, %v1028
    %v1357 = vpack.c.b16 %v1037, %v1033
    %v1358 = vpack.c.b16 %v1038, %v1034
    %v1359 = vpack.c.b16 %v1039, %v1035
    %v1360 = vpack.c.b16 %v1040, %v1036
    %v1361 = vpack.c.b16 %v1045, %v1041
    %v1362 = vpack.c.b16 %v1046, %v1042
    %v1363 = vpack.c.b16 %v1047, %v1043
    %v1364 = vpack.c.b16 %v1048, %v1044
    %v1365 = vpack.c.b16 %v1053, %v1049
    %v1366 = vpack.c.b16 %v1054, %v1050
    %v1367 = vpack.c.b16 %v1055, %v1051
    %v1368 = vpack.c.b16 %v1056, %v1052
    %v1369 = vpack.c.b16 %v1061, %v1057
    %v1370 = vpack.c.b16 %v1062, %v1058
    %v1371 = vpack.c.b16 %v1063, %v1059
    %v1372 = vpack.c.b16 %v1064, %v1060
    %v1373 = vpack.c.b16 %v1069, %v1065
    %v1374 = vpack.c.b16 %v1070, %v1066
    %v1375 = vpack.c.b16 %v1071, %v1067
    %v1376 = vpack.c.b16 %v1072, %v1068
    %v1377 = vpack.c.b16 %v1077, %v1073
    %v1378 = vpack.c.b16 %v1078, %v1074
    %v1379 = vpack.c.b16 %v1079, %v1075
    %v1380 = vpack.c.b16 %v1080, %v1076
    %v1381 = vpack.c.b16 %v1085, %v1081
    %v1382 = vpack.c.b16 %v1086, %v1082
    %v1383 = vpack.c.b16 %v1087, %v1083
    %v1384 = vpack.c.b16 %v1088, %v1084
    %v1385 = vpack.c.b16 %v1093, %v1089
    %v1386 = vpack.c.b16 %v1094, %v1090
    %v1387 = vpack.c.b16 %v1095, %v1091
    %v1388 = vpack.c.b16 %v1096, %v1092
    %v1389 = vpack.c.b16 %v1101, %v1097
    %v1390 = vpack.c.b16 %v1102, %v1098
    %v1391 = vpack.c.b16 %v1103, %v1099
    %v1392 = vpack.c.b16 %v1104, %v1100
    %v1393 = vpack.c.b16 %v1109, %v1105
    %v1394 = vpack.c.b16 %v1110, %v1106
    %v1395 = vpack.c.b16 %v1111, %v1107
    %v1396 = vpack.c.b16 %v1112, %v1108
    %v1397 = vpack.c.b16 %v1117, %v1113
    %v1398 = vpack.c.b16 %v1118, %v1114
    %v1399 = vpack.c.b16 %v1119, %v1115
    %v1400 = vpack.c.b16 %v1120, %v1116
    %v1401 = vpack.c.b16 %v1125, %v1121
    %v1402 = vpack.c.b16 %v1126, %v1122
    %v1403 = vpack.c.b16 %v1127, %v1123
    %v1404 = vpack.c.b16 %v1128, %v1124
    %v1405 = vpack.c.b16 %v1133, %v1129
    %v1406 = vpack.c.b16 %v1134, %v1130
    %v1407 = vpack.c.b16 %v1135, %v1131
    %v1408 = vpack.c.b16 %v1136, %v1132
    %v1409 = vpack.c.b16 %v1141, %v1137
    %v1410 = vpack.c.b16 %v1142, %v1138
    %v1411 = vpack.c.b16 %v1143, %v1139
    %v1412 = vpack.c.b16 %v1144, %v1140
    %v1413 = vpack.c.b16 %v1149, %v1145
    %v1414 = vpack.c.b16 %v1150, %v1146
    %v1415 = vpack.c.b16 %v1151, %v1147
    %v1416 = vpack.c.b16 %v1152, %v1148
    %v1417 = vpack.c.b16 %v1157, %v1153
    %v1418 = vpack.c.b16 %v1158, %v1154
    %v1419 = vpack.c.b16 %v1159, %v1155
    %v1420 = vpack.c.b16 %v1160, %v1156
    %v1421 = vpack.c.b16 %v1165, %v1161
    %v1422 = vpack.c.b16 %v1166, %v1162
    %v1423 = vpack.c.b16 %v1167, %v1163
    %v1424 = vpack.c.b16 %v1168, %v1164
    %v1425 = vpack.c.b16 %v1173, %v1169
    %v1426 = vpack.c.b16 %v1174, %v1170
    %v1427 = vpack.c.b16 %v1175, %v1171
    %v1428 = vpack.c.b16 %v1176, %v1172
    %v1429 = vpack.c.b16 %v1181, %v1177
    %v1430 = vpack.c.b16 %v1182, %v1178
    %v1431 = vpack.c.b16 %v1183, %v1179
    %v1432 = vpack.c.b16 %v1184, %v1180
    %v1433 = vpack.c.b16 %v1189, %v1185
    %v1434 = vpack.c.b16 %v1190, %v1186
    %v1435 = vpack.c.b16 %v1191, %v1187
    %v1436 = vpack.c.b16 %v1192, %v1188
    %v1437 = vpack.c.b16 %v1197, %v1193
    %v1438 = vpack.c.b16 %v1198, %v1194
    %v1439 = vpack.c.b16 %v1199, %v1195
    %v1440 = vpack.c.b16 %v1200, %v1196
    %v1441 = vpack.c.b16 %v1205, %v1201
    %v1442 = vpack.c.b16 %v1206, %v1202
    %v1443 = vpack.c.b16 %v1207, %v1203
    %v1444 = vpack.c.b16 %v1208, %v1204
    %v1445 = vpack.c.b16 %v1213, %v1209
    %v1446 = vpack.c.b16 %v1214, %v1210
    %v1447 = vpack.c.b16 %v1215, %v1211
    %v1448 = vpack.c.b16 %v1216, %v1212
    %v1449 = vpack.c.b16 %v1221, %v1217
    %v1450 = vpack.c.b16 %v1222, %v1218
    %v1451 = vpack.c.b16 %v1223, %v1219
    %v1452 = vpack.c.b16 %v1224, %v1220
    %v1453 = vpack.c.b16 %v1229, %v1225
    %v1454 = vpack.c.b16 %v1230, %v1226
    %v1455 = vpack.c.b16 %v1231, %v1227
    %v1456 = vpack.c.b16 %v1232, %v1228
    %v1457 = vpack.c.b16 %v1237, %v1233
    %v1458 = vpack.c.b16 %v1238, %v1234
    %v1459 = vpack.c.b16 %v1239, %v1235
    %v1460 = vpack.c.b16 %v1240, %v1236
    %v1461 = vpack.c.b16 %v1245, %v1241
    %v1462 = vpack.c.b16 %v1246, %v1242
    %v1463 = vpack.c.b16 %v1247, %v1243
    %v1464 = vpack.c.b16 %v1248, %v1244
    %v1465 = vpack.c.b16 %v1253, %v1249
    %v1466 = vpack.c.b16 %v1254, %v1250
    %v1467 = vpack.c.b16 %v1255, %v1251
    %v1468 = vpack.c.b16 %v1256, %v1252
    %v1469 = vpack.c.b16 %v1261, %v1257
    %v1470 = vpack.c.b16 %v1262, %v1258
    %v1471 = vpack.c.b16 %v1263, %v1259
    %v1472 = vpack.c.b16 %v1264, %v1260
    %v1473 = vpack.c.b16 %v1269, %v1265
    %v1474 = vpack.c.b16 %v1270, %v1266
    %v1475 = vpack.c.b16 %v1271, %v1267
    %v1476 = vpack.c.b16 %v1272, %v1268
    %v1477 = vpack.c.b16 %v1277, %v1273
    %v1478 = vpack.c.b16 %v1278, %v1274
    %v1479 = vpack.c.b16 %v1279, %v1275
    %v1480 = vpack.c.b16 %v1280, %v1276
    %v1481 = vpack.c.b16 %v1285, %v1281
    %v1482 = vpack.c.b16 %v1286, %v1282
    %v1483 = vpack.c.b16 %v1287, %v1283
    %v1484 = vpack.c.b16 %v1288, %v1284
    %v1485 = vpack.c.b16 %v1293, %v1289
    %v1486 = vpack.c.b16 %v1294, %v1290
    %v1487 = vpack.c.b16 %v1295, %v1291
    %v1488 = vpack.c.b16 %v1296, %v1292
    %1681 = vmatprep.subr.bf16.mxu0 %v1298
    %1682 = vmatpush1.bf16.msra.mxu0 %v1297
    %1683 = vmatprep.subr.bf16.mxu0 %v1302
    %1684 = vmatpush1.bf16.msra.mxu0 %v1301
    %1685 = vmatprep.subr.bf16.mxu0 %v1306
    %1686 = vmatpush1.bf16.msra.mxu0 %v1305
    %1687 = vmatprep.subr.bf16.mxu0 %v1310
    %1688 = vmatpush1.bf16.msra.mxu0 %v1309
    %1689 = vmatprep.subr.bf16.mxu0 %v1314
    %1690 = vmatpush1.bf16.msra.mxu0 %v1313
    %1691 = vmatprep.subr.bf16.mxu0 %v1318
    %1692 = vmatpush1.bf16.msra.mxu0 %v1317
    %1693 = vmatprep.subr.bf16.mxu0 %v1322
    %1694 = vmatpush1.bf16.msra.mxu0 %v1321
    %1695 = vmatprep.subr.bf16.mxu0 %v1326
    %1696 = vmatpush1.bf16.msra.mxu0 %v1325
    %1697 = vmatprep.subr.bf16.mxu0 %v1330
    %1698 = vmatpush1.bf16.msra.mxu0 %v1329
    %1699 = vmatprep.subr.bf16.mxu0 %v1334
    %1700 = vmatpush1.bf16.msra.mxu0 %v1333
    %1701 = vmatprep.subr.bf16.mxu0 %v1338
    %1702 = vmatpush1.bf16.msra.mxu0 %v1337
    %1703 = vmatprep.subr.bf16.mxu0 %v1342
    %1704 = vmatpush1.bf16.msra.mxu0 %v1341
    %1705 = vmatprep.subr.bf16.mxu0 %v1346
    %1706 = vmatpush1.bf16.msra.mxu0 %v1345
    %1707 = vmatprep.subr.bf16.mxu0 %v1350
    %1708 = vmatpush1.bf16.msra.mxu0 %v1349
    %1709 = vmatprep.subr.bf16.mxu0 %v1354
    %1710 = vmatpush1.bf16.msra.mxu0 %v1353
    %1711 = vmatprep.subr.bf16.mxu0 %v1358
    %1712 = vmatpush1.bf16.msra.mxu0 %v1357
    %1713 = vmatprep.mubr.bf16.mxu0 %v524
    %1714 = vmatmul.mubr.bf16.gmra.mrb[0].mxu0 %v523
    %v1715 = vpop.f32.mrb[0].mxu0
    %v1716 = vadd.f32 0.0, %v1715
    %v1717 = vpop.f32.mrb[0].mxu0
    %v1718 = vadd.f32 0.0, %v1717
    %v1719 = vpop.f32.mrb[0].mxu0
    %v1720 = vpop.f32.mrb[0].mxu0
    %1721 = vdwg.mxu0
    %1722 = vmatprep.subr.bf16.mxu0 %v1362
    %1723 = vmatpush1.bf16.msra.mxu0 %v1361
    %1724 = vmatprep.subr.bf16.mxu0 %v1366
    %1725 = vmatpush1.bf16.msra.mxu0 %v1365
    %1726 = vmatprep.subr.bf16.mxu0 %v1370
    %1727 = vmatpush1.bf16.msra.mxu0 %v1369
    %1728 = vmatprep.subr.bf16.mxu0 %v1374
    %1729 = vmatpush1.bf16.msra.mxu0 %v1373
    %1730 = vmatprep.subr.bf16.mxu0 %v1378
    %1731 = vmatpush1.bf16.msra.mxu0 %v1377
    %1732 = vmatprep.subr.bf16.mxu0 %v1382
    %1733 = vmatpush1.bf16.msra.mxu0 %v1381
    %1734 = vmatprep.subr.bf16.mxu0 %v1386
    %1735 = vmatpush1.bf16.msra.mxu0 %v1385
    %1736 = vmatprep.subr.bf16.mxu0 %v1390
    %1737 = vmatpush1.bf16.msra.mxu0 %v1389
    %1738 = vmatprep.subr.bf16.mxu0 %v1394
    %1739 = vmatpush1.bf16.msra.mxu0 %v1393
    %1740 = vmatprep.subr.bf16.mxu0 %v1398
    %1741 = vmatpush1.bf16.msra.mxu0 %v1397
    %1742 = vmatprep.subr.bf16.mxu0 %v1402
    %1743 = vmatpush1.bf16.msra.mxu0 %v1401
    %1744 = vmatprep.subr.bf16.mxu0 %v1406
    %1745 = vmatpush1.bf16.msra.mxu0 %v1405
    %1746 = vmatprep.subr.bf16.mxu0 %v1410
    %1747 = vmatpush1.bf16.msra.mxu0 %v1409
    %1748 = vmatprep.subr.bf16.mxu0 %v1414
    %1749 = vmatpush1.bf16.msra.mxu0 %v1413
    %1750 = vmatprep.subr.bf16.mxu0 %v1418
    %1751 = vmatpush1.bf16.msra.mxu0 %v1417
    %1752 = vmatprep.subr.bf16.mxu0 %v1422
    %1753 = vmatpush1.bf16.msra.mxu0 %v1421
    %1754 = vmatprep.mubr.bf16.mxu0 %v526
    %1755 = vmatmul.mubr.bf16.gmra.mrb[0].mxu0 %v525
    %v1756 = vpop.f32.mrb[0].mxu0
    %v1757 = vadd.f32 %v1716, %v1756
    %v1758 = vpop.f32.mrb[0].mxu0
    %v1759 = vadd.f32 %v1718, %v1758
    %v1760 = vpop.f32.mrb[0].mxu0
    %v1761 = vpop.f32.mrb[0].mxu0
    %1762 = vdwg.mxu0
    %1763 = vmatprep.subr.bf16.mxu0 %v1426
    %1764 = vmatpush1.bf16.msra.mxu0 %v1425
    %1765 = vmatprep.subr.bf16.mxu0 %v1430
    %1766 = vmatpush1.bf16.msra.mxu0 %v1429
    %1767 = vmatprep.subr.bf16.mxu0 %v1434
    %1768 = vmatpush1.bf16.msra.mxu0 %v1433
    %1769 = vmatprep.subr.bf16.mxu0 %v1438
    %1770 = vmatpush1.bf16.msra.mxu0 %v1437
    %1771 = vmatprep.subr.bf16.mxu0 %v1442
    %1772 = vmatpush1.bf16.msra.mxu0 %v1441
    %1773 = vmatprep.subr.bf16.mxu0 %v1446
    %1774 = vmatpush1.bf16.msra.mxu0 %v1445
    %1775 = vmatprep.subr.bf16.mxu0 %v1450
    %1776 = vmatpush1.bf16.msra.mxu0 %v1449
    %1777 = vmatprep.subr.bf16.mxu0 %v1454
    %1778 = vmatpush1.bf16.msra.mxu0 %v1453
    %1779 = vmatprep.subr.bf16.mxu0 %v1458
    %1780 = vmatpush1.bf16.msra.mxu0 %v1457
    %1781 = vmatprep.subr.bf16.mxu0 %v1462
    %1782 = vmatpush1.bf16.msra.mxu0 %v1461
    %1783 = vmatprep.subr.bf16.mxu0 %v1466
    %1784 = vmatpush1.bf16.msra.mxu0 %v1465
    %1785 = vmatprep.subr.bf16.mxu0 %v1470
    %1786 = vmatpush1.bf16.msra.mxu0 %v1469
    %1787 = vmatprep.subr.bf16.mxu0 %v1474
    %1788 = vmatpush1.bf16.msra.mxu0 %v1473
    %1789 = vmatprep.subr.bf16.mxu0 %v1478
    %1790 = vmatpush1.bf16.msra.mxu0 %v1477
    %1791 = vmatprep.subr.bf16.mxu0 %v1482
    %1792 = vmatpush1.bf16.msra.mxu0 %v1481
    %1793 = vmatprep.subr.bf16.mxu0 %v1486
    %1794 = vmatpush1.bf16.msra.mxu0 %v1485
    %1795 = vmatprep.mubr.bf16.mxu0 %v528
    %1796 = vmatmul.mubr.bf16.gmra.mrb[0].mxu0 %v527
    %v1797 = vpop.f32.mrb[0].mxu0
    %v1798 = vadd.f32 %v1757, %v1797
    %v1799 = vpop.f32.mrb[0].mxu0
    %v1800 = vadd.f32 %v1759, %v1799
    %v1801 = vpop.f32.mrb[0].mxu0
    %v1802 = vpop.f32.mrb[0].mxu0
    %1803 = vdwg.mxu0
    %1804 = vmatprep.subr.bf16.mxu0 %v1300
    %1805 = vmatpush1.bf16.msra.mxu0 %v1299
    %1806 = vmatprep.subr.bf16.mxu0 %v1304
    %1807 = vmatpush1.bf16.msra.mxu0 %v1303
    %1808 = vmatprep.subr.bf16.mxu0 %v1308
    %1809 = vmatpush1.bf16.msra.mxu0 %v1307
    %1810 = vmatprep.subr.bf16.mxu0 %v1312
    %1811 = vmatpush1.bf16.msra.mxu0 %v1311
    %1812 = vmatprep.subr.bf16.mxu0 %v1316
    %1813 = vmatpush1.bf16.msra.mxu0 %v1315
    %1814 = vmatprep.subr.bf16.mxu0 %v1320
    %1815 = vmatpush1.bf16.msra.mxu0 %v1319
    %1816 = vmatprep.subr.bf16.mxu0 %v1324
    %1817 = vmatpush1.bf16.msra.mxu0 %v1323
    %1818 = vmatprep.subr.bf16.mxu0 %v1328
    %1819 = vmatpush1.bf16.msra.mxu0 %v1327
    %1820 = vmatprep.subr.bf16.mxu0 %v1332
    %1821 = vmatpush1.bf16.msra.mxu0 %v1331
    %1822 = vmatprep.subr.bf16.mxu0 %v1336
    %1823 = vmatpush1.bf16.msra.mxu0 %v1335
    %1824 = vmatprep.subr.bf16.mxu0 %v1340
    %1825 = vmatpush1.bf16.msra.mxu0 %v1339
    %1826 = vmatprep.subr.bf16.mxu0 %v1344
    %1827 = vmatpush1.bf16.msra.mxu0 %v1343
    %1828 = vmatprep.subr.bf16.mxu0 %v1348
    %1829 = vmatpush1.bf16.msra.mxu0 %v1347
    %1830 = vmatprep.subr.bf16.mxu0 %v1352
    %1831 = vmatpush1.bf16.msra.mxu0 %v1351
    %1832 = vmatprep.subr.bf16.mxu0 %v1356
    %1833 = vmatpush1.bf16.msra.mxu0 %v1355
    %1834 = vmatprep.subr.bf16.mxu0 %v1360
    %1835 = vmatpush1.bf16.msra.mxu0 %v1359
    %1836 = vmatprep.mubr.bf16.mxu0 %v524
    %1837 = vmatmul.mubr.bf16.gmra.mrb[0].mxu0 %v523
    %v1838 = vpop.f32.mrb[0].mxu0
    %v1839 = vadd.f32 0.0, %v1838
    %v1840 = vpop.f32.mrb[0].mxu0
    %v1841 = vadd.f32 0.0, %v1840
    %v1842 = vpop.f32.mrb[0].mxu0
    %v1843 = vpop.f32.mrb[0].mxu0
    %1844 = vdwg.mxu0
    %1845 = vmatprep.subr.bf16.mxu0 %v1364
    %1846 = vmatpush1.bf16.msra.mxu0 %v1363
    %1847 = vmatprep.subr.bf16.mxu0 %v1368
    %1848 = vmatpush1.bf16.msra.mxu0 %v1367
    %1849 = vmatprep.subr.bf16.mxu0 %v1372
    %1850 = vmatpush1.bf16.msra.mxu0 %v1371
    %1851 = vmatprep.subr.bf16.mxu0 %v1376
    %1852 = vmatpush1.bf16.msra.mxu0 %v1375
    %1853 = vmatprep.subr.bf16.mxu0 %v1380
    %1854 = vmatpush1.bf16.msra.mxu0 %v1379
    %1855 = vmatprep.subr.bf16.mxu0 %v1384
    %1856 = vmatpush1.bf16.msra.mxu0 %v1383
    %1857 = vmatprep.subr.bf16.mxu0 %v1388
    %1858 = vmatpush1.bf16.msra.mxu0 %v1387
    %1859 = vmatprep.subr.bf16.mxu0 %v1392
    %1860 = vmatpush1.bf16.msra.mxu0 %v1391
    %1861 = vmatprep.subr.bf16.mxu0 %v1396
    %1862 = vmatpush1.bf16.msra.mxu0 %v1395
    %1863 = vmatprep.subr.bf16.mxu0 %v1400
    %1864 = vmatpush1.bf16.msra.mxu0 %v1399
    %1865 = vmatprep.subr.bf16.mxu0 %v1404
    %1866 = vmatpush1.bf16.msra.mxu0 %v1403
    %1867 = vmatprep.subr.bf16.mxu0 %v1408
    %1868 = vmatpush1.bf16.msra.mxu0 %v1407
    %1869 = vmatprep.subr.bf16.mxu0 %v1412
    %1870 = vmatpush1.bf16.msra.mxu0 %v1411
    %1871 = vmatprep.subr.bf16.mxu0 %v1416
    %1872 = vmatpush1.bf16.msra.mxu0 %v1415
    %1873 = vmatprep.subr.bf16.mxu0 %v1420
    %1874 = vmatpush1.bf16.msra.mxu0 %v1419
    %1875 = vmatprep.subr.bf16.mxu0 %v1424
    %1876 = vmatpush1.bf16.msra.mxu0 %v1423
    %1877 = vmatprep.mubr.bf16.mxu0 %v526
    %1878 = vmatmul.mubr.bf16.gmra.mrb[0].mxu0 %v525
    %v1879 = vpop.f32.mrb[0].mxu0
    %v1880 = vadd.f32 %v1839, %v1879
    %v1881 = vpop.f32.mrb[0].mxu0
    %v1882 = vadd.f32 %v1841, %v1881
    %v1883 = vpop.f32.mrb[0].mxu0
    %v1884 = vpop.f32.mrb[0].mxu0
    %1885 = vdwg.mxu0
    %1886 = vmatprep.subr.bf16.mxu0 %v1428
    %1887 = vmatpush1.bf16.msra.mxu0 %v1427
    %1888 = vmatprep.subr.bf16.mxu0 %v1432
    %1889 = vmatpush1.bf16.msra.mxu0 %v1431
    %1890 = vmatprep.subr.bf16.mxu0 %v1436
    %1891 = vmatpush1.bf16.msra.mxu0 %v1435
    %1892 = vmatprep.subr.bf16.mxu0 %v1440
    %1893 = vmatpush1.bf16.msra.mxu0 %v1439
    %1894 = vmatprep.subr.bf16.mxu0 %v1444
    %1895 = vmatpush1.bf16.msra.mxu0 %v1443
    %1896 = vmatprep.subr.bf16.mxu0 %v1448
    %1897 = vmatpush1.bf16.msra.mxu0 %v1447
    %1898 = vmatprep.subr.bf16.mxu0 %v1452
    %1899 = vmatpush1.bf16.msra.mxu0 %v1451
    %1900 = vmatprep.subr.bf16.mxu0 %v1456
    %1901 = vmatpush1.bf16.msra.mxu0 %v1455
    %1902 = vmatprep.subr.bf16.mxu0 %v1460
    %1903 = vmatpush1.bf16.msra.mxu0 %v1459
    %1904 = vmatprep.subr.bf16.mxu0 %v1464
    %1905 = vmatpush1.bf16.msra.mxu0 %v1463
    %1906 = vmatprep.subr.bf16.mxu0 %v1468
    %1907 = vmatpush1.bf16.msra.mxu0 %v1467
    %1908 = vmatprep.subr.bf16.mxu0 %v1472
    %1909 = vmatpush1.bf16.msra.mxu0 %v1471
    %1910 = vmatprep.subr.bf16.mxu0 %v1476
    %1911 = vmatpush1.bf16.msra.mxu0 %v1475
    %1912 = vmatprep.subr.bf16.mxu0 %v1480
    %1913 = vmatpush1.bf16.msra.mxu0 %v1479
    %1914 = vmatprep.subr.bf16.mxu0 %v1484
    %1915 = vmatpush1.bf16.msra.mxu0 %v1483
    %1916 = vmatprep.subr.bf16.mxu0 %v1488
    %1917 = vmatpush1.bf16.msra.mxu0 %v1487
    %1918 = vmatprep.mubr.bf16.mxu0 %v528
    %1919 = vmatmul.mubr.bf16.gmra.mrb[0].mxu0 %v527
    %v1920 = vpop.f32.mrb[0].mxu0
    %v1921 = vadd.f32 %v1880, %v1920
    %v1922 = vpop.f32.mrb[0].mxu0
    %v1923 = vadd.f32 %v1882, %v1922
    %v1924 = vpop.f32.mrb[0].mxu0
    %v1925 = vpop.f32.mrb[0].mxu0
    %1926 = vdwg.mxu0
    %v1928 = vlaneseq
    %v1929 = vshrl.u32 %v1928, 7
    %v1930 = vsub.s32 0, %v1929
    %v1931 = vrot.slane %v522, %v1930
    %v1932 = vlaneseq
    %v1933 = vshrl.u32 %v1932, 7
    %v1934 = vsub.s32 1, %v1933
    %v1935 = vrot.slane %v522, %v1934
    %v1936 = vlaneseq
    %v1937 = vshrl.u32 %v1936, 7
    %v1938 = vsub.s32 2, %v1937
    %v1939 = vrot.slane %v522, %v1938
    %v1940 = vlaneseq
    %v1941 = vshrl.u32 %v1940, 7
    %v1942 = vsub.s32 3, %v1941
    %v1943 = vrot.slane %v522, %v1942
    %v1948 = vadd.f32 %v1931, %v1798
    %v1949 = vadd.f32 %v1935, %v1800
    %v1950 = vadd.f32 %v1939, %v1921
    %v1951 = vadd.f32 %v1943, %v1923
    %v1952 = vpack.c.bf16 %v373, %v373
    %v1953 = vpack.c.bf16 %v374, %v374
    %v1954 = vpack.c.bf16 %v375, %v375
    %v1955 = vpack.c.bf16 %v376, %v376
    %v1956 = vpack.c.bf16 %v377, %v377
    %v1957 = vpack.c.bf16 %v378, %v378
    %v1958 = vld [vmem:[#allocation8 + $0x600] sm:$0xff]
    %v1959 = vld [vmem:[#allocation8 + $0x608] sm:$0xff]
    %v1960 = vld [vmem:[#allocation8 + $0x610] sm:$0xff]
    %v1961 = vld [vmem:[#allocation8 + $0x618] sm:$0xff]
    %v1962 = vld [vmem:[#allocation8 + $0x620] sm:$0xff]
    %v1963 = vld [vmem:[#allocation8 + $0x628] sm:$0xff]
    %v1964 = vld [vmem:[#allocation8 + $0x630] sm:$0xff]
    %v1965 = vld [vmem:[#allocation8 + $0x638] sm:$0xff]
    %v1966 = vld [vmem:[#allocation8 + $0x640] sm:$0xff]
    %v1967 = vld [vmem:[#allocation8 + $0x648] sm:$0xff]
    %v1968 = vld [vmem:[#allocation8 + $0x650] sm:$0xff]
    %v1969 = vld [vmem:[#allocation8 + $0x658] sm:$0xff]
    %v1970 = vld [vmem:[#allocation8 + $0x660] sm:$0xff]
    %v1971 = vld [vmem:[#allocation8 + $0x668] sm:$0xff]
    %v1972 = vld [vmem:[#allocation8 + $0x670] sm:$0xff]
    %v1973 = vld [vmem:[#allocation8 + $0x678] sm:$0xff]
    %v1974 = vld [vmem:[#allocation8 + $0x680] sm:$0xff]
    %v1975 = vld [vmem:[#allocation8 + $0x688] sm:$0xff]
    %v1976 = vld [vmem:[#allocation8 + $0x690] sm:$0xff]
    %v1977 = vld [vmem:[#allocation8 + $0x698] sm:$0xff]
    %v1978 = vld [vmem:[#allocation8 + $0x6a0] sm:$0xff]
    %v1979 = vld [vmem:[#allocation8 + $0x6a8] sm:$0xff]
    %v1980 = vld [vmem:[#allocation8 + $0x6b0] sm:$0xff]
    %v1981 = vld [vmem:[#allocation8 + $0x6b8] sm:$0xff]
    %v1982 = vld [vmem:[#allocation8 + $0x6c0] sm:$0xff]
    %v1983 = vld [vmem:[#allocation8 + $0x6c8] sm:$0xff]
    %v1984 = vld [vmem:[#allocation8 + $0x6d0] sm:$0xff]
    %v1985 = vld [vmem:[#allocation8 + $0x6d8] sm:$0xff]
    %v1986 = vld [vmem:[#allocation8 + $0x6e0] sm:$0xff]
    %v1987 = vld [vmem:[#allocation8 + $0x6e8] sm:$0xff]
    %v1988 = vld [vmem:[#allocation8 + $0x6f0] sm:$0xff]
    %v1989 = vld [vmem:[#allocation8 + $0x6f8] sm:$0xff]
    %v1990 = vld [vmem:[#allocation8 + $0x700] sm:$0xff]
    %v1991 = vld [vmem:[#allocation8 + $0x708] sm:$0xff]
    %v1992 = vld [vmem:[#allocation8 + $0x710] sm:$0xff]
    %v1993 = vld [vmem:[#allocation8 + $0x718] sm:$0xff]
    %v1994 = vld [vmem:[#allocation8 + $0x720] sm:$0xff]
    %v1995 = vld [vmem:[#allocation8 + $0x728] sm:$0xff]
    %v1996 = vld [vmem:[#allocation8 + $0x730] sm:$0xff]
    %v1997 = vld [vmem:[#allocation8 + $0x738] sm:$0xff]
    %v1998 = vld [vmem:[#allocation8 + $0x740] sm:$0xff]
    %v1999 = vld [vmem:[#allocation8 + $0x748] sm:$0xff]
    %v2000 = vld [vmem:[#allocation8 + $0x750] sm:$0xff]
    %v2001 = vld [vmem:[#allocation8 + $0x758] sm:$0xff]
    %v2002 = vld [vmem:[#allocation8 + $0x760] sm:$0xff]
    %v2003 = vld [vmem:[#allocation8 + $0x768] sm:$0xff]
    %v2004 = vld [vmem:[#allocation8 + $0x770] sm:$0xff]
    %v2005 = vld [vmem:[#allocation8 + $0x778] sm:$0xff]
    %v2006 = vld [vmem:[#allocation8 + $0x780] sm:$0xff]
    %v2007 = vld [vmem:[#allocation8 + $0x788] sm:$0xff]
    %v2008 = vld [vmem:[#allocation8 + $0x790] sm:$0xff]
    %v2009 = vld [vmem:[#allocation8 + $0x798] sm:$0xff]
    %v2010 = vld [vmem:[#allocation8 + $0x7a0] sm:$0xff]
    %v2011 = vld [vmem:[#allocation8 + $0x7a8] sm:$0xff]
    %v2012 = vld [vmem:[#allocation8 + $0x7b0] sm:$0xff]
    %v2013 = vld [vmem:[#allocation8 + $0x7b8] sm:$0xff]
    %v2014 = vld [vmem:[#allocation8 + $0x7c0] sm:$0xff]
    %v2015 = vld [vmem:[#allocation8 + $0x7c8] sm:$0xff]
    %v2016 = vld [vmem:[#allocation8 + $0x7d0] sm:$0xff]
    %v2017 = vld [vmem:[#allocation8 + $0x7d8] sm:$0xff]
    %v2018 = vld [vmem:[#allocation8 + $0x7e0] sm:$0xff]
    %v2019 = vld [vmem:[#allocation8 + $0x7e8] sm:$0xff]
    %v2020 = vld [vmem:[#allocation8 + $0x7f0] sm:$0xff]
    %v2021 = vld [vmem:[#allocation8 + $0x7f8] sm:$0xff]
    %v2022 = vld [vmem:[#allocation8 + $0x800] sm:$0xff]
    %v2023 = vld [vmem:[#allocation8 + $0x808] sm:$0xff]
    %v2024 = vld [vmem:[#allocation8 + $0x810] sm:$0xff]
    %v2025 = vld [vmem:[#allocation8 + $0x818] sm:$0xff]
    %v2026 = vld [vmem:[#allocation8 + $0x820] sm:$0xff]
    %v2027 = vld [vmem:[#allocation8 + $0x828] sm:$0xff]
    %v2028 = vld [vmem:[#allocation8 + $0x830] sm:$0xff]
    %v2029 = vld [vmem:[#allocation8 + $0x838] sm:$0xff]
    %v2030 = vld [vmem:[#allocation8 + $0x840] sm:$0xff]
    %v2031 = vld [vmem:[#allocation8 + $0x848] sm:$0xff]
    %v2032 = vld [vmem:[#allocation8 + $0x850] sm:$0xff]
    %v2033 = vld [vmem:[#allocation8 + $0x858] sm:$0xff]
    %v2034 = vld [vmem:[#allocation8 + $0x860] sm:$0xff]
    %v2035 = vld [vmem:[#allocation8 + $0x868] sm:$0xff]
    %v2036 = vld [vmem:[#allocation8 + $0x870] sm:$0xff]
    %v2037 = vld [vmem:[#allocation8 + $0x878] sm:$0xff]
    %v2038 = vld [vmem:[#allocation8 + $0x880] sm:$0xff]
    %v2039 = vld [vmem:[#allocation8 + $0x888] sm:$0xff]
    %v2040 = vld [vmem:[#allocation8 + $0x890] sm:$0xff]
    %v2041 = vld [vmem:[#allocation8 + $0x898] sm:$0xff]
    %v2042 = vld [vmem:[#allocation8 + $0x8a0] sm:$0xff]
    %v2043 = vld [vmem:[#allocation8 + $0x8a8] sm:$0xff]
    %v2044 = vld [vmem:[#allocation8 + $0x8b0] sm:$0xff]
    %v2045 = vld [vmem:[#allocation8 + $0x8b8] sm:$0xff]
    %v2046 = vld [vmem:[#allocation8 + $0x8c0] sm:$0xff]
    %v2047 = vld [vmem:[#allocation8 + $0x8c8] sm:$0xff]
    %v2048 = vld [vmem:[#allocation8 + $0x8d0] sm:$0xff]
    %v2049 = vld [vmem:[#allocation8 + $0x8d8] sm:$0xff]
    %v2050 = vld [vmem:[#allocation8 + $0x8e0] sm:$0xff]
    %v2051 = vld [vmem:[#allocation8 + $0x8e8] sm:$0xff]
    %v2052 = vld [vmem:[#allocation8 + $0x8f0] sm:$0xff]
    %v2053 = vld [vmem:[#allocation8 + $0x8f8] sm:$0xff]
    %v2054 = vld [vmem:[#allocation8 + $0x900] sm:$0xff]
    %v2055 = vld [vmem:[#allocation8 + $0x908] sm:$0xff]
    %v2056 = vld [vmem:[#allocation8 + $0x910] sm:$0xff]
    %v2057 = vld [vmem:[#allocation8 + $0x918] sm:$0xff]
    %v2058 = vld [vmem:[#allocation8 + $0x920] sm:$0xff]
    %v2059 = vld [vmem:[#allocation8 + $0x928] sm:$0xff]
    %v2060 = vld [vmem:[#allocation8 + $0x930] sm:$0xff]
    %v2061 = vld [vmem:[#allocation8 + $0x938] sm:$0xff]
    %v2062 = vld [vmem:[#allocation8 + $0x940] sm:$0xff]
    %v2063 = vld [vmem:[#allocation8 + $0x948] sm:$0xff]
    %v2064 = vld [vmem:[#allocation8 + $0x950] sm:$0xff]
    %v2065 = vld [vmem:[#allocation8 + $0x958] sm:$0xff]
    %v2066 = vld [vmem:[#allocation8 + $0x960] sm:$0xff]
    %v2067 = vld [vmem:[#allocation8 + $0x968] sm:$0xff]
    %v2068 = vld [vmem:[#allocation8 + $0x970] sm:$0xff]
    %v2069 = vld [vmem:[#allocation8 + $0x978] sm:$0xff]
    %v2070 = vld [vmem:[#allocation8 + $0x980] sm:$0xff]
    %v2071 = vld [vmem:[#allocation8 + $0x988] sm:$0xff]
    %v2072 = vld [vmem:[#allocation8 + $0x990] sm:$0xff]
    %v2073 = vld [vmem:[#allocation8 + $0x998] sm:$0xff]
    %v2074 = vld [vmem:[#allocation8 + $0x9a0] sm:$0xff]
    %v2075 = vld [vmem:[#allocation8 + $0x9a8] sm:$0xff]
    %v2076 = vld [vmem:[#allocation8 + $0x9b0] sm:$0xff]
    %v2077 = vld [vmem:[#allocation8 + $0x9b8] sm:$0xff]
    %v2078 = vld [vmem:[#allocation8 + $0x9c0] sm:$0xff]
    %v2079 = vld [vmem:[#allocation8 + $0x9c8] sm:$0xff]
    %v2080 = vld [vmem:[#allocation8 + $0x9d0] sm:$0xff]
    %v2081 = vld [vmem:[#allocation8 + $0x9d8] sm:$0xff]
    %v2082 = vld [vmem:[#allocation8 + $0x9e0] sm:$0xff]
    %v2083 = vld [vmem:[#allocation8 + $0x9e8] sm:$0xff]
    %v2084 = vld [vmem:[#allocation8 + $0x9f0] sm:$0xff]
    %v2085 = vld [vmem:[#allocation8 + $0x9f8] sm:$0xff]
    %v2086 = vld [vmem:[#allocation8 + $0xa00] sm:$0xff]
    %v2087 = vld [vmem:[#allocation8 + $0xa08] sm:$0xff]
    %v2088 = vld [vmem:[#allocation8 + $0xa10] sm:$0xff]
    %v2089 = vld [vmem:[#allocation8 + $0xa18] sm:$0xff]
    %v2090 = vld [vmem:[#allocation8 + $0xa20] sm:$0xff]
    %v2091 = vld [vmem:[#allocation8 + $0xa28] sm:$0xff]
    %v2092 = vld [vmem:[#allocation8 + $0xa30] sm:$0xff]
    %v2093 = vld [vmem:[#allocation8 + $0xa38] sm:$0xff]
    %v2094 = vld [vmem:[#allocation8 + $0xa40] sm:$0xff]
    %v2095 = vld [vmem:[#allocation8 + $0xa48] sm:$0xff]
    %v2096 = vld [vmem:[#allocation8 + $0xa50] sm:$0xff]
    %v2097 = vld [vmem:[#allocation8 + $0xa58] sm:$0xff]
    %v2098 = vld [vmem:[#allocation8 + $0xa60] sm:$0xff]
    %v2099 = vld [vmem:[#allocation8 + $0xa68] sm:$0xff]
    %v2100 = vld [vmem:[#allocation8 + $0xa70] sm:$0xff]
    %v2101 = vld [vmem:[#allocation8 + $0xa78] sm:$0xff]
    %v2102 = vld [vmem:[#allocation8 + $0xa80] sm:$0xff]
    %v2103 = vld [vmem:[#allocation8 + $0xa88] sm:$0xff]
    %v2104 = vld [vmem:[#allocation8 + $0xa90] sm:$0xff]
    %v2105 = vld [vmem:[#allocation8 + $0xa98] sm:$0xff]
    %v2106 = vld [vmem:[#allocation8 + $0xaa0] sm:$0xff]
    %v2107 = vld [vmem:[#allocation8 + $0xaa8] sm:$0xff]
    %v2108 = vld [vmem:[#allocation8 + $0xab0] sm:$0xff]
    %v2109 = vld [vmem:[#allocation8 + $0xab8] sm:$0xff]
    %v2110 = vld [vmem:[#allocation8 + $0xac0] sm:$0xff]
    %v2111 = vld [vmem:[#allocation8 + $0xac8] sm:$0xff]
    %v2112 = vld [vmem:[#allocation8 + $0xad0] sm:$0xff]
    %v2113 = vld [vmem:[#allocation8 + $0xad8] sm:$0xff]
    %v2114 = vld [vmem:[#allocation8 + $0xae0] sm:$0xff]
    %v2115 = vld [vmem:[#allocation8 + $0xae8] sm:$0xff]
    %v2116 = vld [vmem:[#allocation8 + $0xaf0] sm:$0xff]
    %v2117 = vld [vmem:[#allocation8 + $0xaf8] sm:$0xff]
    %v2118 = vld [vmem:[#allocation8 + $0xb00] sm:$0xff]
    %v2119 = vld [vmem:[#allocation8 + $0xb08] sm:$0xff]
    %v2120 = vld [vmem:[#allocation8 + $0xb10] sm:$0xff]
    %v2121 = vld [vmem:[#allocation8 + $0xb18] sm:$0xff]
    %v2122 = vld [vmem:[#allocation8 + $0xb20] sm:$0xff]
    %v2123 = vld [vmem:[#allocation8 + $0xb28] sm:$0xff]
    %v2124 = vld [vmem:[#allocation8 + $0xb30] sm:$0xff]
    %v2125 = vld [vmem:[#allocation8 + $0xb38] sm:$0xff]
    %v2126 = vld [vmem:[#allocation8 + $0xb40] sm:$0xff]
    %v2127 = vld [vmem:[#allocation8 + $0xb48] sm:$0xff]
    %v2128 = vld [vmem:[#allocation8 + $0xb50] sm:$0xff]
    %v2129 = vld [vmem:[#allocation8 + $0xb58] sm:$0xff]
    %v2130 = vld [vmem:[#allocation8 + $0xb60] sm:$0xff]
    %v2131 = vld [vmem:[#allocation8 + $0xb68] sm:$0xff]
    %v2132 = vld [vmem:[#allocation8 + $0xb70] sm:$0xff]
    %v2133 = vld [vmem:[#allocation8 + $0xb78] sm:$0xff]
    %v2134 = vld [vmem:[#allocation8 + $0xb80] sm:$0xff]
    %v2135 = vld [vmem:[#allocation8 + $0xb88] sm:$0xff]
    %v2136 = vld [vmem:[#allocation8 + $0xb90] sm:$0xff]
    %v2137 = vld [vmem:[#allocation8 + $0xb98] sm:$0xff]
    %v2138 = vld [vmem:[#allocation8 + $0xba0] sm:$0xff]
    %v2139 = vld [vmem:[#allocation8 + $0xba8] sm:$0xff]
    %v2140 = vld [vmem:[#allocation8 + $0xbb0] sm:$0xff]
    %v2141 = vld [vmem:[#allocation8 + $0xbb8] sm:$0xff]
    %v2142 = vld [vmem:[#allocation8 + $0xbc0] sm:$0xff]
    %v2143 = vld [vmem:[#allocation8 + $0xbc8] sm:$0xff]
    %v2144 = vld [vmem:[#allocation8 + $0xbd0] sm:$0xff]
    %v2145 = vld [vmem:[#allocation8 + $0xbd8] sm:$0xff]
    %v2146 = vld [vmem:[#allocation8 + $0xbe0] sm:$0xff]
    %v2147 = vld [vmem:[#allocation8 + $0xbe8] sm:$0xff]
    %v2148 = vld [vmem:[#allocation8 + $0xbf0] sm:$0xff]
    %v2149 = vld [vmem:[#allocation8 + $0xbf8] sm:$0xff]
    %v2342 = vunpack.c.l.b16 %v1958
    %v2343 = vunpack.c.h.b16 %v1958
    %v2344 = vunpack.c.l.b16 %v1959
    %v2345 = vunpack.c.h.b16 %v1959
    %v2346 = vunpack.c.l.b16 %v1960
    %v2347 = vunpack.c.h.b16 %v1960
    %v2348 = vunpack.c.l.b16 %v1961
    %v2349 = vunpack.c.h.b16 %v1961
    %v2350 = vunpack.c.l.b16 %v1962
    %v2351 = vunpack.c.h.b16 %v1962
    %v2352 = vunpack.c.l.b16 %v1963
    %v2353 = vunpack.c.h.b16 %v1963
    %v2354 = vunpack.c.l.b16 %v1964
    %v2355 = vunpack.c.h.b16 %v1964
    %v2356 = vunpack.c.l.b16 %v1965
    %v2357 = vunpack.c.h.b16 %v1965
    %v2358 = vunpack.c.l.b16 %v1966
    %v2359 = vunpack.c.h.b16 %v1966
    %v2360 = vunpack.c.l.b16 %v1967
    %v2361 = vunpack.c.h.b16 %v1967
    %v2362 = vunpack.c.l.b16 %v1968
    %v2363 = vunpack.c.h.b16 %v1968
    %v2364 = vunpack.c.l.b16 %v1969
    %v2365 = vunpack.c.h.b16 %v1969
    %v2366 = vunpack.c.l.b16 %v1970
    %v2367 = vunpack.c.h.b16 %v1970
    %v2368 = vunpack.c.l.b16 %v1971
    %v2369 = vunpack.c.h.b16 %v1971
    %v2370 = vunpack.c.l.b16 %v1972
    %v2371 = vunpack.c.h.b16 %v1972
    %v2372 = vunpack.c.l.b16 %v1973
    %v2373 = vunpack.c.h.b16 %v1973
    %v2374 = vunpack.c.l.b16 %v1974
    %v2375 = vunpack.c.h.b16 %v1974
    %v2376 = vunpack.c.l.b16 %v1975
    %v2377 = vunpack.c.h.b16 %v1975
    %v2378 = vunpack.c.l.b16 %v1976
    %v2379 = vunpack.c.h.b16 %v1976
    %v2380 = vunpack.c.l.b16 %v1977
    %v2381 = vunpack.c.h.b16 %v1977
    %v2382 = vunpack.c.l.b16 %v1978
    %v2383 = vunpack.c.h.b16 %v1978
    %v2384 = vunpack.c.l.b16 %v1979
    %v2385 = vunpack.c.h.b16 %v1979
    %v2386 = vunpack.c.l.b16 %v1980
    %v2387 = vunpack.c.h.b16 %v1980
    %v2388 = vunpack.c.l.b16 %v1981
    %v2389 = vunpack.c.h.b16 %v1981
    %v2390 = vunpack.c.l.b16 %v1982
    %v2391 = vunpack.c.h.b16 %v1982
    %v2392 = vunpack.c.l.b16 %v1983
    %v2393 = vunpack.c.h.b16 %v1983
    %v2394 = vunpack.c.l.b16 %v1984
    %v2395 = vunpack.c.h.b16 %v1984
    %v2396 = vunpack.c.l.b16 %v1985
    %v2397 = vunpack.c.h.b16 %v1985
    %v2398 = vunpack.c.l.b16 %v1986
    %v2399 = vunpack.c.h.b16 %v1986
    %v2400 = vunpack.c.l.b16 %v1987
    %v2401 = vunpack.c.h.b16 %v1987
    %v2402 = vunpack.c.l.b16 %v1988
    %v2403 = vunpack.c.h.b16 %v1988
    %v2404 = vunpack.c.l.b16 %v1989
    %v2405 = vunpack.c.h.b16 %v1989
    %v2406 = vunpack.c.l.b16 %v1990
    %v2407 = vunpack.c.h.b16 %v1990
    %v2408 = vunpack.c.l.b16 %v1991
    %v2409 = vunpack.c.h.b16 %v1991
    %v2410 = vunpack.c.l.b16 %v1992
    %v2411 = vunpack.c.h.b16 %v1992
    %v2412 = vunpack.c.l.b16 %v1993
    %v2413 = vunpack.c.h.b16 %v1993
    %v2414 = vunpack.c.l.b16 %v1994
    %v2415 = vunpack.c.h.b16 %v1994
    %v2416 = vunpack.c.l.b16 %v1995
    %v2417 = vunpack.c.h.b16 %v1995
    %v2418 = vunpack.c.l.b16 %v1996
    %v2419 = vunpack.c.h.b16 %v1996
    %v2420 = vunpack.c.l.b16 %v1997
    %v2421 = vunpack.c.h.b16 %v1997
    %v2422 = vunpack.c.l.b16 %v1998
    %v2423 = vunpack.c.h.b16 %v1998
    %v2424 = vunpack.c.l.b16 %v1999
    %v2425 = vunpack.c.h.b16 %v1999
    %v2426 = vunpack.c.l.b16 %v2000
    %v2427 = vunpack.c.h.b16 %v2000
    %v2428 = vunpack.c.l.b16 %v2001
    %v2429 = vunpack.c.h.b16 %v2001
    %v2430 = vunpack.c.l.b16 %v2002
    %v2431 = vunpack.c.h.b16 %v2002
    %v2432 = vunpack.c.l.b16 %v2003
    %v2433 = vunpack.c.h.b16 %v2003
    %v2434 = vunpack.c.l.b16 %v2004
    %v2435 = vunpack.c.h.b16 %v2004
    %v2436 = vunpack.c.l.b16 %v2005
    %v2437 = vunpack.c.h.b16 %v2005
    %v2438 = vunpack.c.l.b16 %v2006
    %v2439 = vunpack.c.h.b16 %v2006
    %v2440 = vunpack.c.l.b16 %v2007
    %v2441 = vunpack.c.h.b16 %v2007
    %v2442 = vunpack.c.l.b16 %v2008
    %v2443 = vunpack.c.h.b16 %v2008
    %v2444 = vunpack.c.l.b16 %v2009
    %v2445 = vunpack.c.h.b16 %v2009
    %v2446 = vunpack.c.l.b16 %v2010
    %v2447 = vunpack.c.h.b16 %v2010
    %v2448 = vunpack.c.l.b16 %v2011
    %v2449 = vunpack.c.h.b16 %v2011
    %v2450 = vunpack.c.l.b16 %v2012
    %v2451 = vunpack.c.h.b16 %v2012
    %v2452 = vunpack.c.l.b16 %v2013
    %v2453 = vunpack.c.h.b16 %v2013
    %v2454 = vunpack.c.l.b16 %v2014
    %v2455 = vunpack.c.h.b16 %v2014
    %v2456 = vunpack.c.l.b16 %v2015
    %v2457 = vunpack.c.h.b16 %v2015
    %v2458 = vunpack.c.l.b16 %v2016
    %v2459 = vunpack.c.h.b16 %v2016
    %v2460 = vunpack.c.l.b16 %v2017
    %v2461 = vunpack.c.h.b16 %v2017
    %v2462 = vunpack.c.l.b16 %v2018
    %v2463 = vunpack.c.h.b16 %v2018
    %v2464 = vunpack.c.l.b16 %v2019
    %v2465 = vunpack.c.h.b16 %v2019
    %v2466 = vunpack.c.l.b16 %v2020
    %v2467 = vunpack.c.h.b16 %v2020
    %v2468 = vunpack.c.l.b16 %v2021
    %v2469 = vunpack.c.h.b16 %v2021
    %v2470 = vunpack.c.l.b16 %v2022
    %v2471 = vunpack.c.h.b16 %v2022
    %v2472 = vunpack.c.l.b16 %v2023
    %v2473 = vunpack.c.h.b16 %v2023
    %v2474 = vunpack.c.l.b16 %v2024
    %v2475 = vunpack.c.h.b16 %v2024
    %v2476 = vunpack.c.l.b16 %v2025
    %v2477 = vunpack.c.h.b16 %v2025
    %v2478 = vunpack.c.l.b16 %v2026
    %v2479 = vunpack.c.h.b16 %v2026
    %v2480 = vunpack.c.l.b16 %v2027
    %v2481 = vunpack.c.h.b16 %v2027
    %v2482 = vunpack.c.l.b16 %v2028
    %v2483 = vunpack.c.h.b16 %v2028
    %v2484 = vunpack.c.l.b16 %v2029
    %v2485 = vunpack.c.h.b16 %v2029
    %v2486 = vunpack.c.l.b16 %v2030
    %v2487 = vunpack.c.h.b16 %v2030
    %v2488 = vunpack.c.l.b16 %v2031
    %v2489 = vunpack.c.h.b16 %v2031
    %v2490 = vunpack.c.l.b16 %v2032
    %v2491 = vunpack.c.h.b16 %v2032
    %v2492 = vunpack.c.l.b16 %v2033
    %v2493 = vunpack.c.h.b16 %v2033
    %v2494 = vunpack.c.l.b16 %v2034
    %v2495 = vunpack.c.h.b16 %v2034
    %v2496 = vunpack.c.l.b16 %v2035
    %v2497 = vunpack.c.h.b16 %v2035
    %v2498 = vunpack.c.l.b16 %v2036
    %v2499 = vunpack.c.h.b16 %v2036
    %v2500 = vunpack.c.l.b16 %v2037
    %v2501 = vunpack.c.h.b16 %v2037
    %v2502 = vunpack.c.l.b16 %v2038
    %v2503 = vunpack.c.h.b16 %v2038
    %v2504 = vunpack.c.l.b16 %v2039
    %v2505 = vunpack.c.h.b16 %v2039
    %v2506 = vunpack.c.l.b16 %v2040
    %v2507 = vunpack.c.h.b16 %v2040
    %v2508 = vunpack.c.l.b16 %v2041
    %v2509 = vunpack.c.h.b16 %v2041
    %v2510 = vunpack.c.l.b16 %v2042
    %v2511 = vunpack.c.h.b16 %v2042
    %v2512 = vunpack.c.l.b16 %v2043
    %v2513 = vunpack.c.h.b16 %v2043
    %v2514 = vunpack.c.l.b16 %v2044
    %v2515 = vunpack.c.h.b16 %v2044
    %v2516 = vunpack.c.l.b16 %v2045
    %v2517 = vunpack.c.h.b16 %v2045
    %v2518 = vunpack.c.l.b16 %v2046
    %v2519 = vunpack.c.h.b16 %v2046
    %v2520 = vunpack.c.l.b16 %v2047
    %v2521 = vunpack.c.h.b16 %v2047
    %v2522 = vunpack.c.l.b16 %v2048
    %v2523 = vunpack.c.h.b16 %v2048
    %v2524 = vunpack.c.l.b16 %v2049
    %v2525 = vunpack.c.h.b16 %v2049
    %v2526 = vunpack.c.l.b16 %v2050
    %v2527 = vunpack.c.h.b16 %v2050
    %v2528 = vunpack.c.l.b16 %v2051
    %v2529 = vunpack.c.h.b16 %v2051
    %v2530 = vunpack.c.l.b16 %v2052
    %v2531 = vunpack.c.h.b16 %v2052
    %v2532 = vunpack.c.l.b16 %v2053
    %v2533 = vunpack.c.h.b16 %v2053
    %v2534 = vunpack.c.l.b16 %v2054
    %v2535 = vunpack.c.h.b16 %v2054
    %v2536 = vunpack.c.l.b16 %v2055
    %v2537 = vunpack.c.h.b16 %v2055
    %v2538 = vunpack.c.l.b16 %v2056
    %v2539 = vunpack.c.h.b16 %v2056
    %v2540 = vunpack.c.l.b16 %v2057
    %v2541 = vunpack.c.h.b16 %v2057
    %v2542 = vunpack.c.l.b16 %v2058
    %v2543 = vunpack.c.h.b16 %v2058
    %v2544 = vunpack.c.l.b16 %v2059
    %v2545 = vunpack.c.h.b16 %v2059
    %v2546 = vunpack.c.l.b16 %v2060
    %v2547 = vunpack.c.h.b16 %v2060
    %v2548 = vunpack.c.l.b16 %v2061
    %v2549 = vunpack.c.h.b16 %v2061
    %v2550 = vunpack.c.l.b16 %v2062
    %v2551 = vunpack.c.h.b16 %v2062
    %v2552 = vunpack.c.l.b16 %v2063
    %v2553 = vunpack.c.h.b16 %v2063
    %v2554 = vunpack.c.l.b16 %v2064
    %v2555 = vunpack.c.h.b16 %v2064
    %v2556 = vunpack.c.l.b16 %v2065
    %v2557 = vunpack.c.h.b16 %v2065
    %v2558 = vunpack.c.l.b16 %v2066
    %v2559 = vunpack.c.h.b16 %v2066
    %v2560 = vunpack.c.l.b16 %v2067
    %v2561 = vunpack.c.h.b16 %v2067
    %v2562 = vunpack.c.l.b16 %v2068
    %v2563 = vunpack.c.h.b16 %v2068
    %v2564 = vunpack.c.l.b16 %v2069
    %v2565 = vunpack.c.h.b16 %v2069
    %v2566 = vunpack.c.l.b16 %v2070
    %v2567 = vunpack.c.h.b16 %v2070
    %v2568 = vunpack.c.l.b16 %v2071
    %v2569 = vunpack.c.h.b16 %v2071
    %v2570 = vunpack.c.l.b16 %v2072
    %v2571 = vunpack.c.h.b16 %v2072
    %v2572 = vunpack.c.l.b16 %v2073
    %v2573 = vunpack.c.h.b16 %v2073
    %v2574 = vunpack.c.l.b16 %v2074
    %v2575 = vunpack.c.h.b16 %v2074
    %v2576 = vunpack.c.l.b16 %v2075
    %v2577 = vunpack.c.h.b16 %v2075
    %v2578 = vunpack.c.l.b16 %v2076
    %v2579 = vunpack.c.h.b16 %v2076
    %v2580 = vunpack.c.l.b16 %v2077
    %v2581 = vunpack.c.h.b16 %v2077
    %v2582 = vunpack.c.l.b16 %v2078
    %v2583 = vunpack.c.h.b16 %v2078
    %v2584 = vunpack.c.l.b16 %v2079
    %v2585 = vunpack.c.h.b16 %v2079
    %v2586 = vunpack.c.l.b16 %v2080
    %v2587 = vunpack.c.h.b16 %v2080
    %v2588 = vunpack.c.l.b16 %v2081
    %v2589 = vunpack.c.h.b16 %v2081
    %v2590 = vunpack.c.l.b16 %v2082
    %v2591 = vunpack.c.h.b16 %v2082
    %v2592 = vunpack.c.l.b16 %v2083
    %v2593 = vunpack.c.h.b16 %v2083
    %v2594 = vunpack.c.l.b16 %v2084
    %v2595 = vunpack.c.h.b16 %v2084
    %v2596 = vunpack.c.l.b16 %v2085
    %v2597 = vunpack.c.h.b16 %v2085
    %v2598 = vunpack.c.l.b16 %v2086
    %v2599 = vunpack.c.h.b16 %v2086
    %v2600 = vunpack.c.l.b16 %v2087
    %v2601 = vunpack.c.h.b16 %v2087
    %v2602 = vunpack.c.l.b16 %v2088
    %v2603 = vunpack.c.h.b16 %v2088
    %v2604 = vunpack.c.l.b16 %v2089
    %v2605 = vunpack.c.h.b16 %v2089
    %v2606 = vunpack.c.l.b16 %v2090
    %v2607 = vunpack.c.h.b16 %v2090
    %v2608 = vunpack.c.l.b16 %v2091
    %v2609 = vunpack.c.h.b16 %v2091
    %v2610 = vunpack.c.l.b16 %v2092
    %v2611 = vunpack.c.h.b16 %v2092
    %v2612 = vunpack.c.l.b16 %v2093
    %v2613 = vunpack.c.h.b16 %v2093
    %v2614 = vunpack.c.l.b16 %v2094
    %v2615 = vunpack.c.h.b16 %v2094
    %v2616 = vunpack.c.l.b16 %v2095
    %v2617 = vunpack.c.h.b16 %v2095
    %v2618 = vunpack.c.l.b16 %v2096
    %v2619 = vunpack.c.h.b16 %v2096
    %v2620 = vunpack.c.l.b16 %v2097
    %v2621 = vunpack.c.h.b16 %v2097
    %v2622 = vunpack.c.l.b16 %v2098
    %v2623 = vunpack.c.h.b16 %v2098
    %v2624 = vunpack.c.l.b16 %v2099
    %v2625 = vunpack.c.h.b16 %v2099
    %v2626 = vunpack.c.l.b16 %v2100
    %v2627 = vunpack.c.h.b16 %v2100
    %v2628 = vunpack.c.l.b16 %v2101
    %v2629 = vunpack.c.h.b16 %v2101
    %v2630 = vunpack.c.l.b16 %v2102
    %v2631 = vunpack.c.h.b16 %v2102
    %v2632 = vunpack.c.l.b16 %v2103
    %v2633 = vunpack.c.h.b16 %v2103
    %v2634 = vunpack.c.l.b16 %v2104
    %v2635 = vunpack.c.h.b16 %v2104
    %v2636 = vunpack.c.l.b16 %v2105
    %v2637 = vunpack.c.h.b16 %v2105
    %v2638 = vunpack.c.l.b16 %v2106
    %v2639 = vunpack.c.h.b16 %v2106
    %v2640 = vunpack.c.l.b16 %v2107
    %v2641 = vunpack.c.h.b16 %v2107
    %v2642 = vunpack.c.l.b16 %v2108
    %v2643 = vunpack.c.h.b16 %v2108
    %v2644 = vunpack.c.l.b16 %v2109
    %v2645 = vunpack.c.h.b16 %v2109
    %v2646 = vunpack.c.l.b16 %v2110
    %v2647 = vunpack.c.h.b16 %v2110
    %v2648 = vunpack.c.l.b16 %v2111
    %v2649 = vunpack.c.h.b16 %v2111
    %v2650 = vunpack.c.l.b16 %v2112
    %v2651 = vunpack.c.h.b16 %v2112
    %v2652 = vunpack.c.l.b16 %v2113
    %v2653 = vunpack.c.h.b16 %v2113
    %v2654 = vunpack.c.l.b16 %v2114
    %v2655 = vunpack.c.h.b16 %v2114
    %v2656 = vunpack.c.l.b16 %v2115
    %v2657 = vunpack.c.h.b16 %v2115
    %v2658 = vunpack.c.l.b16 %v2116
    %v2659 = vunpack.c.h.b16 %v2116
    %v2660 = vunpack.c.l.b16 %v2117
    %v2661 = vunpack.c.h.b16 %v2117
    %v2662 = vunpack.c.l.b16 %v2118
    %v2663 = vunpack.c.h.b16 %v2118
    %v2664 = vunpack.c.l.b16 %v2119
    %v2665 = vunpack.c.h.b16 %v2119
    %v2666 = vunpack.c.l.b16 %v2120
    %v2667 = vunpack.c.h.b16 %v2120
    %v2668 = vunpack.c.l.b16 %v2121
    %v2669 = vunpack.c.h.b16 %v2121
    %v2670 = vunpack.c.l.b16 %v2122
    %v2671 = vunpack.c.h.b16 %v2122
    %v2672 = vunpack.c.l.b16 %v2123
    %v2673 = vunpack.c.h.b16 %v2123
    %v2674 = vunpack.c.l.b16 %v2124
    %v2675 = vunpack.c.h.b16 %v2124
    %v2676 = vunpack.c.l.b16 %v2125
    %v2677 = vunpack.c.h.b16 %v2125
    %v2678 = vunpack.c.l.b16 %v2126
    %v2679 = vunpack.c.h.b16 %v2126
    %v2680 = vunpack.c.l.b16 %v2127
    %v2681 = vunpack.c.h.b16 %v2127
    %v2682 = vunpack.c.l.b16 %v2128
    %v2683 = vunpack.c.h.b16 %v2128
    %v2684 = vunpack.c.l.b16 %v2129
    %v2685 = vunpack.c.h.b16 %v2129
    %v2686 = vunpack.c.l.b16 %v2130
    %v2687 = vunpack.c.h.b16 %v2130
    %v2688 = vunpack.c.l.b16 %v2131
    %v2689 = vunpack.c.h.b16 %v2131
    %v2690 = vunpack.c.l.b16 %v2132
    %v2691 = vunpack.c.h.b16 %v2132
    %v2692 = vunpack.c.l.b16 %v2133
    %v2693 = vunpack.c.h.b16 %v2133
    %v2694 = vunpack.c.l.b16 %v2134
    %v2695 = vunpack.c.h.b16 %v2134
    %v2696 = vunpack.c.l.b16 %v2135
    %v2697 = vunpack.c.h.b16 %v2135
    %v2698 = vunpack.c.l.b16 %v2136
    %v2699 = vunpack.c.h.b16 %v2136
    %v2700 = vunpack.c.l.b16 %v2137
    %v2701 = vunpack.c.h.b16 %v2137
    %v2702 = vunpack.c.l.b16 %v2138
    %v2703 = vunpack.c.h.b16 %v2138
    %v2704 = vunpack.c.l.b16 %v2139
    %v2705 = vunpack.c.h.b16 %v2139
    %v2706 = vunpack.c.l.b16 %v2140
    %v2707 = vunpack.c.h.b16 %v2140
    %v2708 = vunpack.c.l.b16 %v2141
    %v2709 = vunpack.c.h.b16 %v2141
    %v2710 = vunpack.c.l.b16 %v2142
    %v2711 = vunpack.c.h.b16 %v2142
    %v2712 = vunpack.c.l.b16 %v2143
    %v2713 = vunpack.c.h.b16 %v2143
    %v2714 = vunpack.c.l.b16 %v2144
    %v2715 = vunpack.c.h.b16 %v2144
    %v2716 = vunpack.c.l.b16 %v2145
    %v2717 = vunpack.c.h.b16 %v2145
    %v2718 = vunpack.c.l.b16 %v2146
    %v2719 = vunpack.c.h.b16 %v2146
    %v2720 = vunpack.c.l.b16 %v2147
    %v2721 = vunpack.c.h.b16 %v2147
    %v2722 = vunpack.c.l.b16 %v2148
    %v2723 = vunpack.c.h.b16 %v2148
    %v2724 = vunpack.c.l.b16 %v2149
    %v2725 = vunpack.c.h.b16 %v2149
    %v2726 = vpack.c.b16 %v2346, %v2342
    %v2727 = vpack.c.b16 %v2347, %v2343
    %v2728 = vpack.c.b16 %v2348, %v2344
    %v2729 = vpack.c.b16 %v2349, %v2345
    %v2730 = vpack.c.b16 %v2354, %v2350
    %v2731 = vpack.c.b16 %v2355, %v2351
    %v2732 = vpack.c.b16 %v2356, %v2352
    %v2733 = vpack.c.b16 %v2357, %v2353
    %v2734 = vpack.c.b16 %v2362, %v2358
    %v2735 = vpack.c.b16 %v2363, %v2359
    %v2736 = vpack.c.b16 %v2364, %v2360
    %v2737 = vpack.c.b16 %v2365, %v2361
    %v2738 = vpack.c.b16 %v2370, %v2366
    %v2739 = vpack.c.b16 %v2371, %v2367
    %v2740 = vpack.c.b16 %v2372, %v2368
    %v2741 = vpack.c.b16 %v2373, %v2369
    %v2742 = vpack.c.b16 %v2378, %v2374
    %v2743 = vpack.c.b16 %v2379, %v2375
    %v2744 = vpack.c.b16 %v2380, %v2376
    %v2745 = vpack.c.b16 %v2381, %v2377
    %v2746 = vpack.c.b16 %v2386, %v2382
    %v2747 = vpack.c.b16 %v2387, %v2383
    %v2748 = vpack.c.b16 %v2388, %v2384
    %v2749 = vpack.c.b16 %v2389, %v2385
    %v2750 = vpack.c.b16 %v2394, %v2390
    %v2751 = vpack.c.b16 %v2395, %v2391
    %v2752 = vpack.c.b16 %v2396, %v2392
    %v2753 = vpack.c.b16 %v2397, %v2393
    %v2754 = vpack.c.b16 %v2402, %v2398
    %v2755 = vpack.c.b16 %v2403, %v2399
    %v2756 = vpack.c.b16 %v2404, %v2400
    %v2757 = vpack.c.b16 %v2405, %v2401
    %v2758 = vpack.c.b16 %v2410, %v2406
    %v2759 = vpack.c.b16 %v2411, %v2407
    %v2760 = vpack.c.b16 %v2412, %v2408
    %v2761 = vpack.c.b16 %v2413, %v2409
    %v2762 = vpack.c.b16 %v2418, %v2414
    %v2763 = vpack.c.b16 %v2419, %v2415
    %v2764 = vpack.c.b16 %v2420, %v2416
    %v2765 = vpack.c.b16 %v2421, %v2417
    %v2766 = vpack.c.b16 %v2426, %v2422
    %v2767 = vpack.c.b16 %v2427, %v2423
    %v2768 = vpack.c.b16 %v2428, %v2424
    %v2769 = vpack.c.b16 %v2429, %v2425
    %v2770 = vpack.c.b16 %v2434, %v2430
    %v2771 = vpack.c.b16 %v2435, %v2431
    %v2772 = vpack.c.b16 %v2436, %v2432
    %v2773 = vpack.c.b16 %v2437, %v2433
    %v2774 = vpack.c.b16 %v2442, %v2438
    %v2775 = vpack.c.b16 %v2443, %v2439
    %v2776 = vpack.c.b16 %v2444, %v2440
    %v2777 = vpack.c.b16 %v2445, %v2441
    %v2778 = vpack.c.b16 %v2450, %v2446
    %v2779 = vpack.c.b16 %v2451, %v2447
    %v2780 = vpack.c.b16 %v2452, %v2448
    %v2781 = vpack.c.b16 %v2453, %v2449
    %v2782 = vpack.c.b16 %v2458, %v2454
    %v2783 = vpack.c.b16 %v2459, %v2455
    %v2784 = vpack.c.b16 %v2460, %v2456
    %v2785 = vpack.c.b16 %v2461, %v2457
    %v2786 = vpack.c.b16 %v2466, %v2462
    %v2787 = vpack.c.b16 %v2467, %v2463
    %v2788 = vpack.c.b16 %v2468, %v2464
    %v2789 = vpack.c.b16 %v2469, %v2465
    %v2790 = vpack.c.b16 %v2474, %v2470
    %v2791 = vpack.c.b16 %v2475, %v2471
    %v2792 = vpack.c.b16 %v2476, %v2472
    %v2793 = vpack.c.b16 %v2477, %v2473
    %v2794 = vpack.c.b16 %v2482, %v2478
    %v2795 = vpack.c.b16 %v2483, %v2479
    %v2796 = vpack.c.b16 %v2484, %v2480
    %v2797 = vpack.c.b16 %v2485, %v2481
    %v2798 = vpack.c.b16 %v2490, %v2486
    %v2799 = vpack.c.b16 %v2491, %v2487
    %v2800 = vpack.c.b16 %v2492, %v2488
    %v2801 = vpack.c.b16 %v2493, %v2489
    %v2802 = vpack.c.b16 %v2498, %v2494
    %v2803 = vpack.c.b16 %v2499, %v2495
    %v2804 = vpack.c.b16 %v2500, %v2496
    %v2805 = vpack.c.b16 %v2501, %v2497
    %v2806 = vpack.c.b16 %v2506, %v2502
    %v2807 = vpack.c.b16 %v2507, %v2503
    %v2808 = vpack.c.b16 %v2508, %v2504
    %v2809 = vpack.c.b16 %v2509, %v2505
    %v2810 = vpack.c.b16 %v2514, %v2510
    %v2811 = vpack.c.b16 %v2515, %v2511
    %v2812 = vpack.c.b16 %v2516, %v2512
    %v2813 = vpack.c.b16 %v2517, %v2513
    %v2814 = vpack.c.b16 %v2522, %v2518
    %v2815 = vpack.c.b16 %v2523, %v2519
    %v2816 = vpack.c.b16 %v2524, %v2520
    %v2817 = vpack.c.b16 %v2525, %v2521
    %v2818 = vpack.c.b16 %v2530, %v2526
    %v2819 = vpack.c.b16 %v2531, %v2527
    %v2820 = vpack.c.b16 %v2532, %v2528
    %v2821 = vpack.c.b16 %v2533, %v2529
    %v2822 = vpack.c.b16 %v2538, %v2534
    %v2823 = vpack.c.b16 %v2539, %v2535
    %v2824 = vpack.c.b16 %v2540, %v2536
    %v2825 = vpack.c.b16 %v2541, %v2537
    %v2826 = vpack.c.b16 %v2546, %v2542
    %v2827 = vpack.c.b16 %v2547, %v2543
    %v2828 = vpack.c.b16 %v2548, %v2544
    %v2829 = vpack.c.b16 %v2549, %v2545
    %v2830 = vpack.c.b16 %v2554, %v2550
    %v2831 = vpack.c.b16 %v2555, %v2551
    %v2832 = vpack.c.b16 %v2556, %v2552
    %v2833 = vpack.c.b16 %v2557, %v2553
    %v2834 = vpack.c.b16 %v2562, %v2558
    %v2835 = vpack.c.b16 %v2563, %v2559
    %v2836 = vpack.c.b16 %v2564, %v2560
    %v2837 = vpack.c.b16 %v2565, %v2561
    %v2838 = vpack.c.b16 %v2570, %v2566
    %v2839 = vpack.c.b16 %v2571, %v2567
    %v2840 = vpack.c.b16 %v2572, %v2568
    %v2841 = vpack.c.b16 %v2573, %v2569
    %v2842 = vpack.c.b16 %v2578, %v2574
    %v2843 = vpack.c.b16 %v2579, %v2575
    %v2844 = vpack.c.b16 %v2580, %v2576
    %v2845 = vpack.c.b16 %v2581, %v2577
    %v2846 = vpack.c.b16 %v2586, %v2582
    %v2847 = vpack.c.b16 %v2587, %v2583
    %v2848 = vpack.c.b16 %v2588, %v2584
    %v2849 = vpack.c.b16 %v2589, %v2585
    %v2850 = vpack.c.b16 %v2594, %v2590
    %v2851 = vpack.c.b16 %v2595, %v2591
    %v2852 = vpack.c.b16 %v2596, %v2592
    %v2853 = vpack.c.b16 %v2597, %v2593
    %v2854 = vpack.c.b16 %v2602, %v2598
    %v2855 = vpack.c.b16 %v2603, %v2599
    %v2856 = vpack.c.b16 %v2604, %v2600
    %v2857 = vpack.c.b16 %v2605, %v2601
    %v2858 = vpack.c.b16 %v2610, %v2606
    %v2859 = vpack.c.b16 %v2611, %v2607
    %v2860 = vpack.c.b16 %v2612, %v2608
    %v2861 = vpack.c.b16 %v2613, %v2609
    %v2862 = vpack.c.b16 %v2618, %v2614
    %v2863 = vpack.c.b16 %v2619, %v2615
    %v2864 = vpack.c.b16 %v2620, %v2616
    %v2865 = vpack.c.b16 %v2621, %v2617
    %v2866 = vpack.c.b16 %v2626, %v2622
    %v2867 = vpack.c.b16 %v2627, %v2623
    %v2868 = vpack.c.b16 %v2628, %v2624
    %v2869 = vpack.c.b16 %v2629, %v2625
    %v2870 = vpack.c.b16 %v2634, %v2630
    %v2871 = vpack.c.b16 %v2635, %v2631
    %v2872 = vpack.c.b16 %v2636, %v2632
    %v2873 = vpack.c.b16 %v2637, %v2633
    %v2874 = vpack.c.b16 %v2642, %v2638
    %v2875 = vpack.c.b16 %v2643, %v2639
    %v2876 = vpack.c.b16 %v2644, %v2640
    %v2877 = vpack.c.b16 %v2645, %v2641
    %v2878 = vpack.c.b16 %v2650, %v2646
    %v2879 = vpack.c.b16 %v2651, %v2647
    %v2880 = vpack.c.b16 %v2652, %v2648
    %v2881 = vpack.c.b16 %v2653, %v2649
    %v2882 = vpack.c.b16 %v2658, %v2654
    %v2883 = vpack.c.b16 %v2659, %v2655
    %v2884 = vpack.c.b16 %v2660, %v2656
    %v2885 = vpack.c.b16 %v2661, %v2657
    %v2886 = vpack.c.b16 %v2666, %v2662
    %v2887 = vpack.c.b16 %v2667, %v2663
    %v2888 = vpack.c.b16 %v2668, %v2664
    %v2889 = vpack.c.b16 %v2669, %v2665
    %v2890 = vpack.c.b16 %v2674, %v2670
    %v2891 = vpack.c.b16 %v2675, %v2671
    %v2892 = vpack.c.b16 %v2676, %v2672
    %v2893 = vpack.c.b16 %v2677, %v2673
    %v2894 = vpack.c.b16 %v2682, %v2678
    %v2895 = vpack.c.b16 %v2683, %v2679
    %v2896 = vpack.c.b16 %v2684, %v2680
    %v2897 = vpack.c.b16 %v2685, %v2681
    %v2898 = vpack.c.b16 %v2690, %v2686
    %v2899 = vpack.c.b16 %v2691, %v2687
    %v2900 = vpack.c.b16 %v2692, %v2688
    %v2901 = vpack.c.b16 %v2693, %v2689
    %v2902 = vpack.c.b16 %v2698, %v2694
    %v2903 = vpack.c.b16 %v2699, %v2695
    %v2904 = vpack.c.b16 %v2700, %v2696
    %v2905 = vpack.c.b16 %v2701, %v2697
    %v2906 = vpack.c.b16 %v2706, %v2702
    %v2907 = vpack.c.b16 %v2707, %v2703
    %v2908 = vpack.c.b16 %v2708, %v2704
    %v2909 = vpack.c.b16 %v2709, %v2705
    %v2910 = vpack.c.b16 %v2714, %v2710
    %v2911 = vpack.c.b16 %v2715, %v2711
    %v2912 = vpack.c.b16 %v2716, %v2712
    %v2913 = vpack.c.b16 %v2717, %v2713
    %v2914 = vpack.c.b16 %v2722, %v2718
    %v2915 = vpack.c.b16 %v2723, %v2719
    %v2916 = vpack.c.b16 %v2724, %v2720
    %v2917 = vpack.c.b16 %v2725, %v2721
    %3110 = vmatprep.subr.bf16.mxu0 %v2727
    %3111 = vmatpush1.bf16.msra.mxu0 %v2726
    %3112 = vmatprep.subr.bf16.mxu0 %v2731
    %3113 = vmatpush1.bf16.msra.mxu0 %v2730
    %3114 = vmatprep.subr.bf16.mxu0 %v2735
    %3115 = vmatpush1.bf16.msra.mxu0 %v2734
    %3116 = vmatprep.subr.bf16.mxu0 %v2739
    %3117 = vmatpush1.bf16.msra.mxu0 %v2738
    %3118 = vmatprep.subr.bf16.mxu0 %v2743
    %3119 = vmatpush1.bf16.msra.mxu0 %v2742
    %3120 = vmatprep.subr.bf16.mxu0 %v2747
    %3121 = vmatpush1.bf16.msra.mxu0 %v2746
    %3122 = vmatprep.subr.bf16.mxu0 %v2751
    %3123 = vmatpush1.bf16.msra.mxu0 %v2750
    %3124 = vmatprep.subr.bf16.mxu0 %v2755
    %3125 = vmatpush1.bf16.msra.mxu0 %v2754
    %3126 = vmatprep.subr.bf16.mxu0 %v2759
    %3127 = vmatpush1.bf16.msra.mxu0 %v2758
    %3128 = vmatprep.subr.bf16.mxu0 %v2763
    %3129 = vmatpush1.bf16.msra.mxu0 %v2762
    %3130 = vmatprep.subr.bf16.mxu0 %v2767
    %3131 = vmatpush1.bf16.msra.mxu0 %v2766
    %3132 = vmatprep.subr.bf16.mxu0 %v2771
    %3133 = vmatpush1.bf16.msra.mxu0 %v2770
    %3134 = vmatprep.subr.bf16.mxu0 %v2775
    %3135 = vmatpush1.bf16.msra.mxu0 %v2774
    %3136 = vmatprep.subr.bf16.mxu0 %v2779
    %3137 = vmatpush1.bf16.msra.mxu0 %v2778
    %3138 = vmatprep.subr.bf16.mxu0 %v2783
    %3139 = vmatpush1.bf16.msra.mxu0 %v2782
    %3140 = vmatprep.subr.bf16.mxu0 %v2787
    %3141 = vmatpush1.bf16.msra.mxu0 %v2786
    %3142 = vmatprep.mubr.bf16.mxu0 %v1953
    %3143 = vmatmul.mubr.bf16.gmra.mrb[0].mxu0 %v1952
    %v3144 = vpop.f32.mrb[0].mxu0
    %v3145 = vadd.f32 0.0, %v3144
    %v3146 = vpop.f32.mrb[0].mxu0
    %v3147 = vadd.f32 0.0, %v3146
    %v3148 = vpop.f32.mrb[0].mxu0
    %v3149 = vpop.f32.mrb[0].mxu0
    %3150 = vdwg.mxu0
    %3151 = vmatprep.subr.bf16.mxu0 %v2791
    %3152 = vmatpush1.bf16.msra.mxu0 %v2790
    %3153 = vmatprep.subr.bf16.mxu0 %v2795
    %3154 = vmatpush1.bf16.msra.mxu0 %v2794
    %3155 = vmatprep.subr.bf16.mxu0 %v2799
    %3156 = vmatpush1.bf16.msra.mxu0 %v2798
    %3157 = vmatprep.subr.bf16.mxu0 %v2803
    %3158 = vmatpush1.bf16.msra.mxu0 %v2802
    %3159 = vmatprep.subr.bf16.mxu0 %v2807
    %3160 = vmatpush1.bf16.msra.mxu0 %v2806
    %3161 = vmatprep.subr.bf16.mxu0 %v2811
    %3162 = vmatpush1.bf16.msra.mxu0 %v2810
    %3163 = vmatprep.subr.bf16.mxu0 %v2815
    %3164 = vmatpush1.bf16.msra.mxu0 %v2814
    %3165 = vmatprep.subr.bf16.mxu0 %v2819
    %3166 = vmatpush1.bf16.msra.mxu0 %v2818
    %3167 = vmatprep.subr.bf16.mxu0 %v2823
    %3168 = vmatpush1.bf16.msra.mxu0 %v2822
    %3169 = vmatprep.subr.bf16.mxu0 %v2827
    %3170 = vmatpush1.bf16.msra.mxu0 %v2826
    %3171 = vmatprep.subr.bf16.mxu0 %v2831
    %3172 = vmatpush1.bf16.msra.mxu0 %v2830
    %3173 = vmatprep.subr.bf16.mxu0 %v2835
    %3174 = vmatpush1.bf16.msra.mxu0 %v2834
    %3175 = vmatprep.subr.bf16.mxu0 %v2839
    %3176 = vmatpush1.bf16.msra.mxu0 %v2838
    %3177 = vmatprep.subr.bf16.mxu0 %v2843
    %3178 = vmatpush1.bf16.msra.mxu0 %v2842
    %3179 = vmatprep.subr.bf16.mxu0 %v2847
    %3180 = vmatpush1.bf16.msra.mxu0 %v2846
    %3181 = vmatprep.subr.bf16.mxu0 %v2851
    %3182 = vmatpush1.bf16.msra.mxu0 %v2850
    %3183 = vmatprep.mubr.bf16.mxu0 %v1955
    %3184 = vmatmul.mubr.bf16.gmra.mrb[0].mxu0 %v1954
    %v3185 = vpop.f32.mrb[0].mxu0
    %v3186 = vadd.f32 %v3145, %v3185
    %v3187 = vpop.f32.mrb[0].mxu0
    %v3188 = vadd.f32 %v3147, %v3187
    %v3189 = vpop.f32.mrb[0].mxu0
    %v3190 = vpop.f32.mrb[0].mxu0
    %3191 = vdwg.mxu0
    %3192 = vmatprep.subr.bf16.mxu0 %v2855
    %3193 = vmatpush1.bf16.msra.mxu0 %v2854
    %3194 = vmatprep.subr.bf16.mxu0 %v2859
    %3195 = vmatpush1.bf16.msra.mxu0 %v2858
    %3196 = vmatprep.subr.bf16.mxu0 %v2863
    %3197 = vmatpush1.bf16.msra.mxu0 %v2862
    %3198 = vmatprep.subr.bf16.mxu0 %v2867
    %3199 = vmatpush1.bf16.msra.mxu0 %v2866
    %3200 = vmatprep.subr.bf16.mxu0 %v2871
    %3201 = vmatpush1.bf16.msra.mxu0 %v2870
    %3202 = vmatprep.subr.bf16.mxu0 %v2875
    %3203 = vmatpush1.bf16.msra.mxu0 %v2874
    %3204 = vmatprep.subr.bf16.mxu0 %v2879
    %3205 = vmatpush1.bf16.msra.mxu0 %v2878
    %3206 = vmatprep.subr.bf16.mxu0 %v2883
    %3207 = vmatpush1.bf16.msra.mxu0 %v2882
    %3208 = vmatprep.subr.bf16.mxu0 %v2887
    %3209 = vmatpush1.bf16.msra.mxu0 %v2886
    %3210 = vmatprep.subr.bf16.mxu0 %v2891
    %3211 = vmatpush1.bf16.msra.mxu0 %v2890
    %3212 = vmatprep.subr.bf16.mxu0 %v2895
    %3213 = vmatpush1.bf16.msra.mxu0 %v2894
    %3214 = vmatprep.subr.bf16.mxu0 %v2899
    %3215 = vmatpush1.bf16.msra.mxu0 %v2898
    %3216 = vmatprep.subr.bf16.mxu0 %v2903
    %3217 = vmatpush1.bf16.msra.mxu0 %v2902
    %3218 = vmatprep.subr.bf16.mxu0 %v2907
    %3219 = vmatpush1.bf16.msra.mxu0 %v2906
    %3220 = vmatprep.subr.bf16.mxu0 %v2911
    %3221 = vmatpush1.bf16.msra.mxu0 %v2910
    %3222 = vmatprep.subr.bf16.mxu0 %v2915
    %3223 = vmatpush1.bf16.msra.mxu0 %v2914
    %3224 = vmatprep.mubr.bf16.mxu0 %v1957
    %3225 = vmatmul.mubr.bf16.gmra.mrb[0].mxu0 %v1956
    %v3226 = vpop.f32.mrb[0].mxu0
    %v3227 = vadd.f32 %v3186, %v3226
    %v3228 = vpop.f32.mrb[0].mxu0
    %v3229 = vadd.f32 %v3188, %v3228
    %v3230 = vpop.f32.mrb[0].mxu0
    %v3231 = vpop.f32.mrb[0].mxu0
    %3232 = vdwg.mxu0
    %3233 = vmatprep.subr.bf16.mxu0 %v2729
    %3234 = vmatpush1.bf16.msra.mxu0 %v2728
    %3235 = vmatprep.subr.bf16.mxu0 %v2733
    %3236 = vmatpush1.bf16.msra.mxu0 %v2732
    %3237 = vmatprep.subr.bf16.mxu0 %v2737
    %3238 = vmatpush1.bf16.msra.mxu0 %v2736
    %3239 = vmatprep.subr.bf16.mxu0 %v2741
    %3240 = vmatpush1.bf16.msra.mxu0 %v2740
    %3241 = vmatprep.subr.bf16.mxu0 %v2745
    %3242 = vmatpush1.bf16.msra.mxu0 %v2744
    %3243 = vmatprep.subr.bf16.mxu0 %v2749
    %3244 = vmatpush1.bf16.msra.mxu0 %v2748
    %3245 = vmatprep.subr.bf16.mxu0 %v2753
    %3246 = vmatpush1.bf16.msra.mxu0 %v2752
    %3247 = vmatprep.subr.bf16.mxu0 %v2757
    %3248 = vmatpush1.bf16.msra.mxu0 %v2756
    %3249 = vmatprep.subr.bf16.mxu0 %v2761
    %3250 = vmatpush1.bf16.msra.mxu0 %v2760
    %3251 = vmatprep.subr.bf16.mxu0 %v2765
    %3252 = vmatpush1.bf16.msra.mxu0 %v2764
    %3253 = vmatprep.subr.bf16.mxu0 %v2769
    %3254 = vmatpush1.bf16.msra.mxu0 %v2768
    %3255 = vmatprep.subr.bf16.mxu0 %v2773
    %3256 = vmatpush1.bf16.msra.mxu0 %v2772
    %3257 = vmatprep.subr.bf16.mxu0 %v2777
    %3258 = vmatpush1.bf16.msra.mxu0 %v2776
    %3259 = vmatprep.subr.bf16.mxu0 %v2781
    %3260 = vmatpush1.bf16.msra.mxu0 %v2780
    %3261 = vmatprep.subr.bf16.mxu0 %v2785
    %3262 = vmatpush1.bf16.msra.mxu0 %v2784
    %3263 = vmatprep.subr.bf16.mxu0 %v2789
    %3264 = vmatpush1.bf16.msra.mxu0 %v2788
    %3265 = vmatprep.mubr.bf16.mxu0 %v1953
    %3266 = vmatmul.mubr.bf16.gmra.mrb[0].mxu0 %v1952
    %v3267 = vpop.f32.mrb[0].mxu0
    %v3268 = vadd.f32 0.0, %v3267
    %v3269 = vpop.f32.mrb[0].mxu0
    %v3270 = vadd.f32 0.0, %v3269
    %v3271 = vpop.f32.mrb[0].mxu0
    %v3272 = vpop.f32.mrb[0].mxu0
    %3273 = vdwg.mxu0
    %3274 = vmatprep.subr.bf16.mxu0 %v2793
    %3275 = vmatpush1.bf16.msra.mxu0 %v2792
    %3276 = vmatprep.subr.bf16.mxu0 %v2797
    %3277 = vmatpush1.bf16.msra.mxu0 %v2796
    %3278 = vmatprep.subr.bf16.mxu0 %v2801
    %3279 = vmatpush1.bf16.msra.mxu0 %v2800
    %3280 = vmatprep.subr.bf16.mxu0 %v2805
    %3281 = vmatpush1.bf16.msra.mxu0 %v2804
    %3282 = vmatprep.subr.bf16.mxu0 %v2809
    %3283 = vmatpush1.bf16.msra.mxu0 %v2808
    %3284 = vmatprep.subr.bf16.mxu0 %v2813
    %3285 = vmatpush1.bf16.msra.mxu0 %v2812
    %3286 = vmatprep.subr.bf16.mxu0 %v2817
    %3287 = vmatpush1.bf16.msra.mxu0 %v2816
    %3288 = vmatprep.subr.bf16.mxu0 %v2821
    %3289 = vmatpush1.bf16.msra.mxu0 %v2820
    %3290 = vmatprep.subr.bf16.mxu0 %v2825
    %3291 = vmatpush1.bf16.msra.mxu0 %v2824
    %3292 = vmatprep.subr.bf16.mxu0 %v2829
    %3293 = vmatpush1.bf16.msra.mxu0 %v2828
    %3294 = vmatprep.subr.bf16.mxu0 %v2833
    %3295 = vmatpush1.bf16.msra.mxu0 %v2832
    %3296 = vmatprep.subr.bf16.mxu0 %v2837
    %3297 = vmatpush1.bf16.msra.mxu0 %v2836
    %3298 = vmatprep.subr.bf16.mxu0 %v2841
    %3299 = vmatpush1.bf16.msra.mxu0 %v2840
    %3300 = vmatprep.subr.bf16.mxu0 %v2845
    %3301 = vmatpush1.bf16.msra.mxu0 %v2844
    %3302 = vmatprep.subr.bf16.mxu0 %v2849
    %3303 = vmatpush1.bf16.msra.mxu0 %v2848
    %3304 = vmatprep.subr.bf16.mxu0 %v2853
    %3305 = vmatpush1.bf16.msra.mxu0 %v2852
    %3306 = vmatprep.mubr.bf16.mxu0 %v1955
    %3307 = vmatmul.mubr.bf16.gmra.mrb[0].mxu0 %v1954
    %v3308 = vpop.f32.mrb[0].mxu0
    %v3309 = vadd.f32 %v3268, %v3308
    %v3310 = vpop.f32.mrb[0].mxu0
    %v3311 = vadd.f32 %v3270, %v3310
    %v3312 = vpop.f32.mrb[0].mxu0
    %v3313 = vpop.f32.mrb[0].mxu0
    %3314 = vdwg.mxu0
    %3315 = vmatprep.subr.bf16.mxu0 %v2857
    %3316 = vmatpush1.bf16.msra.mxu0 %v2856
    %3317 = vmatprep.subr.bf16.mxu0 %v2861
    %3318 = vmatpush1.bf16.msra.mxu0 %v2860
    %3319 = vmatprep.subr.bf16.mxu0 %v2865
    %3320 = vmatpush1.bf16.msra.mxu0 %v2864
    %3321 = vmatprep.subr.bf16.mxu0 %v2869
    %3322 = vmatpush1.bf16.msra.mxu0 %v2868
    %3323 = vmatprep.subr.bf16.mxu0 %v2873
    %3324 = vmatpush1.bf16.msra.mxu0 %v2872
    %3325 = vmatprep.subr.bf16.mxu0 %v2877
    %3326 = vmatpush1.bf16.msra.mxu0 %v2876
    %3327 = vmatprep.subr.bf16.mxu0 %v2881
    %3328 = vmatpush1.bf16.msra.mxu0 %v2880
    %3329 = vmatprep.subr.bf16.mxu0 %v2885
    %3330 = vmatpush1.bf16.msra.mxu0 %v2884
    %3331 = vmatprep.subr.bf16.mxu0 %v2889
    %3332 = vmatpush1.bf16.msra.mxu0 %v2888
    %3333 = vmatprep.subr.bf16.mxu0 %v2893
    %3334 = vmatpush1.bf16.msra.mxu0 %v2892
    %3335 = vmatprep.subr.bf16.mxu0 %v2897
    %3336 = vmatpush1.bf16.msra.mxu0 %v2896
    %3337 = vmatprep.subr.bf16.mxu0 %v2901
    %3338 = vmatpush1.bf16.msra.mxu0 %v2900
    %3339 = vmatprep.subr.bf16.mxu0 %v2905
    %3340 = vmatpush1.bf16.msra.mxu0 %v2904
    %3341 = vmatprep.subr.bf16.mxu0 %v2909
    %3342 = vmatpush1.bf16.msra.mxu0 %v2908
    %3343 = vmatprep.subr.bf16.mxu0 %v2913
    %3344 = vmatpush1.bf16.msra.mxu0 %v2912
    %3345 = vmatprep.subr.bf16.mxu0 %v2917
    %3346 = vmatpush1.bf16.msra.mxu0 %v2916
    %3347 = vmatprep.mubr.bf16.mxu0 %v1957
    %3348 = vmatmul.mubr.bf16.gmra.mrb[0].mxu0 %v1956
    %v3349 = vpop.f32.mrb[0].mxu0
    %v3350 = vadd.f32 %v3309, %v3349
    %v3351 = vpop.f32.mrb[0].mxu0
    %v3352 = vadd.f32 %v3311, %v3351
    %v3353 = vpop.f32.mrb[0].mxu0
    %v3354 = vpop.f32.mrb[0].mxu0
    %3355 = vdwg.mxu0
    %v3356 = vadd.f32 %v1948, %v3227
    %v3357 = vadd.f32 %v1949, %v3229
    %v3358 = vadd.f32 %v1950, %v3350
    %v3359 = vadd.f32 %v1951, %v3352
    %v3360 = vpack.c.bf16 %v515, %v515
    %v3361 = vpack.c.bf16 %v516, %v516
    %v3362 = vpack.c.bf16 %v517, %v517
    %v3363 = vpack.c.bf16 %v518, %v518
    %v3364 = vpack.c.bf16 %v519, %v519
    %v3365 = vpack.c.bf16 %v520, %v520
    %v3366 = vld [vmem:[#allocation8 + $0xc00] sm:$0xff]
    %v3367 = vld [vmem:[#allocation8 + $0xc08] sm:$0xff]
    %v3368 = vld [vmem:[#allocation8 + $0xc10] sm:$0xff]
    %v3369 = vld [vmem:[#allocation8 + $0xc18] sm:$0xff]
    %v3370 = vld [vmem:[#allocation8 + $0xc20] sm:$0xff]
    %v3371 = vld [vmem:[#allocation8 + $0xc28] sm:$0xff]
    %v3372 = vld [vmem:[#allocation8 + $0xc30] sm:$0xff]
    %v3373 = vld [vmem:[#allocation8 + $0xc38] sm:$0xff]
    %v3374 = vld [vmem:[#allocation8 + $0xc40] sm:$0xff]
    %v3375 = vld [vmem:[#allocation8 + $0xc48] sm:$0xff]
    %v3376 = vld [vmem:[#allocation8 + $0xc50] sm:$0xff]
    %v3377 = vld [vmem:[#allocation8 + $0xc58] sm:$0xff]
    %v3378 = vld [vmem:[#allocation8 + $0xc60] sm:$0xff]
    %v3379 = vld [vmem:[#allocation8 + $0xc68] sm:$0xff]
    %v3380 = vld [vmem:[#allocation8 + $0xc70] sm:$0xff]
    %v3381 = vld [vmem:[#allocation8 + $0xc78] sm:$0xff]
    %v3382 = vld [vmem:[#allocation8 + $0xc80] sm:$0xff]
    %v3383 = vld [vmem:[#allocation8 + $0xc88] sm:$0xff]
    %v3384 = vld [vmem:[#allocation8 + $0xc90] sm:$0xff]
    %v3385 = vld [vmem:[#allocation8 + $0xc98] sm:$0xff]
    %v3386 = vld [vmem:[#allocation8 + $0xca0] sm:$0xff]
    %v3387 = vld [vmem:[#allocation8 + $0xca8] sm:$0xff]
    %v3388 = vld [vmem:[#allocation8 + $0xcb0] sm:$0xff]
    %v3389 = vld [vmem:[#allocation8 + $0xcb8] sm:$0xff]
    %v3390 = vld [vmem:[#allocation8 + $0xcc0] sm:$0xff]
    %v3391 = vld [vmem:[#allocation8 + $0xcc8] sm:$0xff]
    %v3392 = vld [vmem:[#allocation8 + $0xcd0] sm:$0xff]
    %v3393 = vld [vmem:[#allocation8 + $0xcd8] sm:$0xff]
    %v3394 = vld [vmem:[#allocation8 + $0xce0] sm:$0xff]
    %v3395 = vld [vmem:[#allocation8 + $0xce8] sm:$0xff]
    %v3396 = vld [vmem:[#allocation8 + $0xcf0] sm:$0xff]
    %v3397 = vld [vmem:[#allocation8 + $0xcf8] sm:$0xff]
    %v3398 = vld [vmem:[#allocation8 + $0xd00] sm:$0xff]
    %v3399 = vld [vmem:[#allocation8 + $0xd08] sm:$0xff]
    %v3400 = vld [vmem:[#allocation8 + $0xd10] sm:$0xff]
    %v3401 = vld [vmem:[#allocation8 + $0xd18] sm:$0xff]
    %v3402 = vld [vmem:[#allocation8 + $0xd20] sm:$0xff]
    %v3403 = vld [vmem:[#allocation8 + $0xd28] sm:$0xff]
    %v3404 = vld [vmem:[#allocation8 + $0xd30] sm:$0xff]
    %v3405 = vld [vmem:[#allocation8 + $0xd38] sm:$0xff]
    %v3406 = vld [vmem:[#allocation8 + $0xd40] sm:$0xff]
    %v3407 = vld [vmem:[#allocation8 + $0xd48] sm:$0xff]
    %v3408 = vld [vmem:[#allocation8 + $0xd50] sm:$0xff]
    %v3409 = vld [vmem:[#allocation8 + $0xd58] sm:$0xff]
    %v3410 = vld [vmem:[#allocation8 + $0xd60] sm:$0xff]
    %v3411 = vld [vmem:[#allocation8 + $0xd68] sm:$0xff]
    %v3412 = vld [vmem:[#allocation8 + $0xd70] sm:$0xff]
    %v3413 = vld [vmem:[#allocation8 + $0xd78] sm:$0xff]
    %v3414 = vld [vmem:[#allocation8 + $0xd80] sm:$0xff]
    %v3415 = vld [vmem:[#allocation8 + $0xd88] sm:$0xff]
    %v3416 = vld [vmem:[#allocation8 + $0xd90] sm:$0xff]
    %v3417 = vld [vmem:[#allocation8 + $0xd98] sm:$0xff]
    %v3418 = vld [vmem:[#allocation8 + $0xda0] sm:$0xff]
    %v3419 = vld [vmem:[#allocation8 + $0xda8] sm:$0xff]
    %v3420 = vld [vmem:[#allocation8 + $0xdb0] sm:$0xff]
    %v3421 = vld [vmem:[#allocation8 + $0xdb8] sm:$0xff]
    %v3422 = vld [vmem:[#allocation8 + $0xdc0] sm:$0xff]
    %v3423 = vld [vmem:[#allocation8 + $0xdc8] sm:$0xff]
    %v3424 = vld [vmem:[#allocation8 + $0xdd0] sm:$0xff]
    %v3425 = vld [vmem:[#allocation8 + $0xdd8] sm:$0xff]
    %v3426 = vld [vmem:[#allocation8 + $0xde0] sm:$0xff]
    %v3427 = vld [vmem:[#allocation8 + $0xde8] sm:$0xff]
    %v3428 = vld [vmem:[#allocation8 + $0xdf0] sm:$0xff]
    %v3429 = vld [vmem:[#allocation8 + $0xdf8] sm:$0xff]
    %v3430 = vld [vmem:[#allocation8 + $0xe00] sm:$0xff]
    %v3431 = vld [vmem:[#allocation8 + $0xe08] sm:$0xff]
    %v3432 = vld [vmem:[#allocation8 + $0xe10] sm:$0xff]
    %v3433 = vld [vmem:[#allocation8 + $0xe18] sm:$0xff]
    %v3434 = vld [vmem:[#allocation8 + $0xe20] sm:$0xff]
    %v3435 = vld [vmem:[#allocation8 + $0xe28] sm:$0xff]
    %v3436 = vld [vmem:[#allocation8 + $0xe30] sm:$0xff]
    %v3437 = vld [vmem:[#allocation8 + $0xe38] sm:$0xff]
    %v3438 = vld [vmem:[#allocation8 + $0xe40] sm:$0xff]
    %v3439 = vld [vmem:[#allocation8 + $0xe48] sm:$0xff]
    %v3440 = vld [vmem:[#allocation8 + $0xe50] sm:$0xff]
    %v3441 = vld [vmem:[#allocation8 + $0xe58] sm:$0xff]
    %v3442 = vld [vmem:[#allocation8 + $0xe60] sm:$0xff]
    %v3443 = vld [vmem:[#allocation8 + $0xe68] sm:$0xff]
    %v3444 = vld [vmem:[#allocation8 + $0xe70] sm:$0xff]
    %v3445 = vld [vmem:[#allocation8 + $0xe78] sm:$0xff]
    %v3446 = vld [vmem:[#allocation8 + $0xe80] sm:$0xff]
    %v3447 = vld [vmem:[#allocation8 + $0xe88] sm:$0xff]
    %v3448 = vld [vmem:[#allocation8 + $0xe90] sm:$0xff]
    %v3449 = vld [vmem:[#allocation8 + $0xe98] sm:$0xff]
    %v3450 = vld [vmem:[#allocation8 + $0xea0] sm:$0xff]
    %v3451 = vld [vmem:[#allocation8 + $0xea8] sm:$0xff]
    %v3452 = vld [vmem:[#allocation8 + $0xeb0] sm:$0xff]
    %v3453 = vld [vmem:[#allocation8 + $0xeb8] sm:$0xff]
    %v3454 = vld [vmem:[#allocation8 + $0xec0] sm:$0xff]
    %v3455 = vld [vmem:[#allocation8 + $0xec8] sm:$0xff]
    %v3456 = vld [vmem:[#allocation8 + $0xed0] sm:$0xff]
    %v3457 = vld [vmem:[#allocation8 + $0xed8] sm:$0xff]
    %v3458 = vld [vmem:[#allocation8 + $0xee0] sm:$0xff]
    %v3459 = vld [vmem:[#allocation8 + $0xee8] sm:$0xff]
    %v3460 = vld [vmem:[#allocation8 + $0xef0] sm:$0xff]
    %v3461 = vld [vmem:[#allocation8 + $0xef8] sm:$0xff]
    %v3462 = vld [vmem:[#allocation8 + $0xf00] sm:$0xff]
    %v3463 = vld [vmem:[#allocation8 + $0xf08] sm:$0xff]
    %v3464 = vld [vmem:[#allocation8 + $0xf10] sm:$0xff]
    %v3465 = vld [vmem:[#allocation8 + $0xf18] sm:$0xff]
    %v3466 = vld [vmem:[#allocation8 + $0xf20] sm:$0xff]
    %v3467 = vld [vmem:[#allocation8 + $0xf28] sm:$0xff]
    %v3468 = vld [vmem:[#allocation8 + $0xf30] sm:$0xff]
    %v3469 = vld [vmem:[#allocation8 + $0xf38] sm:$0xff]
    %v3470 = vld [vmem:[#allocation8 + $0xf40] sm:$0xff]
    %v3471 = vld [vmem:[#allocation8 + $0xf48] sm:$0xff]
    %v3472 = vld [vmem:[#allocation8 + $0xf50] sm:$0xff]
    %v3473 = vld [vmem:[#allocation8 + $0xf58] sm:$0xff]
    %v3474 = vld [vmem:[#allocation8 + $0xf60] sm:$0xff]
    %v3475 = vld [vmem:[#allocation8 + $0xf68] sm:$0xff]
    %v3476 = vld [vmem:[#allocation8 + $0xf70] sm:$0xff]
    %v3477 = vld [vmem:[#allocation8 + $0xf78] sm:$0xff]
    %v3478 = vld [vmem:[#allocation8 + $0xf80] sm:$0xff]
    %v3479 = vld [vmem:[#allocation8 + $0xf88] sm:$0xff]
    %v3480 = vld [vmem:[#allocation8 + $0xf90] sm:$0xff]
    %v3481 = vld [vmem:[#allocation8 + $0xf98] sm:$0xff]
    %v3482 = vld [vmem:[#allocation8 + $0xfa0] sm:$0xff]
    %v3483 = vld [vmem:[#allocation8 + $0xfa8] sm:$0xff]
    %v3484 = vld [vmem:[#allocation8 + $0xfb0] sm:$0xff]
    %v3485 = vld [vmem:[#allocation8 + $0xfb8] sm:$0xff]
    %v3486 = vld [vmem:[#allocation8 + $0xfc0] sm:$0xff]
    %v3487 = vld [vmem:[#allocation8 + $0xfc8] sm:$0xff]
    %v3488 = vld [vmem:[#allocation8 + $0xfd0] sm:$0xff]
    %v3489 = vld [vmem:[#allocation8 + $0xfd8] sm:$0xff]
    %v3490 = vld [vmem:[#allocation8 + $0xfe0] sm:$0xff]
    %v3491 = vld [vmem:[#allocation8 + $0xfe8] sm:$0xff]
    %v3492 = vld [vmem:[#allocation8 + $0xff0] sm:$0xff]
    %v3493 = vld [vmem:[#allocation8 + $0xff8] sm:$0xff]
    %v3494 = vld [vmem:[#allocation8 + $0x1000] sm:$0xff]
    %v3495 = vld [vmem:[#allocation8 + $0x1008] sm:$0xff]
    %v3496 = vld [vmem:[#allocation8 + $0x1010] sm:$0xff]
    %v3497 = vld [vmem:[#allocation8 + $0x1018] sm:$0xff]
    %v3498 = vld [vmem:[#allocation8 + $0x1020] sm:$0xff]
    %v3499 = vld [vmem:[#allocation8 + $0x1028] sm:$0xff]
    %v3500 = vld [vmem:[#allocation8 + $0x1030] sm:$0xff]
    %v3501 = vld [vmem:[#allocation8 + $0x1038] sm:$0xff]
    %v3502 = vld [vmem:[#allocation8 + $0x1040] sm:$0xff]
    %v3503 = vld [vmem:[#allocation8 + $0x1048] sm:$0xff]
    %v3504 = vld [vmem:[#allocation8 + $0x1050] sm:$0xff]
    %v3505 = vld [vmem:[#allocation8 + $0x1058] sm:$0xff]
    %v3506 = vld [vmem:[#allocation8 + $0x1060] sm:$0xff]
    %v3507 = vld [vmem:[#allocation8 + $0x1068] sm:$0xff]
    %v3508 = vld [vmem:[#allocation8 + $0x1070] sm:$0xff]
    %v3509 = vld [vmem:[#allocation8 + $0x1078] sm:$0xff]
    %v3510 = vld [vmem:[#allocation8 + $0x1080] sm:$0xff]
    %v3511 = vld [vmem:[#allocation8 + $0x1088] sm:$0xff]
    %v3512 = vld [vmem:[#allocation8 + $0x1090] sm:$0xff]
    %v3513 = vld [vmem:[#allocation8 + $0x1098] sm:$0xff]
    %v3514 = vld [vmem:[#allocation8 + $0x10a0] sm:$0xff]
    %v3515 = vld [vmem:[#allocation8 + $0x10a8] sm:$0xff]
    %v3516 = vld [vmem:[#allocation8 + $0x10b0] sm:$0xff]
    %v3517 = vld [vmem:[#allocation8 + $0x10b8] sm:$0xff]
    %v3518 = vld [vmem:[#allocation8 + $0x10c0] sm:$0xff]
    %v3519 = vld [vmem:[#allocation8 + $0x10c8] sm:$0xff]
    %v3520 = vld [vmem:[#allocation8 + $0x10d0] sm:$0xff]
    %v3521 = vld [vmem:[#allocation8 + $0x10d8] sm:$0xff]
    %v3522 = vld [vmem:[#allocation8 + $0x10e0] sm:$0xff]
    %v3523 = vld [vmem:[#allocation8 + $0x10e8] sm:$0xff]
    %v3524 = vld [vmem:[#allocation8 + $0x10f0] sm:$0xff]
    %v3525 = vld [vmem:[#allocation8 + $0x10f8] sm:$0xff]
    %v3526 = vld [vmem:[#allocation8 + $0x1100] sm:$0xff]
    %v3527 = vld [vmem:[#allocation8 + $0x1108] sm:$0xff]
    %v3528 = vld [vmem:[#allocation8 + $0x1110] sm:$0xff]
    %v3529 = vld [vmem:[#allocation8 + $0x1118] sm:$0xff]
    %v3530 = vld [vmem:[#allocation8 + $0x1120] sm:$0xff]
    %v3531 = vld [vmem:[#allocation8 + $0x1128] sm:$0xff]
    %v3532 = vld [vmem:[#allocation8 + $0x1130] sm:$0xff]
    %v3533 = vld [vmem:[#allocation8 + $0x1138] sm:$0xff]
    %v3534 = vld [vmem:[#allocation8 + $0x1140] sm:$0xff]
    %v3535 = vld [vmem:[#allocation8 + $0x1148] sm:$0xff]
    %v3536 = vld [vmem:[#allocation8 + $0x1150] sm:$0xff]
    %v3537 = vld [vmem:[#allocation8 + $0x1158] sm:$0xff]
    %v3538 = vld [vmem:[#allocation8 + $0x1160] sm:$0xff]
    %v3539 = vld [vmem:[#allocation8 + $0x1168] sm:$0xff]
    %v3540 = vld [vmem:[#allocation8 + $0x1170] sm:$0xff]
    %v3541 = vld [vmem:[#allocation8 + $0x1178] sm:$0xff]
    %v3542 = vld [vmem:[#allocation8 + $0x1180] sm:$0xff]
    %v3543 = vld [vmem:[#allocation8 + $0x1188] sm:$0xff]
    %v3544 = vld [vmem:[#allocation8 + $0x1190] sm:$0xff]
    %v3545 = vld [vmem:[#allocation8 + $0x1198] sm:$0xff]
    %v3546 = vld [vmem:[#allocation8 + $0x11a0] sm:$0xff]
    %v3547 = vld [vmem:[#allocation8 + $0x11a8] sm:$0xff]
    %v3548 = vld [vmem:[#allocation8 + $0x11b0] sm:$0xff]
    %v3549 = vld [vmem:[#allocation8 + $0x11b8] sm:$0xff]
    %v3550 = vld [vmem:[#allocation8 + $0x11c0] sm:$0xff]
    %v3551 = vld [vmem:[#allocation8 + $0x11c8] sm:$0xff]
    %v3552 = vld [vmem:[#allocation8 + $0x11d0] sm:$0xff]
    %v3553 = vld [vmem:[#allocation8 + $0x11d8] sm:$0xff]
    %v3554 = vld [vmem:[#allocation8 + $0x11e0] sm:$0xff]
    %v3555 = vld [vmem:[#allocation8 + $0x11e8] sm:$0xff]
    %v3556 = vld [vmem:[#allocation8 + $0x11f0] sm:$0xff]
    %v3557 = vld [vmem:[#allocation8 + $0x11f8] sm:$0xff]
    %v3750 = vunpack.c.l.b16 %v3366
    %v3751 = vunpack.c.h.b16 %v3366
    %v3752 = vunpack.c.l.b16 %v3367
    %v3753 = vunpack.c.h.b16 %v3367
    %v3754 = vunpack.c.l.b16 %v3368
    %v3755 = vunpack.c.h.b16 %v3368
    %v3756 = vunpack.c.l.b16 %v3369
    %v3757 = vunpack.c.h.b16 %v3369
    %v3758 = vunpack.c.l.b16 %v3370
    %v3759 = vunpack.c.h.b16 %v3370
    %v3760 = vunpack.c.l.b16 %v3371
    %v3761 = vunpack.c.h.b16 %v3371
    %v3762 = vunpack.c.l.b16 %v3372
    %v3763 = vunpack.c.h.b16 %v3372
    %v3764 = vunpack.c.l.b16 %v3373
    %v3765 = vunpack.c.h.b16 %v3373
    %v3766 = vunpack.c.l.b16 %v3374
    %v3767 = vunpack.c.h.b16 %v3374
    %v3768 = vunpack.c.l.b16 %v3375
    %v3769 = vunpack.c.h.b16 %v3375
    %v3770 = vunpack.c.l.b16 %v3376
    %v3771 = vunpack.c.h.b16 %v3376
    %v3772 = vunpack.c.l.b16 %v3377
    %v3773 = vunpack.c.h.b16 %v3377
    %v3774 = vunpack.c.l.b16 %v3378
    %v3775 = vunpack.c.h.b16 %v3378
    %v3776 = vunpack.c.l.b16 %v3379
    %v3777 = vunpack.c.h.b16 %v3379
    %v3778 = vunpack.c.l.b16 %v3380
    %v3779 = vunpack.c.h.b16 %v3380
    %v3780 = vunpack.c.l.b16 %v3381
    %v3781 = vunpack.c.h.b16 %v3381
    %v3782 = vunpack.c.l.b16 %v3382
    %v3783 = vunpack.c.h.b16 %v3382
    %v3784 = vunpack.c.l.b16 %v3383
    %v3785 = vunpack.c.h.b16 %v3383
    %v3786 = vunpack.c.l.b16 %v3384
    %v3787 = vunpack.c.h.b16 %v3384
    %v3788 = vunpack.c.l.b16 %v3385
    %v3789 = vunpack.c.h.b16 %v3385
    %v3790 = vunpack.c.l.b16 %v3386
    %v3791 = vunpack.c.h.b16 %v3386
    %v3792 = vunpack.c.l.b16 %v3387
    %v3793 = vunpack.c.h.b16 %v3387
    %v3794 = vunpack.c.l.b16 %v3388
    %v3795 = vunpack.c.h.b16 %v3388
    %v3796 = vunpack.c.l.b16 %v3389
    %v3797 = vunpack.c.h.b16 %v3389
    %v3798 = vunpack.c.l.b16 %v3390
    %v3799 = vunpack.c.h.b16 %v3390
    %v3800 = vunpack.c.l.b16 %v3391
    %v3801 = vunpack.c.h.b16 %v3391
    %v3802 = vunpack.c.l.b16 %v3392
    %v3803 = vunpack.c.h.b16 %v3392
    %v3804 = vunpack.c.l.b16 %v3393
    %v3805 = vunpack.c.h.b16 %v3393
    %v3806 = vunpack.c.l.b16 %v3394
    %v3807 = vunpack.c.h.b16 %v3394
    %v3808 = vunpack.c.l.b16 %v3395
    %v3809 = vunpack.c.h.b16 %v3395
    %v3810 = vunpack.c.l.b16 %v3396
    %v3811 = vunpack.c.h.b16 %v3396
    %v3812 = vunpack.c.l.b16 %v3397
    %v3813 = vunpack.c.h.b16 %v3397
    %v3814 = vunpack.c.l.b16 %v3398
    %v3815 = vunpack.c.h.b16 %v3398
    %v3816 = vunpack.c.l.b16 %v3399
    %v3817 = vunpack.c.h.b16 %v3399
    %v3818 = vunpack.c.l.b16 %v3400
    %v3819 = vunpack.c.h.b16 %v3400
    %v3820 = vunpack.c.l.b16 %v3401
    %v3821 = vunpack.c.h.b16 %v3401
    %v3822 = vunpack.c.l.b16 %v3402
    %v3823 = vunpack.c.h.b16 %v3402
    %v3824 = vunpack.c.l.b16 %v3403
    %v3825 = vunpack.c.h.b16 %v3403
    %v3826 = vunpack.c.l.b16 %v3404
    %v3827 = vunpack.c.h.b16 %v3404
    %v3828 = vunpack.c.l.b16 %v3405
    %v3829 = vunpack.c.h.b16 %v3405
    %v3830 = vunpack.c.l.b16 %v3406
    %v3831 = vunpack.c.h.b16 %v3406
    %v3832 = vunpack.c.l.b16 %v3407
    %v3833 = vunpack.c.h.b16 %v3407
    %v3834 = vunpack.c.l.b16 %v3408
    %v3835 = vunpack.c.h.b16 %v3408
    %v3836 = vunpack.c.l.b16 %v3409
    %v3837 = vunpack.c.h.b16 %v3409
    %v3838 = vunpack.c.l.b16 %v3410
    %v3839 = vunpack.c.h.b16 %v3410
    %v3840 = vunpack.c.l.b16 %v3411
    %v3841 = vunpack.c.h.b16 %v3411
    %v3842 = vunpack.c.l.b16 %v3412
    %v3843 = vunpack.c.h.b16 %v3412
    %v3844 = vunpack.c.l.b16 %v3413
    %v3845 = vunpack.c.h.b16 %v3413
    %v3846 = vunpack.c.l.b16 %v3414
    %v3847 = vunpack.c.h.b16 %v3414
    %v3848 = vunpack.c.l.b16 %v3415
    %v3849 = vunpack.c.h.b16 %v3415
    %v3850 = vunpack.c.l.b16 %v3416
    %v3851 = vunpack.c.h.b16 %v3416
    %v3852 = vunpack.c.l.b16 %v3417
    %v3853 = vunpack.c.h.b16 %v3417
    %v3854 = vunpack.c.l.b16 %v3418
    %v3855 = vunpack.c.h.b16 %v3418
    %v3856 = vunpack.c.l.b16 %v3419
    %v3857 = vunpack.c.h.b16 %v3419
    %v3858 = vunpack.c.l.b16 %v3420
    %v3859 = vunpack.c.h.b16 %v3420
    %v3860 = vunpack.c.l.b16 %v3421
    %v3861 = vunpack.c.h.b16 %v3421
    %v3862 = vunpack.c.l.b16 %v3422
    %v3863 = vunpack.c.h.b16 %v3422
    %v3864 = vunpack.c.l.b16 %v3423
    %v3865 = vunpack.c.h.b16 %v3423
    %v3866 = vunpack.c.l.b16 %v3424
    %v3867 = vunpack.c.h.b16 %v3424
    %v3868 = vunpack.c.l.b16 %v3425
    %v3869 = vunpack.c.h.b16 %v3425
    %v3870 = vunpack.c.l.b16 %v3426
    %v3871 = vunpack.c.h.b16 %v3426
    %v3872 = vunpack.c.l.b16 %v3427
    %v3873 = vunpack.c.h.b16 %v3427
    %v3874 = vunpack.c.l.b16 %v3428
    %v3875 = vunpack.c.h.b16 %v3428
    %v3876 = vunpack.c.l.b16 %v3429
    %v3877 = vunpack.c.h.b16 %v3429
    %v3878 = vunpack.c.l.b16 %v3430
    %v3879 = vunpack.c.h.b16 %v3430
    %v3880 = vunpack.c.l.b16 %v3431
    %v3881 = vunpack.c.h.b16 %v3431
    %v3882 = vunpack.c.l.b16 %v3432
    %v3883 = vunpack.c.h.b16 %v3432
    %v3884 = vunpack.c.l.b16 %v3433
    %v3885 = vunpack.c.h.b16 %v3433
    %v3886 = vunpack.c.l.b16 %v3434
    %v3887 = vunpack.c.h.b16 %v3434
    %v3888 = vunpack.c.l.b16 %v3435
    %v3889 = vunpack.c.h.b16 %v3435
    %v3890 = vunpack.c.l.b16 %v3436
    %v3891 = vunpack.c.h.b16 %v3436
    %v3892 = vunpack.c.l.b16 %v3437
    %v3893 = vunpack.c.h.b16 %v3437
    %v3894 = vunpack.c.l.b16 %v3438
    %v3895 = vunpack.c.h.b16 %v3438
    %v3896 = vunpack.c.l.b16 %v3439
    %v3897 = vunpack.c.h.b16 %v3439
    %v3898 = vunpack.c.l.b16 %v3440
    %v3899 = vunpack.c.h.b16 %v3440
    %v3900 = vunpack.c.l.b16 %v3441
    %v3901 = vunpack.c.h.b16 %v3441
    %v3902 = vunpack.c.l.b16 %v3442
    %v3903 = vunpack.c.h.b16 %v3442
    %v3904 = vunpack.c.l.b16 %v3443
    %v3905 = vunpack.c.h.b16 %v3443
    %v3906 = vunpack.c.l.b16 %v3444
    %v3907 = vunpack.c.h.b16 %v3444
    %v3908 = vunpack.c.l.b16 %v3445
    %v3909 = vunpack.c.h.b16 %v3445
    %v3910 = vunpack.c.l.b16 %v3446
    %v3911 = vunpack.c.h.b16 %v3446
    %v3912 = vunpack.c.l.b16 %v3447
    %v3913 = vunpack.c.h.b16 %v3447
    %v3914 = vunpack.c.l.b16 %v3448
    %v3915 = vunpack.c.h.b16 %v3448
    %v3916 = vunpack.c.l.b16 %v3449
    %v3917 = vunpack.c.h.b16 %v3449
    %v3918 = vunpack.c.l.b16 %v3450
    %v3919 = vunpack.c.h.b16 %v3450
    %v3920 = vunpack.c.l.b16 %v3451
    %v3921 = vunpack.c.h.b16 %v3451
    %v3922 = vunpack.c.l.b16 %v3452
    %v3923 = vunpack.c.h.b16 %v3452
    %v3924 = vunpack.c.l.b16 %v3453
    %v3925 = vunpack.c.h.b16 %v3453
    %v3926 = vunpack.c.l.b16 %v3454
    %v3927 = vunpack.c.h.b16 %v3454
    %v3928 = vunpack.c.l.b16 %v3455
    %v3929 = vunpack.c.h.b16 %v3455
    %v3930 = vunpack.c.l.b16 %v3456
    %v3931 = vunpack.c.h.b16 %v3456
    %v3932 = vunpack.c.l.b16 %v3457
    %v3933 = vunpack.c.h.b16 %v3457
    %v3934 = vunpack.c.l.b16 %v3458
    %v3935 = vunpack.c.h.b16 %v3458
    %v3936 = vunpack.c.l.b16 %v3459
    %v3937 = vunpack.c.h.b16 %v3459
    %v3938 = vunpack.c.l.b16 %v3460
    %v3939 = vunpack.c.h.b16 %v3460
    %v3940 = vunpack.c.l.b16 %v3461
    %v3941 = vunpack.c.h.b16 %v3461
    %v3942 = vunpack.c.l.b16 %v3462
    %v3943 = vunpack.c.h.b16 %v3462
    %v3944 = vunpack.c.l.b16 %v3463
    %v3945 = vunpack.c.h.b16 %v3463
    %v3946 = vunpack.c.l.b16 %v3464
    %v3947 = vunpack.c.h.b16 %v3464
    %v3948 = vunpack.c.l.b16 %v3465
    %v3949 = vunpack.c.h.b16 %v3465
    %v3950 = vunpack.c.l.b16 %v3466
    %v3951 = vunpack.c.h.b16 %v3466
    %v3952 = vunpack.c.l.b16 %v3467
    %v3953 = vunpack.c.h.b16 %v3467
    %v3954 = vunpack.c.l.b16 %v3468
    %v3955 = vunpack.c.h.b16 %v3468
    %v3956 = vunpack.c.l.b16 %v3469
    %v3957 = vunpack.c.h.b16 %v3469
    %v3958 = vunpack.c.l.b16 %v3470
    %v3959 = vunpack.c.h.b16 %v3470
    %v3960 = vunpack.c.l.b16 %v3471
    %v3961 = vunpack.c.h.b16 %v3471
    %v3962 = vunpack.c.l.b16 %v3472
    %v3963 = vunpack.c.h.b16 %v3472
    %v3964 = vunpack.c.l.b16 %v3473
    %v3965 = vunpack.c.h.b16 %v3473
    %v3966 = vunpack.c.l.b16 %v3474
    %v3967 = vunpack.c.h.b16 %v3474
    %v3968 = vunpack.c.l.b16 %v3475
    %v3969 = vunpack.c.h.b16 %v3475
    %v3970 = vunpack.c.l.b16 %v3476
    %v3971 = vunpack.c.h.b16 %v3476
    %v3972 = vunpack.c.l.b16 %v3477
    %v3973 = vunpack.c.h.b16 %v3477
    %v3974 = vunpack.c.l.b16 %v3478
    %v3975 = vunpack.c.h.b16 %v3478
    %v3976 = vunpack.c.l.b16 %v3479
    %v3977 = vunpack.c.h.b16 %v3479
    %v3978 = vunpack.c.l.b16 %v3480
    %v3979 = vunpack.c.h.b16 %v3480
    %v3980 = vunpack.c.l.b16 %v3481
    %v3981 = vunpack.c.h.b16 %v3481
    %v3982 = vunpack.c.l.b16 %v3482
    %v3983 = vunpack.c.h.b16 %v3482
    %v3984 = vunpack.c.l.b16 %v3483
    %v3985 = vunpack.c.h.b16 %v3483
    %v3986 = vunpack.c.l.b16 %v3484
    %v3987 = vunpack.c.h.b16 %v3484
    %v3988 = vunpack.c.l.b16 %v3485
    %v3989 = vunpack.c.h.b16 %v3485
    %v3990 = vunpack.c.l.b16 %v3486
    %v3991 = vunpack.c.h.b16 %v3486
    %v3992 = vunpack.c.l.b16 %v3487
    %v3993 = vunpack.c.h.b16 %v3487
    %v3994 = vunpack.c.l.b16 %v3488
    %v3995 = vunpack.c.h.b16 %v3488
    %v3996 = vunpack.c.l.b16 %v3489
    %v3997 = vunpack.c.h.b16 %v3489
    %v3998 = vunpack.c.l.b16 %v3490
    %v3999 = vunpack.c.h.b16 %v3490
    %v4000 = vunpack.c.l.b16 %v3491
    %v4001 = vunpack.c.h.b16 %v3491
    %v4002 = vunpack.c.l.b16 %v3492
    %v4003 = vunpack.c.h.b16 %v3492
    %v4004 = vunpack.c.l.b16 %v3493
    %v4005 = vunpack.c.h.b16 %v3493
    %v4006 = vunpack.c.l.b16 %v3494
    %v4007 = vunpack.c.h.b16 %v3494
    %v4008 = vunpack.c.l.b16 %v3495
    %v4009 = vunpack.c.h.b16 %v3495
    %v4010 = vunpack.c.l.b16 %v3496
    %v4011 = vunpack.c.h.b16 %v3496
    %v4012 = vunpack.c.l.b16 %v3497
    %v4013 = vunpack.c.h.b16 %v3497
    %v4014 = vunpack.c.l.b16 %v3498
    %v4015 = vunpack.c.h.b16 %v3498
    %v4016 = vunpack.c.l.b16 %v3499
    %v4017 = vunpack.c.h.b16 %v3499
    %v4018 = vunpack.c.l.b16 %v3500
    %v4019 = vunpack.c.h.b16 %v3500
    %v4020 = vunpack.c.l.b16 %v3501
    %v4021 = vunpack.c.h.b16 %v3501
    %v4022 = vunpack.c.l.b16 %v3502
    %v4023 = vunpack.c.h.b16 %v3502
    %v4024 = vunpack.c.l.b16 %v3503
    %v4025 = vunpack.c.h.b16 %v3503
    %v4026 = vunpack.c.l.b16 %v3504
    %v4027 = vunpack.c.h.b16 %v3504
    %v4028 = vunpack.c.l.b16 %v3505
    %v4029 = vunpack.c.h.b16 %v3505
    %v4030 = vunpack.c.l.b16 %v3506
    %v4031 = vunpack.c.h.b16 %v3506
    %v4032 = vunpack.c.l.b16 %v3507
    %v4033 = vunpack.c.h.b16 %v3507
    %v4034 = vunpack.c.l.b16 %v3508
    %v4035 = vunpack.c.h.b16 %v3508
    %v4036 = vunpack.c.l.b16 %v3509
    %v4037 = vunpack.c.h.b16 %v3509
    %v4038 = vunpack.c.l.b16 %v3510
    %v4039 = vunpack.c.h.b16 %v3510
    %v4040 = vunpack.c.l.b16 %v3511
    %v4041 = vunpack.c.h.b16 %v3511
    %v4042 = vunpack.c.l.b16 %v3512
    %v4043 = vunpack.c.h.b16 %v3512
    %v4044 = vunpack.c.l.b16 %v3513
    %v4045 = vunpack.c.h.b16 %v3513
    %v4046 = vunpack.c.l.b16 %v3514
    %v4047 = vunpack.c.h.b16 %v3514
    %v4048 = vunpack.c.l.b16 %v3515
    %v4049 = vunpack.c.h.b16 %v3515
    %v4050 = vunpack.c.l.b16 %v3516
    %v4051 = vunpack.c.h.b16 %v3516
    %v4052 = vunpack.c.l.b16 %v3517
    %v4053 = vunpack.c.h.b16 %v3517
    %v4054 = vunpack.c.l.b16 %v3518
    %v4055 = vunpack.c.h.b16 %v3518
    %v4056 = vunpack.c.l.b16 %v3519
    %v4057 = vunpack.c.h.b16 %v3519
    %v4058 = vunpack.c.l.b16 %v3520
    %v4059 = vunpack.c.h.b16 %v3520
    %v4060 = vunpack.c.l.b16 %v3521
    %v4061 = vunpack.c.h.b16 %v3521
    %v4062 = vunpack.c.l.b16 %v3522
    %v4063 = vunpack.c.h.b16 %v3522
    %v4064 = vunpack.c.l.b16 %v3523
    %v4065 = vunpack.c.h.b16 %v3523
    %v4066 = vunpack.c.l.b16 %v3524
    %v4067 = vunpack.c.h.b16 %v3524
    %v4068 = vunpack.c.l.b16 %v3525
    %v4069 = vunpack.c.h.b16 %v3525
    %v4070 = vunpack.c.l.b16 %v3526
    %v4071 = vunpack.c.h.b16 %v3526
    %v4072 = vunpack.c.l.b16 %v3527
    %v4073 = vunpack.c.h.b16 %v3527
    %v4074 = vunpack.c.l.b16 %v3528
    %v4075 = vunpack.c.h.b16 %v3528
    %v4076 = vunpack.c.l.b16 %v3529
    %v4077 = vunpack.c.h.b16 %v3529
    %v4078 = vunpack.c.l.b16 %v3530
    %v4079 = vunpack.c.h.b16 %v3530
    %v4080 = vunpack.c.l.b16 %v3531
    %v4081 = vunpack.c.h.b16 %v3531
    %v4082 = vunpack.c.l.b16 %v3532
    %v4083 = vunpack.c.h.b16 %v3532
    %v4084 = vunpack.c.l.b16 %v3533
    %v4085 = vunpack.c.h.b16 %v3533
    %v4086 = vunpack.c.l.b16 %v3534
    %v4087 = vunpack.c.h.b16 %v3534
    %v4088 = vunpack.c.l.b16 %v3535
    %v4089 = vunpack.c.h.b16 %v3535
    %v4090 = vunpack.c.l.b16 %v3536
    %v4091 = vunpack.c.h.b16 %v3536
    %v4092 = vunpack.c.l.b16 %v3537
    %v4093 = vunpack.c.h.b16 %v3537
    %v4094 = vunpack.c.l.b16 %v3538
    %v4095 = vunpack.c.h.b16 %v3538
    %v4096 = vunpack.c.l.b16 %v3539
    %v4097 = vunpack.c.h.b16 %v3539
    %v4098 = vunpack.c.l.b16 %v3540
    %v4099 = vunpack.c.h.b16 %v3540
    %v4100 = vunpack.c.l.b16 %v3541
    %v4101 = vunpack.c.h.b16 %v3541
    %v4102 = vunpack.c.l.b16 %v3542
    %v4103 = vunpack.c.h.b16 %v3542
    %v4104 = vunpack.c.l.b16 %v3543
    %v4105 = vunpack.c.h.b16 %v3543
    %v4106 = vunpack.c.l.b16 %v3544
    %v4107 = vunpack.c.h.b16 %v3544
    %v4108 = vunpack.c.l.b16 %v3545
    %v4109 = vunpack.c.h.b16 %v3545
    %v4110 = vunpack.c.l.b16 %v3546
    %v4111 = vunpack.c.h.b16 %v3546
    %v4112 = vunpack.c.l.b16 %v3547
    %v4113 = vunpack.c.h.b16 %v3547
    %v4114 = vunpack.c.l.b16 %v3548
    %v4115 = vunpack.c.h.b16 %v3548
    %v4116 = vunpack.c.l.b16 %v3549
    %v4117 = vunpack.c.h.b16 %v3549
    %v4118 = vunpack.c.l.b16 %v3550
    %v4119 = vunpack.c.h.b16 %v3550
    %v4120 = vunpack.c.l.b16 %v3551
    %v4121 = vunpack.c.h.b16 %v3551
    %v4122 = vunpack.c.l.b16 %v3552
    %v4123 = vunpack.c.h.b16 %v3552
    %v4124 = vunpack.c.l.b16 %v3553
    %v4125 = vunpack.c.h.b16 %v3553
    %v4126 = vunpack.c.l.b16 %v3554
    %v4127 = vunpack.c.h.b16 %v3554
    %v4128 = vunpack.c.l.b16 %v3555
    %v4129 = vunpack.c.h.b16 %v3555
    %v4130 = vunpack.c.l.b16 %v3556
    %v4131 = vunpack.c.h.b16 %v3556
    %v4132 = vunpack.c.l.b16 %v3557
    %v4133 = vunpack.c.h.b16 %v3557
    %v4134 = vpack.c.b16 %v3754, %v3750
    %v4135 = vpack.c.b16 %v3755, %v3751
    %v4136 = vpack.c.b16 %v3756, %v3752
    %v4137 = vpack.c.b16 %v3757, %v3753
    %v4138 = vpack.c.b16 %v3762, %v3758
    %v4139 = vpack.c.b16 %v3763, %v3759
    %v4140 = vpack.c.b16 %v3764, %v3760
    %v4141 = vpack.c.b16 %v3765, %v3761
    %v4142 = vpack.c.b16 %v3770, %v3766
    %v4143 = vpack.c.b16 %v3771, %v3767
    %v4144 = vpack.c.b16 %v3772, %v3768
    %v4145 = vpack.c.b16 %v3773, %v3769
    %v4146 = vpack.c.b16 %v3778, %v3774
    %v4147 = vpack.c.b16 %v3779, %v3775
    %v4148 = vpack.c.b16 %v3780, %v3776
    %v4149 = vpack.c.b16 %v3781, %v3777
    %v4150 = vpack.c.b16 %v3786, %v3782
    %v4151 = vpack.c.b16 %v3787, %v3783
    %v4152 = vpack.c.b16 %v3788, %v3784
    %v4153 = vpack.c.b16 %v3789, %v3785
    %v4154 = vpack.c.b16 %v3794, %v3790
    %v4155 = vpack.c.b16 %v3795, %v3791
    %v4156 = vpack.c.b16 %v3796, %v3792
    %v4157 = vpack.c.b16 %v3797, %v3793
    %v4158 = vpack.c.b16 %v3802, %v3798
    %v4159 = vpack.c.b16 %v3803, %v3799
    %v4160 = vpack.c.b16 %v3804, %v3800
    %v4161 = vpack.c.b16 %v3805, %v3801
    %v4162 = vpack.c.b16 %v3810, %v3806
    %v4163 = vpack.c.b16 %v3811, %v3807
    %v4164 = vpack.c.b16 %v3812, %v3808
    %v4165 = vpack.c.b16 %v3813, %v3809
    %v4166 = vpack.c.b16 %v3818, %v3814
    %v4167 = vpack.c.b16 %v3819, %v3815
    %v4168 = vpack.c.b16 %v3820, %v3816
    %v4169 = vpack.c.b16 %v3821, %v3817
    %v4170 = vpack.c.b16 %v3826, %v3822
    %v4171 = vpack.c.b16 %v3827, %v3823
    %v4172 = vpack.c.b16 %v3828, %v3824
    %v4173 = vpack.c.b16 %v3829, %v3825
    %v4174 = vpack.c.b16 %v3834, %v3830
    %v4175 = vpack.c.b16 %v3835, %v3831
    %v4176 = vpack.c.b16 %v3836, %v3832
    %v4177 = vpack.c.b16 %v3837, %v3833
    %v4178 = vpack.c.b16 %v3842, %v3838
    %v4179 = vpack.c.b16 %v3843, %v3839
    %v4180 = vpack.c.b16 %v3844, %v3840
    %v4181 = vpack.c.b16 %v3845, %v3841
    %v4182 = vpack.c.b16 %v3850, %v3846
    %v4183 = vpack.c.b16 %v3851, %v3847
    %v4184 = vpack.c.b16 %v3852, %v3848
    %v4185 = vpack.c.b16 %v3853, %v3849
    %v4186 = vpack.c.b16 %v3858, %v3854
    %v4187 = vpack.c.b16 %v3859, %v3855
    %v4188 = vpack.c.b16 %v3860, %v3856
    %v4189 = vpack.c.b16 %v3861, %v3857
    %v4190 = vpack.c.b16 %v3866, %v3862
    %v4191 = vpack.c.b16 %v3867, %v3863
    %v4192 = vpack.c.b16 %v3868, %v3864
    %v4193 = vpack.c.b16 %v3869, %v3865
    %v4194 = vpack.c.b16 %v3874, %v3870
    %v4195 = vpack.c.b16 %v3875, %v3871
    %v4196 = vpack.c.b16 %v3876, %v3872
    %v4197 = vpack.c.b16 %v3877, %v3873
    %v4198 = vpack.c.b16 %v3882, %v3878
    %v4199 = vpack.c.b16 %v3883, %v3879
    %v4200 = vpack.c.b16 %v3884, %v3880
    %v4201 = vpack.c.b16 %v3885, %v3881
    %v4202 = vpack.c.b16 %v3890, %v3886
    %v4203 = vpack.c.b16 %v3891, %v3887
    %v4204 = vpack.c.b16 %v3892, %v3888
    %v4205 = vpack.c.b16 %v3893, %v3889
    %v4206 = vpack.c.b16 %v3898, %v3894
    %v4207 = vpack.c.b16 %v3899, %v3895
    %v4208 = vpack.c.b16 %v3900, %v3896
    %v4209 = vpack.c.b16 %v3901, %v3897
    %v4210 = vpack.c.b16 %v3906, %v3902
    %v4211 = vpack.c.b16 %v3907, %v3903
    %v4212 = vpack.c.b16 %v3908, %v3904
    %v4213 = vpack.c.b16 %v3909, %v3905
    %v4214 = vpack.c.b16 %v3914, %v3910
    %v4215 = vpack.c.b16 %v3915, %v3911
    %v4216 = vpack.c.b16 %v3916, %v3912
    %v4217 = vpack.c.b16 %v3917, %v3913
    %v4218 = vpack.c.b16 %v3922, %v3918
    %v4219 = vpack.c.b16 %v3923, %v3919
    %v4220 = vpack.c.b16 %v3924, %v3920
    %v4221 = vpack.c.b16 %v3925, %v3921
    %v4222 = vpack.c.b16 %v3930, %v3926
    %v4223 = vpack.c.b16 %v3931, %v3927
    %v4224 = vpack.c.b16 %v3932, %v3928
    %v4225 = vpack.c.b16 %v3933, %v3929
    %v4226 = vpack.c.b16 %v3938, %v3934
    %v4227 = vpack.c.b16 %v3939, %v3935
    %v4228 = vpack.c.b16 %v3940, %v3936
    %v4229 = vpack.c.b16 %v3941, %v3937
    %v4230 = vpack.c.b16 %v3946, %v3942
    %v4231 = vpack.c.b16 %v3947, %v3943
    %v4232 = vpack.c.b16 %v3948, %v3944
    %v4233 = vpack.c.b16 %v3949, %v3945
    %v4234 = vpack.c.b16 %v3954, %v3950
    %v4235 = vpack.c.b16 %v3955, %v3951
    %v4236 = vpack.c.b16 %v3956, %v3952
    %v4237 = vpack.c.b16 %v3957, %v3953
    %v4238 = vpack.c.b16 %v3962, %v3958
    %v4239 = vpack.c.b16 %v3963, %v3959
    %v4240 = vpack.c.b16 %v3964, %v3960
    %v4241 = vpack.c.b16 %v3965, %v3961
    %v4242 = vpack.c.b16 %v3970, %v3966
    %v4243 = vpack.c.b16 %v3971, %v3967
    %v4244 = vpack.c.b16 %v3972, %v3968
    %v4245 = vpack.c.b16 %v3973, %v3969
    %v4246 = vpack.c.b16 %v3978, %v3974
    %v4247 = vpack.c.b16 %v3979, %v3975
    %v4248 = vpack.c.b16 %v3980, %v3976
    %v4249 = vpack.c.b16 %v3981, %v3977
    %v4250 = vpack.c.b16 %v3986, %v3982
    %v4251 = vpack.c.b16 %v3987, %v3983
    %v4252 = vpack.c.b16 %v3988, %v3984
    %v4253 = vpack.c.b16 %v3989, %v3985
    %v4254 = vpack.c.b16 %v3994, %v3990
    %v4255 = vpack.c.b16 %v3995, %v3991
    %v4256 = vpack.c.b16 %v3996, %v3992
    %v4257 = vpack.c.b16 %v3997, %v3993
    %v4258 = vpack.c.b16 %v4002, %v3998
    %v4259 = vpack.c.b16 %v4003, %v3999
    %v4260 = vpack.c.b16 %v4004, %v4000
    %v4261 = vpack.c.b16 %v4005, %v4001
    %v4262 = vpack.c.b16 %v4010, %v4006
    %v4263 = vpack.c.b16 %v4011, %v4007
    %v4264 = vpack.c.b16 %v4012, %v4008
    %v4265 = vpack.c.b16 %v4013, %v4009
    %v4266 = vpack.c.b16 %v4018, %v4014
    %v4267 = vpack.c.b16 %v4019, %v4015
    %v4268 = vpack.c.b16 %v4020, %v4016
    %v4269 = vpack.c.b16 %v4021, %v4017
    %v4270 = vpack.c.b16 %v4026, %v4022
    %v4271 = vpack.c.b16 %v4027, %v4023
    %v4272 = vpack.c.b16 %v4028, %v4024
    %v4273 = vpack.c.b16 %v4029, %v4025
    %v4274 = vpack.c.b16 %v4034, %v4030
    %v4275 = vpack.c.b16 %v4035, %v4031
    %v4276 = vpack.c.b16 %v4036, %v4032
    %v4277 = vpack.c.b16 %v4037, %v4033
    %v4278 = vpack.c.b16 %v4042, %v4038
    %v4279 = vpack.c.b16 %v4043, %v4039
    %v4280 = vpack.c.b16 %v4044, %v4040
    %v4281 = vpack.c.b16 %v4045, %v4041
    %v4282 = vpack.c.b16 %v4050, %v4046
    %v4283 = vpack.c.b16 %v4051, %v4047
    %v4284 = vpack.c.b16 %v4052, %v4048
    %v4285 = vpack.c.b16 %v4053, %v4049
    %v4286 = vpack.c.b16 %v4058, %v4054
    %v4287 = vpack.c.b16 %v4059, %v4055
    %v4288 = vpack.c.b16 %v4060, %v4056
    %v4289 = vpack.c.b16 %v4061, %v4057
    %v4290 = vpack.c.b16 %v4066, %v4062
    %v4291 = vpack.c.b16 %v4067, %v4063
    %v4292 = vpack.c.b16 %v4068, %v4064
    %v4293 = vpack.c.b16 %v4069, %v4065
    %v4294 = vpack.c.b16 %v4074, %v4070
    %v4295 = vpack.c.b16 %v4075, %v4071
    %v4296 = vpack.c.b16 %v4076, %v4072
    %v4297 = vpack.c.b16 %v4077, %v4073
    %v4298 = vpack.c.b16 %v4082, %v4078
    %v4299 = vpack.c.b16 %v4083, %v4079
    %v4300 = vpack.c.b16 %v4084, %v4080
    %v4301 = vpack.c.b16 %v4085, %v4081
    %v4302 = vpack.c.b16 %v4090, %v4086
    %v4303 = vpack.c.b16 %v4091, %v4087
    %v4304 = vpack.c.b16 %v4092, %v4088
    %v4305 = vpack.c.b16 %v4093, %v4089
    %v4306 = vpack.c.b16 %v4098, %v4094
    %v4307 = vpack.c.b16 %v4099, %v4095
    %v4308 = vpack.c.b16 %v4100, %v4096
    %v4309 = vpack.c.b16 %v4101, %v4097
    %v4310 = vpack.c.b16 %v4106, %v4102
    %v4311 = vpack.c.b16 %v4107, %v4103
    %v4312 = vpack.c.b16 %v4108, %v4104
    %v4313 = vpack.c.b16 %v4109, %v4105
    %v4314 = vpack.c.b16 %v4114, %v4110
    %v4315 = vpack.c.b16 %v4115, %v4111
    %v4316 = vpack.c.b16 %v4116, %v4112
    %v4317 = vpack.c.b16 %v4117, %v4113
    %v4318 = vpack.c.b16 %v4122, %v4118
    %v4319 = vpack.c.b16 %v4123, %v4119
    %v4320 = vpack.c.b16 %v4124, %v4120
    %v4321 = vpack.c.b16 %v4125, %v4121
    %v4322 = vpack.c.b16 %v4130, %v4126
    %v4323 = vpack.c.b16 %v4131, %v4127
    %v4324 = vpack.c.b16 %v4132, %v4128
    %v4325 = vpack.c.b16 %v4133, %v4129
    %4518 = vmatprep.subr.bf16.mxu0 %v4135
    %4519 = vmatpush1.bf16.msra.mxu0 %v4134
    %4520 = vmatprep.subr.bf16.mxu0 %v4139
    %4521 = vmatpush1.bf16.msra.mxu0 %v4138
    %4522 = vmatprep.subr.bf16.mxu0 %v4143
    %4523 = vmatpush1.bf16.msra.mxu0 %v4142
    %4524 = vmatprep.subr.bf16.mxu0 %v4147
    %4525 = vmatpush1.bf16.msra.mxu0 %v4146
    %4526 = vmatprep.subr.bf16.mxu0 %v4151
    %4527 = vmatpush1.bf16.msra.mxu0 %v4150
    %4528 = vmatprep.subr.bf16.mxu0 %v4155
    %4529 = vmatpush1.bf16.msra.mxu0 %v4154
    %4530 = vmatprep.subr.bf16.mxu0 %v4159
    %4531 = vmatpush1.bf16.msra.mxu0 %v4158
    %4532 = vmatprep.subr.bf16.mxu0 %v4163
    %4533 = vmatpush1.bf16.msra.mxu0 %v4162
    %4534 = vmatprep.subr.bf16.mxu0 %v4167
    %4535 = vmatpush1.bf16.msra.mxu0 %v4166
    %4536 = vmatprep.subr.bf16.mxu0 %v4171
    %4537 = vmatpush1.bf16.msra.mxu0 %v4170
    %4538 = vmatprep.subr.bf16.mxu0 %v4175
    %4539 = vmatpush1.bf16.msra.mxu0 %v4174
    %4540 = vmatprep.subr.bf16.mxu0 %v4179
    %4541 = vmatpush1.bf16.msra.mxu0 %v4178
    %4542 = vmatprep.subr.bf16.mxu0 %v4183
    %4543 = vmatpush1.bf16.msra.mxu0 %v4182
    %4544 = vmatprep.subr.bf16.mxu0 %v4187
    %4545 = vmatpush1.bf16.msra.mxu0 %v4186
    %4546 = vmatprep.subr.bf16.mxu0 %v4191
    %4547 = vmatpush1.bf16.msra.mxu0 %v4190
    %4548 = vmatprep.subr.bf16.mxu0 %v4195
    %4549 = vmatpush1.bf16.msra.mxu0 %v4194
    %4550 = vmatprep.mubr.bf16.mxu0 %v3361
    %4551 = vmatmul.mubr.bf16.gmra.mrb[0].mxu0 %v3360
    %v4552 = vpop.f32.mrb[0].mxu0
    %v4553 = vadd.f32 0.0, %v4552
    %v4554 = vpop.f32.mrb[0].mxu0
    %v4555 = vadd.f32 0.0, %v4554
    %v4556 = vpop.f32.mrb[0].mxu0
    %v4557 = vpop.f32.mrb[0].mxu0
    %4558 = vdwg.mxu0
    %4559 = vmatprep.subr.bf16.mxu0 %v4199
    %4560 = vmatpush1.bf16.msra.mxu0 %v4198
    %4561 = vmatprep.subr.bf16.mxu0 %v4203
    %4562 = vmatpush1.bf16.msra.mxu0 %v4202
    %4563 = vmatprep.subr.bf16.mxu0 %v4207
    %4564 = vmatpush1.bf16.msra.mxu0 %v4206
    %4565 = vmatprep.subr.bf16.mxu0 %v4211
    %4566 = vmatpush1.bf16.msra.mxu0 %v4210
    %4567 = vmatprep.subr.bf16.mxu0 %v4215
    %4568 = vmatpush1.bf16.msra.mxu0 %v4214
    %4569 = vmatprep.subr.bf16.mxu0 %v4219
    %4570 = vmatpush1.bf16.msra.mxu0 %v4218
    %4571 = vmatprep.subr.bf16.mxu0 %v4223
    %4572 = vmatpush1.bf16.msra.mxu0 %v4222
    %4573 = vmatprep.subr.bf16.mxu0 %v4227
    %4574 = vmatpush1.bf16.msra.mxu0 %v4226
    %4575 = vmatprep.subr.bf16.mxu0 %v4231
    %4576 = vmatpush1.bf16.msra.mxu0 %v4230
    %4577 = vmatprep.subr.bf16.mxu0 %v4235
    %4578 = vmatpush1.bf16.msra.mxu0 %v4234
    %4579 = vmatprep.subr.bf16.mxu0 %v4239
    %4580 = vmatpush1.bf16.msra.mxu0 %v4238
    %4581 = vmatprep.subr.bf16.mxu0 %v4243
    %4582 = vmatpush1.bf16.msra.mxu0 %v4242
    %4583 = vmatprep.subr.bf16.mxu0 %v4247
    %4584 = vmatpush1.bf16.msra.mxu0 %v4246
    %4585 = vmatprep.subr.bf16.mxu0 %v4251
    %4586 = vmatpush1.bf16.msra.mxu0 %v4250
    %4587 = vmatprep.subr.bf16.mxu0 %v4255
    %4588 = vmatpush1.bf16.msra.mxu0 %v4254
    %4589 = vmatprep.subr.bf16.mxu0 %v4259
    %4590 = vmatpush1.bf16.msra.mxu0 %v4258
    %4591 = vmatprep.mubr.bf16.mxu0 %v3363
    %4592 = vmatmul.mubr.bf16.gmra.mrb[0].mxu0 %v3362
    %v4593 = vpop.f32.mrb[0].mxu0
    %v4594 = vadd.f32 %v4553, %v4593
    %v4595 = vpop.f32.mrb[0].mxu0
    %v4596 = vadd.f32 %v4555, %v4595
    %v4597 = vpop.f32.mrb[0].mxu0
    %v4598 = vpop.f32.mrb[0].mxu0
    %4599 = vdwg.mxu0
    %4600 = vmatprep.subr.bf16.mxu0 %v4263
    %4601 = vmatpush1.bf16.msra.mxu0 %v4262
    %4602 = vmatprep.subr.bf16.mxu0 %v4267
    %4603 = vmatpush1.bf16.msra.mxu0 %v4266
    %4604 = vmatprep.subr.bf16.mxu0 %v4271
    %4605 = vmatpush1.bf16.msra.mxu0 %v4270
    %4606 = vmatprep.subr.bf16.mxu0 %v4275
    %4607 = vmatpush1.bf16.msra.mxu0 %v4274
    %4608 = vmatprep.subr.bf16.mxu0 %v4279
    %4609 = vmatpush1.bf16.msra.mxu0 %v4278
    %4610 = vmatprep.subr.bf16.mxu0 %v4283
    %4611 = vmatpush1.bf16.msra.mxu0 %v4282
    %4612 = vmatprep.subr.bf16.mxu0 %v4287
    %4613 = vmatpush1.bf16.msra.mxu0 %v4286
    %4614 = vmatprep.subr.bf16.mxu0 %v4291
    %4615 = vmatpush1.bf16.msra.mxu0 %v4290
    %4616 = vmatprep.subr.bf16.mxu0 %v4295
    %4617 = vmatpush1.bf16.msra.mxu0 %v4294
    %4618 = vmatprep.subr.bf16.mxu0 %v4299
    %4619 = vmatpush1.bf16.msra.mxu0 %v4298
    %4620 = vmatprep.subr.bf16.mxu0 %v4303
    %4621 = vmatpush1.bf16.msra.mxu0 %v4302
    %4622 = vmatprep.subr.bf16.mxu0 %v4307
    %4623 = vmatpush1.bf16.msra.mxu0 %v4306
    %4624 = vmatprep.subr.bf16.mxu0 %v4311
    %4625 = vmatpush1.bf16.msra.mxu0 %v4310
    %4626 = vmatprep.subr.bf16.mxu0 %v4315
    %4627 = vmatpush1.bf16.msra.mxu0 %v4314
    %4628 = vmatprep.subr.bf16.mxu0 %v4319
    %4629 = vmatpush1.bf16.msra.mxu0 %v4318
    %4630 = vmatprep.subr.bf16.mxu0 %v4323
    %4631 = vmatpush1.bf16.msra.mxu0 %v4322
    %4632 = vmatprep.mubr.bf16.mxu0 %v3365
    %4633 = vmatmul.mubr.bf16.gmra.mrb[0].mxu0 %v3364
    %v4634 = vpop.f32.mrb[0].mxu0
    %v4635 = vadd.f32 %v4594, %v4634
    %v4636 = vpop.f32.mrb[0].mxu0
    %v4637 = vadd.f32 %v4596, %v4636
    %v4638 = vpop.f32.mrb[0].mxu0
    %v4639 = vpop.f32.mrb[0].mxu0
    %4640 = vdwg.mxu0
    %4641 = vmatprep.subr.bf16.mxu0 %v4137
    %4642 = vmatpush1.bf16.msra.mxu0 %v4136
    %4643 = vmatprep.subr.bf16.mxu0 %v4141
    %4644 = vmatpush1.bf16.msra.mxu0 %v4140
    %4645 = vmatprep.subr.bf16.mxu0 %v4145
    %4646 = vmatpush1.bf16.msra.mxu0 %v4144
    %4647 = vmatprep.subr.bf16.mxu0 %v4149
    %4648 = vmatpush1.bf16.msra.mxu0 %v4148
    %4649 = vmatprep.subr.bf16.mxu0 %v4153
    %4650 = vmatpush1.bf16.msra.mxu0 %v4152
    %4651 = vmatprep.subr.bf16.mxu0 %v4157
    %4652 = vmatpush1.bf16.msra.mxu0 %v4156
    %4653 = vmatprep.subr.bf16.mxu0 %v4161
    %4654 = vmatpush1.bf16.msra.mxu0 %v4160
    %4655 = vmatprep.subr.bf16.mxu0 %v4165
    %4656 = vmatpush1.bf16.msra.mxu0 %v4164
    %4657 = vmatprep.subr.bf16.mxu0 %v4169
    %4658 = vmatpush1.bf16.msra.mxu0 %v4168
    %4659 = vmatprep.subr.bf16.mxu0 %v4173
    %4660 = vmatpush1.bf16.msra.mxu0 %v4172
    %4661 = vmatprep.subr.bf16.mxu0 %v4177
    %4662 = vmatpush1.bf16.msra.mxu0 %v4176
    %4663 = vmatprep.subr.bf16.mxu0 %v4181
    %4664 = vmatpush1.bf16.msra.mxu0 %v4180
    %4665 = vmatprep.subr.bf16.mxu0 %v4185
    %4666 = vmatpush1.bf16.msra.mxu0 %v4184
    %4667 = vmatprep.subr.bf16.mxu0 %v4189
    %4668 = vmatpush1.bf16.msra.mxu0 %v4188
    %4669 = vmatprep.subr.bf16.mxu0 %v4193
    %4670 = vmatpush1.bf16.msra.mxu0 %v4192
    %4671 = vmatprep.subr.bf16.mxu0 %v4197
    %4672 = vmatpush1.bf16.msra.mxu0 %v4196
    %4673 = vmatprep.mubr.bf16.mxu0 %v3361
    %4674 = vmatmul.mubr.bf16.gmra.mrb[0].mxu0 %v3360
    %v4675 = vpop.f32.mrb[0].mxu0
    %v4676 = vadd.f32 0.0, %v4675
    %v4677 = vpop.f32.mrb[0].mxu0
    %v4678 = vadd.f32 0.0, %v4677
    %v4679 = vpop.f32.mrb[0].mxu0
    %v4680 = vpop.f32.mrb[0].mxu0
    %4681 = vdwg.mxu0
    %4682 = vmatprep.subr.bf16.mxu0 %v4201
    %4683 = vmatpush1.bf16.msra.mxu0 %v4200
    %4684 = vmatprep.subr.bf16.mxu0 %v4205
    %4685 = vmatpush1.bf16.msra.mxu0 %v4204
    %4686 = vmatprep.subr.bf16.mxu0 %v4209
    %4687 = vmatpush1.bf16.msra.mxu0 %v4208
    %4688 = vmatprep.subr.bf16.mxu0 %v4213
    %4689 = vmatpush1.bf16.msra.mxu0 %v4212
    %4690 = vmatprep.subr.bf16.mxu0 %v4217
    %4691 = vmatpush1.bf16.msra.mxu0 %v4216
    %4692 = vmatprep.subr.bf16.mxu0 %v4221
    %4693 = vmatpush1.bf16.msra.mxu0 %v4220
    %4694 = vmatprep.subr.bf16.mxu0 %v4225
    %4695 = vmatpush1.bf16.msra.mxu0 %v4224
    %4696 = vmatprep.subr.bf16.mxu0 %v4229
    %4697 = vmatpush1.bf16.msra.mxu0 %v4228
    %4698 = vmatprep.subr.bf16.mxu0 %v4233
    %4699 = vmatpush1.bf16.msra.mxu0 %v4232
    %4700 = vmatprep.subr.bf16.mxu0 %v4237
    %4701 = vmatpush1.bf16.msra.mxu0 %v4236
    %4702 = vmatprep.subr.bf16.mxu0 %v4241
    %4703 = vmatpush1.bf16.msra.mxu0 %v4240
    %4704 = vmatprep.subr.bf16.mxu0 %v4245
    %4705 = vmatpush1.bf16.msra.mxu0 %v4244
    %4706 = vmatprep.subr.bf16.mxu0 %v4249
    %4707 = vmatpush1.bf16.msra.mxu0 %v4248
    %4708 = vmatprep.subr.bf16.mxu0 %v4253
    %4709 = vmatpush1.bf16.msra.mxu0 %v4252
    %4710 = vmatprep.subr.bf16.mxu0 %v4257
    %4711 = vmatpush1.bf16.msra.mxu0 %v4256
    %4712 = vmatprep.subr.bf16.mxu0 %v4261
    %4713 = vmatpush1.bf16.msra.mxu0 %v4260
    %4714 = vmatprep.mubr.bf16.mxu0 %v3363
    %4715 = vmatmul.mubr.bf16.gmra.mrb[0].mxu0 %v3362
    %v4716 = vpop.f32.mrb[0].mxu0
    %v4717 = vadd.f32 %v4676, %v4716
    %v4718 = vpop.f32.mrb[0].mxu0
    %v4719 = vadd.f32 %v4678, %v4718
    %v4720 = vpop.f32.mrb[0].mxu0
    %v4721 = vpop.f32.mrb[0].mxu0
    %4722 = vdwg.mxu0
    %4723 = vmatprep.subr.bf16.mxu0 %v4265
    %4724 = vmatpush1.bf16.msra.mxu0 %v4264
    %4725 = vmatprep.subr.bf16.mxu0 %v4269
    %4726 = vmatpush1.bf16.msra.mxu0 %v4268
    %4727 = vmatprep.subr.bf16.mxu0 %v4273
    %4728 = vmatpush1.bf16.msra.mxu0 %v4272
    %4729 = vmatprep.subr.bf16.mxu0 %v4277
    %4730 = vmatpush1.bf16.msra.mxu0 %v4276
    %4731 = vmatprep.subr.bf16.mxu0 %v4281
    %4732 = vmatpush1.bf16.msra.mxu0 %v4280
    %4733 = vmatprep.subr.bf16.mxu0 %v4285
    %4734 = vmatpush1.bf16.msra.mxu0 %v4284
    %4735 = vmatprep.subr.bf16.mxu0 %v4289
    %4736 = vmatpush1.bf16.msra.mxu0 %v4288
    %4737 = vmatprep.subr.bf16.mxu0 %v4293
    %4738 = vmatpush1.bf16.msra.mxu0 %v4292
    %4739 = vmatprep.subr.bf16.mxu0 %v4297
    %4740 = vmatpush1.bf16.msra.mxu0 %v4296
    %4741 = vmatprep.subr.bf16.mxu0 %v4301
    %4742 = vmatpush1.bf16.msra.mxu0 %v4300
    %4743 = vmatprep.subr.bf16.mxu0 %v4305
    %4744 = vmatpush1.bf16.msra.mxu0 %v4304
    %4745 = vmatprep.subr.bf16.mxu0 %v4309
    %4746 = vmatpush1.bf16.msra.mxu0 %v4308
    %4747 = vmatprep.subr.bf16.mxu0 %v4313
    %4748 = vmatpush1.bf16.msra.mxu0 %v4312
    %4749 = vmatprep.subr.bf16.mxu0 %v4317
    %4750 = vmatpush1.bf16.msra.mxu0 %v4316
    %4751 = vmatprep.subr.bf16.mxu0 %v4321
    %4752 = vmatpush1.bf16.msra.mxu0 %v4320
    %4753 = vmatprep.subr.bf16.mxu0 %v4325
    %4754 = vmatpush1.bf16.msra.mxu0 %v4324
    %4755 = vmatprep.mubr.bf16.mxu0 %v3365
    %4756 = vmatmul.mubr.bf16.gmra.mrb[0].mxu0 %v3364
    %v4757 = vpop.f32.mrb[0].mxu0
    %v4758 = vadd.f32 %v4717, %v4757
    %v4759 = vpop.f32.mrb[0].mxu0
    %v4760 = vadd.f32 %v4719, %v4759
    %v4761 = vpop.f32.mrb[0].mxu0
    %v4762 = vpop.f32.mrb[0].mxu0
    %4763 = vdwg.mxu0
    %v4764 = vadd.f32 %v3356, %v4635
    %v4765 = vadd.f32 %v3357, %v4637
    %v4766 = vadd.f32 %v3358, %v4758
    %v4767 = vadd.f32 %v3359, %v4760
    %v4768 = vmax.f32 %v4764, 0.0
    %v4769 = vmax.f32 %v4765, 0.0
    %v4770 = vmax.f32 %v4766, 0.0
    %v4771 = vmax.f32 %v4767, 0.0
    %v4772 = vpack.c.bf16 %v4768, %v4768
    %v4773 = vpack.c.bf16 %v4769, %v4769
    %v4774 = vpack.c.bf16 %v4770, %v4770
    %v4775 = vpack.c.bf16 %v4771, %v4771
    %v4776 = vld [vmem:[%s4] sm:$0xf]
    %v4777 = vld [vmem:[%s4 + $0x4] sm:$0xf]
    %v4778 = vld [vmem:[%s4 + $0x8] sm:$0xf]
    %v4779 = vld [vmem:[%s4 + $0xc] sm:$0xf]
    %v4780 = vld [vmem:[%s4 + $0x10] sm:$0xf]
    %v4781 = vld [vmem:[%s4 + $0x14] sm:$0xf]
    %v4782 = vld [vmem:[%s4 + $0x18] sm:$0xf]
    %v4783 = vld [vmem:[%s4 + $0x1c] sm:$0xf]
    %v4784 = vld [vmem:[%s4 + $0x20] sm:$0xf]
    %v4785 = vld [vmem:[%s4 + $0x24] sm:$0xf]
    %v4786 = vld [vmem:[%s4 + $0x28] sm:$0xf]
    %v4787 = vld [vmem:[%s4 + $0x2c] sm:$0xf]
    %v4788 = vld [vmem:[%s4 + $0x30] sm:$0xf]
    %v4789 = vld [vmem:[%s4 + $0x34] sm:$0xf]
    %v4790 = vld [vmem:[%s4 + $0x38] sm:$0xf]
    %v4791 = vld [vmem:[%s4 + $0x3c] sm:$0xf]
    %v4792 = vld [vmem:[%s4 + $0x40] sm:$0xf]
    %v4793 = vld [vmem:[%s4 + $0x44] sm:$0xf]
    %v4794 = vld [vmem:[%s4 + $0x48] sm:$0xf]
    %v4795 = vld [vmem:[%s4 + $0x4c] sm:$0xf]
    %v4796 = vld [vmem:[%s4 + $0x50] sm:$0xf]
    %v4797 = vld [vmem:[%s4 + $0x54] sm:$0xf]
    %v4798 = vld [vmem:[%s4 + $0x58] sm:$0xf]
    %v4799 = vld [vmem:[%s4 + $0x5c] sm:$0xf]
    %v4800 = vld [vmem:[%s4 + $0x60] sm:$0xf]
    %v4801 = vld [vmem:[%s4 + $0x64] sm:$0xf]
    %v4802 = vld [vmem:[%s4 + $0x68] sm:$0xf]
    %v4803 = vld [vmem:[%s4 + $0x6c] sm:$0xf]
    %v4804 = vld [vmem:[%s4 + $0x70] sm:$0xf]
    %v4805 = vld [vmem:[%s4 + $0x74] sm:$0xf]
    %v4806 = vld [vmem:[%s4 + $0x78] sm:$0xf]
    %v4807 = vld [vmem:[%s4 + $0x7c] sm:$0xf]
    %v4808 = vld [vmem:[%s4 + $0x80] sm:$0xf]
    %v4809 = vld [vmem:[%s4 + $0x84] sm:$0xf]
    %v4810 = vld [vmem:[%s4 + $0x88] sm:$0xf]
    %v4811 = vld [vmem:[%s4 + $0x8c] sm:$0xf]
    %v4812 = vld [vmem:[%s4 + $0x90] sm:$0xf]
    %v4813 = vld [vmem:[%s4 + $0x94] sm:$0xf]
    %v4814 = vld [vmem:[%s4 + $0x98] sm:$0xf]
    %v4815 = vld [vmem:[%s4 + $0x9c] sm:$0xf]
    %v4816 = vld [vmem:[%s4 + $0xa0] sm:$0xf]
    %v4817 = vld [vmem:[%s4 + $0xa4] sm:$0xf]
    %v4818 = vld [vmem:[%s4 + $0xa8] sm:$0xf]
    %v4819 = vld [vmem:[%s4 + $0xac] sm:$0xf]
    %v4820 = vld [vmem:[%s4 + $0xb0] sm:$0xf]
    %v4821 = vld [vmem:[%s4 + $0xb4] sm:$0xf]
    %v4822 = vld [vmem:[%s4 + $0xb8] sm:$0xf]
    %v4823 = vld [vmem:[%s4 + $0xbc] sm:$0xf]
    %v4824 = vld [vmem:[%s4 + $0xc0] sm:$0xf]
    %v4825 = vld [vmem:[%s4 + $0xc4] sm:$0xf]
    %v4826 = vld [vmem:[%s4 + $0xc8] sm:$0xf]
    %v4827 = vld [vmem:[%s4 + $0xcc] sm:$0xf]
    %v4828 = vld [vmem:[%s4 + $0xd0] sm:$0xf]
    %v4829 = vld [vmem:[%s4 + $0xd4] sm:$0xf]
    %v4830 = vld [vmem:[%s4 + $0xd8] sm:$0xf]
    %v4831 = vld [vmem:[%s4 + $0xdc] sm:$0xf]
    %v4832 = vld [vmem:[%s4 + $0xe0] sm:$0xf]
    %v4833 = vld [vmem:[%s4 + $0xe4] sm:$0xf]
    %v4834 = vld [vmem:[%s4 + $0xe8] sm:$0xf]
    %v4835 = vld [vmem:[%s4 + $0xec] sm:$0xf]
    %v4836 = vld [vmem:[%s4 + $0xf0] sm:$0xf]
    %v4837 = vld [vmem:[%s4 + $0xf4] sm:$0xf]
    %v4838 = vld [vmem:[%s4 + $0xf8] sm:$0xf]
    %v4839 = vld [vmem:[%s4 + $0xfc] sm:$0xf]
    %v4840 = vld [vmem:[#allocation10 + $0x2] ss:$0 sm:$0xff]
    %v4905 = vunpack.c.l.b16 %v4776
    %v4906 = vunpack.c.l.b16 %v4777
    %v4907 = vunpack.c.l.b16 %v4778
    %v4908 = vunpack.c.l.b16 %v4779
    %v4909 = vunpack.c.l.b16 %v4780
    %v4910 = vunpack.c.l.b16 %v4781
    %v4911 = vunpack.c.l.b16 %v4782
    %v4912 = vunpack.c.l.b16 %v4783
    %v4913 = vunpack.c.l.b16 %v4784
    %v4914 = vunpack.c.l.b16 %v4785
    %v4915 = vunpack.c.l.b16 %v4786
    %v4916 = vunpack.c.l.b16 %v4787
    %v4917 = vunpack.c.l.b16 %v4788
    %v4918 = vunpack.c.l.b16 %v4789
    %v4919 = vunpack.c.l.b16 %v4790
    %v4920 = vunpack.c.l.b16 %v4791
    %v4921 = vunpack.c.l.b16 %v4792
    %v4922 = vunpack.c.l.b16 %v4793
    %v4923 = vunpack.c.l.b16 %v4794
    %v4924 = vunpack.c.l.b16 %v4795
    %v4925 = vunpack.c.l.b16 %v4796
    %v4926 = vunpack.c.l.b16 %v4797
    %v4927 = vunpack.c.l.b16 %v4798
    %v4928 = vunpack.c.l.b16 %v4799
    %v4929 = vunpack.c.l.b16 %v4800
    %v4930 = vunpack.c.l.b16 %v4801
    %v4931 = vunpack.c.l.b16 %v4802
    %v4932 = vunpack.c.l.b16 %v4803
    %v4933 = vunpack.c.l.b16 %v4804
    %v4934 = vunpack.c.l.b16 %v4805
    %v4935 = vunpack.c.l.b16 %v4806
    %v4936 = vunpack.c.l.b16 %v4807
    %v4937 = vunpack.c.l.b16 %v4808
    %v4938 = vunpack.c.l.b16 %v4809
    %v4939 = vunpack.c.l.b16 %v4810
    %v4940 = vunpack.c.l.b16 %v4811
    %v4941 = vunpack.c.l.b16 %v4812
    %v4942 = vunpack.c.l.b16 %v4813
    %v4943 = vunpack.c.l.b16 %v4814
    %v4944 = vunpack.c.l.b16 %v4815
    %v4945 = vunpack.c.l.b16 %v4816
    %v4946 = vunpack.c.l.b16 %v4817
    %v4947 = vunpack.c.l.b16 %v4818
    %v4948 = vunpack.c.l.b16 %v4819
    %v4949 = vunpack.c.l.b16 %v4820
    %v4950 = vunpack.c.l.b16 %v4821
    %v4951 = vunpack.c.l.b16 %v4822
    %v4952 = vunpack.c.l.b16 %v4823
    %v4953 = vunpack.c.l.b16 %v4824
    %v4954 = vunpack.c.l.b16 %v4825
    %v4955 = vunpack.c.l.b16 %v4826
    %v4956 = vunpack.c.l.b16 %v4827
    %v4957 = vunpack.c.l.b16 %v4828
    %v4958 = vunpack.c.l.b16 %v4829
    %v4959 = vunpack.c.l.b16 %v4830
    %v4960 = vunpack.c.l.b16 %v4831
    %v4961 = vunpack.c.l.b16 %v4832
    %v4962 = vunpack.c.l.b16 %v4833
    %v4963 = vunpack.c.l.b16 %v4834
    %v4964 = vunpack.c.l.b16 %v4835
    %v4965 = vunpack.c.l.b16 %v4836
    %v4966 = vunpack.c.l.b16 %v4837
    %v4967 = vunpack.c.l.b16 %v4838
    %v4968 = vunpack.c.l.b16 %v4839
    %v4969 = vpack.c.b16 %v4906, %v4905
    %v4970 = vpack.c.b16 %v4908, %v4907
    %v4971 = vpack.c.b16 %v4910, %v4909
    %v4972 = vpack.c.b16 %v4912, %v4911
    %v4973 = vpack.c.b16 %v4914, %v4913
    %v4974 = vpack.c.b16 %v4916, %v4915
    %v4975 = vpack.c.b16 %v4918, %v4917
    %v4976 = vpack.c.b16 %v4920, %v4919
    %v4977 = vpack.c.b16 %v4922, %v4921
    %v4978 = vpack.c.b16 %v4924, %v4923
    %v4979 = vpack.c.b16 %v4926, %v4925
    %v4980 = vpack.c.b16 %v4928, %v4927
    %v4981 = vpack.c.b16 %v4930, %v4929
    %v4982 = vpack.c.b16 %v4932, %v4931
    %v4983 = vpack.c.b16 %v4934, %v4933
    %v4984 = vpack.c.b16 %v4936, %v4935
    %v4985 = vpack.c.b16 %v4938, %v4937
    %v4986 = vpack.c.b16 %v4940, %v4939
    %v4987 = vpack.c.b16 %v4942, %v4941
    %v4988 = vpack.c.b16 %v4944, %v4943
    %v4989 = vpack.c.b16 %v4946, %v4945
    %v4990 = vpack.c.b16 %v4948, %v4947
    %v4991 = vpack.c.b16 %v4950, %v4949
    %v4992 = vpack.c.b16 %v4952, %v4951
    %v4993 = vpack.c.b16 %v4954, %v4953
    %v4994 = vpack.c.b16 %v4956, %v4955
    %v4995 = vpack.c.b16 %v4958, %v4957
    %v4996 = vpack.c.b16 %v4960, %v4959
    %v4997 = vpack.c.b16 %v4962, %v4961
    %v4998 = vpack.c.b16 %v4964, %v4963
    %v4999 = vpack.c.b16 %v4966, %v4965
    %v5000 = vpack.c.b16 %v4968, %v4967
    %5033 = vmatprep.subr.bf16.mxu0 0
    %5034 = vmatpush1.bf16.msra.mxu0 %v4969
    %5035 = vmatprep.subr.bf16.mxu0 0
    %5036 = vmatpush1.bf16.msra.mxu0 %v4970
    %5037 = vmatprep.subr.bf16.mxu0 0
    %5038 = vmatpush1.bf16.msra.mxu0 %v4971
    %5039 = vmatprep.subr.bf16.mxu0 0
    %5040 = vmatpush1.bf16.msra.mxu0 %v4972
    %5041 = vmatprep.subr.bf16.mxu0 0
    %5042 = vmatpush1.bf16.msra.mxu0 %v4973
    %5043 = vmatprep.subr.bf16.mxu0 0
    %5044 = vmatpush1.bf16.msra.mxu0 %v4974
    %5045 = vmatprep.subr.bf16.mxu0 0
    %5046 = vmatpush1.bf16.msra.mxu0 %v4975
    %5047 = vmatprep.subr.bf16.mxu0 0
    %5048 = vmatpush1.bf16.msra.mxu0 %v4976
    %5049 = vmatprep.subr.bf16.mxu0 0
    %5050 = vmatpush1.bf16.msra.mxu0 %v4977
    %5051 = vmatprep.subr.bf16.mxu0 0
    %5052 = vmatpush1.bf16.msra.mxu0 %v4978
    %5053 = vmatprep.subr.bf16.mxu0 0
    %5054 = vmatpush1.bf16.msra.mxu0 %v4979
    %5055 = vmatprep.subr.bf16.mxu0 0
    %5056 = vmatpush1.bf16.msra.mxu0 %v4980
    %5057 = vmatprep.subr.bf16.mxu0 0
    %5058 = vmatpush1.bf16.msra.mxu0 %v4981
    %5059 = vmatprep.subr.bf16.mxu0 0
    %5060 = vmatpush1.bf16.msra.mxu0 %v4982
    %5061 = vmatprep.subr.bf16.mxu0 0
    %5062 = vmatpush1.bf16.msra.mxu0 %v4983
    %5063 = vmatprep.subr.bf16.mxu0 0
    %5064 = vmatpush1.bf16.msra.mxu0 %v4984
    %5065 = vmatprep.mubr.bf16.mxu0 %v4773
    %5066 = vmatmul.mubr.bf16.gmra.mrb[0].mxu0 %v4772
    %v5067 = vpop.f32.mrb[0].mxu0
    %v5068 = vadd.f32 %v4840, %v5067
    %v5069 = vpop.f32.mrb[0].mxu0
    %v5070 = vpop.f32.mrb[0].mxu0
    %v5071 = vpop.f32.mrb[0].mxu0
    %5072 = vdwg.mxu0
    %5073 = vmatprep.subr.bf16.mxu0 0
    %5074 = vmatpush1.bf16.msra.mxu0 %v4985
    %5075 = vmatprep.subr.bf16.mxu0 0
    %5076 = vmatpush1.bf16.msra.mxu0 %v4986
    %5077 = vmatprep.subr.bf16.mxu0 0
    %5078 = vmatpush1.bf16.msra.mxu0 %v4987
    %5079 = vmatprep.subr.bf16.mxu0 0
    %5080 = vmatpush1.bf16.msra.mxu0 %v4988
    %5081 = vmatprep.subr.bf16.mxu0 0
    %5082 = vmatpush1.bf16.msra.mxu0 %v4989
    %5083 = vmatprep.subr.bf16.mxu0 0
    %5084 = vmatpush1.bf16.msra.mxu0 %v4990
    %5085 = vmatprep.subr.bf16.mxu0 0
    %5086 = vmatpush1.bf16.msra.mxu0 %v4991
    %5087 = vmatprep.subr.bf16.mxu0 0
    %5088 = vmatpush1.bf16.msra.mxu0 %v4992
    %5089 = vmatprep.subr.bf16.mxu0 0
    %5090 = vmatpush1.bf16.msra.mxu0 %v4993
    %5091 = vmatprep.subr.bf16.mxu0 0
    %5092 = vmatpush1.bf16.msra.mxu0 %v4994
    %5093 = vmatprep.subr.bf16.mxu0 0
    %5094 = vmatpush1.bf16.msra.mxu0 %v4995
    %5095 = vmatprep.subr.bf16.mxu0 0
    %5096 = vmatpush1.bf16.msra.mxu0 %v4996
    %5097 = vmatprep.subr.bf16.mxu0 0
    %5098 = vmatpush1.bf16.msra.mxu0 %v4997
    %5099 = vmatprep.subr.bf16.mxu0 0
    %5100 = vmatpush1.bf16.msra.mxu0 %v4998
    %5101 = vmatprep.subr.bf16.mxu0 0
    %5102 = vmatpush1.bf16.msra.mxu0 %v4999
    %5103 = vmatprep.subr.bf16.mxu0 0
    %5104 = vmatpush1.bf16.msra.mxu0 %v5000
    %5105 = vmatprep.mubr.bf16.mxu0 %v4775
    %5106 = vmatmul.mubr.bf16.gmra.mrb[0].mxu0 %v4774
    %v5107 = vpop.f32.mrb[0].mxu0
    %v5108 = vadd.f32 %v5068, %v5107
    %v5109 = vpop.f32.mrb[0].mxu0
    %v5110 = vpop.f32.mrb[0].mxu0
    %v5111 = vpop.f32.mrb[0].mxu0
    %5112 = vdwg.mxu0
    %v5113 = vld [vmem:[#allocation10] ss:$8 sm:$0xf]
    %v5114 = vld [vmem:[#allocation10] ss:$8 sm:$0x30]
    %v5115 = vor.u32 %v5113, %v5114
    %v5117 = vlaneseq
    %v5118 = vshrl.u32 %v5117, 7
    %v5119 = vsub.s32 0, %v5118
    %v5120 = vrot.slane %v5115, %v5119
    %v5121 = vlaneseq
    %v5122 = vshrl.u32 %v5121, 7
    %v5123 = vsub.s32 1, %v5122
    %v5124 = vrot.slane %v5115, %v5123
    %v5125 = vlaneseq
    %v5126 = vshrl.u32 %v5125, 7
    %v5127 = vsub.s32 2, %v5126
    %v5128 = vrot.slane %v5115, %v5127
    %v5129 = vlaneseq
    %v5130 = vshrl.u32 %v5129, 7
    %v5131 = vsub.s32 3, %v5130
    %v5132 = vrot.slane %v5115, %v5131
    %v5133 = vlaneseq
    %v5134 = vshrl.u32 %v5133, 7
    %v5135 = vsub.s32 4, %v5134
    %v5136 = vrot.slane %v5115, %v5135
    %v5137 = vlaneseq
    %v5138 = vshrl.u32 %v5137, 7
    %v5139 = vsub.s32 5, %v5138
    %v5140 = vrot.slane %v5115, %v5139
    %v5147 = vmul.f32 %v231, %v5120
    %v5148 = vmul.f32 %v232, %v5124
    %v5149 = vmul.f32 %v233, %v5128
    %v5150 = vmul.f32 %v234, %v5132
    %v5151 = vmul.f32 %v235, %v5136
    %v5152 = vmul.f32 %v236, %v5140
    %vm5153 = vcmask 1041408
    %v5154 = vsel %vm5153, %v5147, 0.0
    %v5155 = vsel %vm5153, %v5148, 0.0
    %v5156 = vadd.f32 %v5154, %v5155
    %v5157 = vsel %vm5153, %v5149, 0.0
    %v5158 = vadd.f32 %v5156, %v5157
    %v5159 = vsel %vm5153, %v5150, 0.0
    %v5160 = vadd.f32 %v5158, %v5159
    %v5161 = vsel %vm5153, %v5151, 0.0
    %v5162 = vadd.f32 %v5160, %v5161
    %v5163 = vsel %vm5153, %v5152, 0.0
    %v5164 = vadd.f32 %v5162, %v5163
    %5165 = vadd.xlane.f32.xlu0 %v5164
    %v5166 = vpop.xlane.xlu0 %5165
    %v5167 = vmul.f32 %v373, %v5120
    %v5168 = vmul.f32 %v374, %v5124
    %v5169 = vmul.f32 %v375, %v5128
    %v5170 = vmul.f32 %v376, %v5132
    %v5171 = vmul.f32 %v377, %v5136
    %v5172 = vmul.f32 %v378, %v5140
    %v5173 = vsel %vm5153, %v5167, 0.0
    %v5174 = vsel %vm5153, %v5168, 0.0
    %v5175 = vadd.f32 %v5173, %v5174
    %v5176 = vsel %vm5153, %v5169, 0.0
    %v5177 = vadd.f32 %v5175, %v5176
    %v5178 = vsel %vm5153, %v5170, 0.0
    %v5179 = vadd.f32 %v5177, %v5178
    %v5180 = vsel %vm5153, %v5171, 0.0
    %v5181 = vadd.f32 %v5179, %v5180
    %v5182 = vsel %vm5153, %v5172, 0.0
    %v5183 = vadd.f32 %v5181, %v5182
    %5184 = vadd.xlane.f32.xlu0 %v5183
    %v5185 = vpop.xlane.xlu0 %5184
    %v5186 = vmul.f32 %v515, %v5120
    %v5187 = vmul.f32 %v516, %v5124
    %v5188 = vmul.f32 %v517, %v5128
    %v5189 = vmul.f32 %v518, %v5132
    %v5190 = vmul.f32 %v519, %v5136
    %v5191 = vmul.f32 %v520, %v5140
    %v5192 = vsel %vm5153, %v5186, 0.0
    %v5193 = vsel %vm5153, %v5187, 0.0
    %v5194 = vadd.f32 %v5192, %v5193
    %v5195 = vsel %vm5153, %v5188, 0.0
    %v5196 = vadd.f32 %v5194, %v5195
    %v5197 = vsel %vm5153, %v5189, 0.0
    %v5198 = vadd.f32 %v5196, %v5197
    %v5199 = vsel %vm5153, %v5190, 0.0
    %v5200 = vadd.f32 %v5198, %v5199
    %v5201 = vsel %vm5153, %v5191, 0.0
    %v5202 = vadd.f32 %v5200, %v5201
    %5203 = vadd.xlane.f32.xlu0 %v5202
    %v5204 = vpop.xlane.xlu0 %5203
    %vm5205 = vcmask 7168
    %v5206 = vsel %vm5205, %v5166, %v5185
    %vm5207 = vcmask 15360
    %v5208 = vsel %vm5207, %v5206, %v5204
    %v5209 = vld [vmem:[#allocation10 + $0x3] ss:$0 sm:$0xff]
    %v5210 = vadd.f32 %v5208, %v5209
    %v5211 = vxor.u32 %v5210, 2147483648
    %v5212 = vmul.f32 %v5211, 1.442695
    %v5213 = vpow.pop %v5212
    %v5214 = vadd.f32 %v5213, 1.0
    %v5215 = vrcp.pop %v5214
    %v5216 = vmul.f32 1.0, %v5215
    %5218 = vrot.lane.b32.xlu0 %v5216, 5
    %v5219 = vpop.permute.xlu0 %5218
    %vm5221 = vcmask 39936
    %v5222 = vsel %vm5221, %v5108, %v5219
    %vm5223 = vcmask 64512
    %v5224 = vsel %vm5223, %v5222, 0.0
    %5225 = vst [vmem:[#allocation11] sm:$0x3] %v5224
    // Predicated region
    $region30: #{tpu_custom_call.1} parent=1 // pred_check
      _
    $region31: #{tpu_custom_call.1} parent=1 // pred_check_branch
      %5227 = sbr.rel (0) target = $region33
    $region32: #{tpu_custom_call.1} parent=1 // pred_region
      %s5229 = ssub.s32 32, 32
      %5230 = vsyncadd [#allocation7], %s5229
      %s5232 = sshll.u32 [#allocation11], 4
      %s5233 = int_to_ptr.vmem [resolvable:$true] %s5232
      %5235 = dma.vmem_to_hbm [thread:$0]  %s5233, 32, %s6, [#allocation7]
    $region33: #{tpu_custom_call.1} parent=1 // pred_fallthru
      _
    // Predicated region
    $region34: #{tpu_custom_call.1} parent=1 // pred_check
      _
    $region35: #{tpu_custom_call.1} parent=1 // pred_check_branch
      %5237 = sbr.rel (0) target = $region37
    $region36: #{tpu_custom_call.1} parent=1 // pred_region
      %5238 = dma.done [#allocation7], 32
    $region37: #{tpu_custom_call.1} parent=1 // pred_fallthru
      _
    %5239 = vsyncpa [#allocation6], 1
    %5240 = vsyncpa [#allocation9], 1
    %5241 = vsyncpa [#allocation7], 1

</llo_original>
